<compile_context>
chip_gen: v7x
topology: tpu7x:2x2x1
jax: 0.10.0
libtpu: 0.0.40
codegen_flags: <defaults>
</compile_context>

<pallas_src>
import functools

import jax
import jax.numpy as jnp
from jax.experimental import pallas as pl
from jax.experimental.pallas import tpu as pltpu


def _sfe_kernel(x_ref, wf_ref, bf_ref, wb_ref, bb_ref, mask_ref, o_ref,
                pad_a, pad_b, patch_buf,
                *, W, Cin, Cmid, num_blocks, res_scale, M, S):
    """Fused SFE trunk for one image (channel-major, flat padded spatial).

    Per grid step:
      x_ref  : (1, Cin, S+2M) f32   input, padded-flat spatial with zero margins
      wf_ref : (Cmid, 9*Cin)  bf16  conv_first weight^T (im2col-K transposed)
      bf_ref : (Cmid, 1)      f32
      wb_ref : (L, Cmid, 9*Cmid) bf16  block convs (2*num_blocks) + conv_last
      bb_ref : (L, Cmid, 1)   f32
      mask_ref: (1, S)        f32   1 at interior, 0 on the halo ring
      o_ref  : (1, Cmid, S)   f32   padded-flat output (wrapper slices interior)
    Scratch:
      pad_a, pad_b : (Cmid, S+2M) f32  padded activations (interior at lane M)
      patch_buf    : (9*Cmid, S)  bf16 im2col patch matrix (reused by every conv)
    """
    f32 = jnp.float32
    bf16 = jnp.bfloat16
    Wp = W + 2

    # Zero only the margin lanes (stale VMEM could be NaN); the halo ring is
    # handled by the mask multiply and interiors are rewritten every layer.
    pad_a[:, 0:M] = jnp.zeros((Cmid, M), f32)
    pad_a[:, M + S:M + S + M] = jnp.zeros((Cmid, M), f32)
    pad_b[:, 0:M] = jnp.zeros((Cmid, M), f32)
    pad_b[:, M + S:M + S + M] = jnp.zeros((Cmid, M), f32)

    mask = mask_ref[...]                       # (1, S), broadcasts over channels

    def im2col(get_slab, C):
        # Nine lane-dense (C, S) slab writes; the (dy, dx) shift is a static lane
        # offset absorbed by the source slice (load-side rotate), not a masked store.
        for tap in range(9):
            dy, dx = divmod(tap, 3)
            d = (dy - 1) * Wp + (dx - 1)
            patch_buf[tap * C:(tap + 1) * C, :] = get_slab(d).astype(bf16)

    def conv(src_ref, w_t, b):
        # One MXU matmul per conv: (Cmid, 9*Cmid) @ (9*Cmid, S) -> (Cmid, S) f32.
        im2col(lambda d: src_ref[:, M + d:M + d + S], Cmid)
        return jnp.dot(w_t, patch_buf[...], preferred_element_type=f32) + b

    # ---- x1 = relu(conv_first(x)) : feeds the trunk and the global skip --------
    xv = x_ref[0]                                             # (Cin, S+2M) f32
    im2col(lambda d: xv[:, M + d:M + d + S], Cin)
    y0 = jnp.dot(wf_ref[...], patch_buf[:9 * Cin, :],
                 preferred_element_type=f32) + bf_ref[...]
    x1 = mask * jnp.maximum(y0, 0.0)                          # halo ring -> 0
    o_ref[0] = x1                     # global skip lives in the VMEM output block
    pad_a[:, M:M + S] = x1

    # ---- ResidualBlockNoBN trunk ------------------------------------------------
    @pl.loop(0, num_blocks)
    def _(blk):
        w1 = wb_ref[2 * blk]
        b1 = bb_ref[2 * blk]
        w2 = wb_ref[2 * blk + 1]
        b2 = bb_ref[2 * blk + 1]
        t = mask * jnp.maximum(conv(pad_a, w1, b1), 0.0)
        pad_b[:, M:M + S] = t
        r = conv(pad_b, w2, b2)                               # ring is garbage
        h = pad_a[:, M:M + S]                                 # ring already 0
        if res_scale == 1.0:
            h = mask * (h + r)
        else:
            h = mask * (h + jnp.float32(res_scale) * r)
        pad_a[:, M:M + S] = h

    # ---- conv_last + global skip --------------------------------------------------
    wl = wb_ref[2 * num_blocks]
    bl = bb_ref[2 * num_blocks]
    # Ring positions of the sum are finite garbage; the wrapper slices them away.
    o_ref[0] = o_ref[0] + conv(pad_a, wl, bl)


def _nbytes(shape, dtype):
    size = 1
    for s in shape:
        size *= int(s)
    return size * jnp.dtype(dtype).itemsize


def _resident_spec(block_shape):
    """BlockSpec for a grid-invariant input; single-buffered when supported."""
    ndim = len(block_shape)
    index_map = lambda i, _nd=ndim: (0,) * _nd
    try:
        return pl.BlockSpec(block_shape, index_map, pipeline_mode=pl.Buffered(1))
    except TypeError:  # pragma: no cover - older Pallas without pipeline_mode
        return pl.BlockSpec(block_shape, index_map)


def sfe_forward(x_nchw, params, res_scale=1.0):
    """SFE forward. Input/output in NCHW to match the PyTorch module."""
    x = x_nchw.astype(jnp.float32)
    n, cin, h, w = x.shape
    w0, b0 = params["conv_first"]
    cmid = w0.shape[-1]
    num_blocks = len(params["blocks"])
    L = 2 * num_blocks + 1

    # bf16 packs 16 rows per vreg; keep all patch-row offsets sublane-aligned.
    assert cmid % 16 == 0, "mid_channels must be a multiple of 16"
    cin_p = ((cin + 15) // 16) * 16            # pad input channels (zeros)

    S = (h + 2) * (w + 2)
    # Lane margin >= w+3 (max |tap offset|), rounded to a multiple of 128 so the
    # per-layer interior writeback pad[:, M:M+S] is lane-aligned.
    M = ((w + 3 + 127) // 128) * 128
    S_ext = S + 2 * M

    # Padded-flat channel-major input with zero margins: (n, cin_p, S_ext).
    xp = jnp.pad(x, ((0, 0), (0, cin_p - cin), (1, 1), (1, 1)))
    x_ext = jnp.pad(xp.reshape(n, cin_p, S), ((0, 0), (0, 0), (M, M)))

    # Interior mask over the flat padded domain (1 inside, 0 on the halo ring).
    m2 = jnp.zeros((h + 2, w + 2), jnp.float32).at[1:h + 1, 1:w + 1].set(1.0)
    mask = m2.reshape(1, S)

    # Weights in transposed im2col layout (Cout, 9*Cin), bf16 for the MXU.
    w0p = jnp.pad(w0, ((0, 0), (0, 0), (0, cin_p - cin), (0, 0)))
    wf_t = w0p.reshape(9 * cin_p, cmid).T.astype(jnp.bfloat16)       # (cmid, 9*cin_p)
    bf = b0.reshape(cmid, 1).astype(jnp.float32)

    body_w, body_b = [], []
    for blk in params["blocks"]:
        body_w += [blk["w1"], blk["w2"]]
        body_b += [blk["b1"], blk["b2"]]
    wl, bl = params["conv_last"]
    body_w.append(wl)
    body_b.append(bl)
    wb_t = jnp.stack([wt.reshape(9 * cmid, cmid).T for wt in body_w]
                     ).astype(jnp.bfloat16)                           # (L, cmid, 9*cmid)
    bb = jnp.stack([bt.reshape(cmid, 1) for bt in body_b]
                   ).astype(jnp.float32)                              # (L, cmid, 1)

    kernel = functools.partial(
        _sfe_kernel, W=w, Cin=cin_p, Cmid=cmid,
        num_blocks=num_blocks, res_scale=float(res_scale), M=M, S=S)

    # VMEM budget computed from the actual footprint (not a hard-coded 32 MiB).
    scratch_bytes = (2 * _nbytes((cmid, S_ext), jnp.float32)
                     + _nbytes((9 * cmid, S), jnp.bfloat16))
    stream_bytes = 2 * (_nbytes((1, cin_p, S_ext), jnp.float32)
                        + _nbytes((1, cmid, S), jnp.float32))
    resident_bytes = (_nbytes(wf_t.shape, jnp.bfloat16) + _nbytes(bf.shape, jnp.float32)
                      + _nbytes(wb_t.shape, jnp.bfloat16) + _nbytes(bb.shape, jnp.float32)
                      + _nbytes(mask.shape, jnp.float32))
    vmem_limit = int(min(96 * 2 ** 20,
                         max(32 * 2 ** 20,
                             2 * (scratch_bytes + stream_bytes + resident_bytes))))

    flops = n * 2 * S * 9 * cin_p * cmid + n * L * 2 * S * 9 * cmid * cmid
    bytes_accessed = int(x_ext.size * 4 + n * cmid * S * 4
                         + wf_t.size * 2 + wb_t.size * 2
                         + (bf.size + bb.size + mask.size) * 4)

    out_pad = pl.pallas_call(
        kernel,
        out_shape=jax.ShapeDtypeStruct((n, cmid, S), jnp.float32),
        grid_spec=pltpu.PrefetchScalarGridSpec(
            num_scalar_prefetch=0,
            grid=(n,),
            in_specs=[
                pl.BlockSpec((1, cin_p, S_ext), lambda i: (i, 0, 0)),
                _resident_spec((cmid, 9 * cin_p)),
                _resident_spec((cmid, 1)),
                _resident_spec((L, cmid, 9 * cmid)),
                _resident_spec((L, cmid, 1)),
                _resident_spec((1, S)),
            ],
            out_specs=pl.BlockSpec((1, cmid, S), lambda i: (i, 0, 0)),
            scratch_shapes=[
                pltpu.VMEM((cmid, S_ext), jnp.float32),
                pltpu.VMEM((cmid, S_ext), jnp.float32),
                pltpu.VMEM((9 * cmid, S), jnp.bfloat16),
            ]),
        compiler_params=pltpu.CompilerParams(
            dimension_semantics=("parallel",),
            vmem_limit_bytes=vmem_limit),
        cost_estimate=pl.CostEstimate(
            flops=flops, transcendentals=0, bytes_accessed=bytes_accessed),
    )(x_ext, wf_t, bf, wb_t, bb, mask)

    # Free XLA slice of the interior; result is already NCHW.
    out = out_pad.reshape(n, cmid, h + 2, w + 2)[:, :, 1:h + 1, 1:w + 1]
    return out


def init_sfe_params(key, in_channels, mid_channels, num_blocks):
    """Deterministic synthetic parameters (HWIO weight layout)."""
    def conv_params(k, cin, cout, scale=0.05):
        kw, kb = jax.random.split(k)
        wt = scale * jax.random.normal(kw, (3, 3, cin, cout), jnp.float32)
        bias = scale * jax.random.normal(kb, (cout,), jnp.float32)
        return wt, bias

    keys = jax.random.split(key, 2 + 2 * num_blocks)
    params = {"conv_first": conv_params(keys[0], in_channels, mid_channels),
              "blocks": []}
    for i in range(num_blocks):
        w1, b1 = conv_params(keys[1 + 2 * i], mid_channels, mid_channels)
        w2, b2 = conv_params(keys[2 + 2 * i], mid_channels, mid_channels)
        params["blocks"].append({"w1": w1, "b1": b1, "w2": w2, "b2": b2})
    params["conv_last"] = conv_params(keys[-1], mid_channels, mid_channels)
    return params


def sfe_reference(x_nchw, params, res_scale=1.0):
    """Pure-JAX f32 reference (XLA convs) for a correctness smoke check."""
    x = jnp.transpose(x_nchw, (0, 2, 3, 1)).astype(jnp.float32)

    def conv(hh, wt, b):
        y = jax.lax.conv_general_dilated(
            hh, wt, window_strides=(1, 1), padding="SAME",
            dimension_numbers=("NHWC", "HWIO", "NHWC"),
            precision=jax.lax.Precision.HIGHEST)
        return y + b.reshape(1, 1, 1, -1)

    w0, b0 = params["conv_first"]
    x1 = jax.nn.relu(conv(x, w0, b0))
    hcur = x1
    for blk in params["blocks"]:
        r = conv(jax.nn.relu(conv(hcur, blk["w1"], blk["b1"])), blk["w2"], blk["b2"])
        hcur = hcur + res_scale * r
    wl, bl = params["conv_last"]
    out = conv(hcur, wl, bl) + x1
    return jnp.transpose(out, (0, 3, 1, 2))


if __name__ == "__main__":
    in_channels = 4
    mid_channels = 32
    num_blocks = 2
    res_scale = 1.0

    key = jax.random.PRNGKey(0)
    k_x, k_p = jax.random.split(key)

    x = jax.random.normal(k_x, (2, in_channels, 16, 16), jnp.float32)   # NCHW
    params = init_sfe_params(k_p, in_channels, mid_channels, num_blocks)

    out = jax.block_until_ready(sfe_forward(x, params, res_scale=res_scale))
    assert out.shape == (2, mid_channels, 16, 16)
    assert out.dtype == jnp.float32

    # Loose tolerance: kernel uses bf16 MXU operands with f32 accumulation.
    # (Re-check at the real 16-block / 64-channel config; error compounds.)
    ref = jax.block_until_ready(sfe_reference(x, params, res_scale=res_scale))
    max_err = float(jnp.max(jnp.abs(out - ref)))
    assert max_err < 5e-2, f"kernel mismatch vs reference: max_err={max_err}"

    print("KERNEL_OK")
</pallas_src>

<mosaic_0001>
module attributes {stable_mosaic.version = 11 : i64} {
  func.func @_sfe_kernel(%arg0: i32, %arg1: memref<1x16x580xf32, #tpu.memory_space<vmem>>, %arg2: memref<32x144xbf16, #tpu.memory_space<vmem>>, %arg3: memref<32x1xf32, #tpu.memory_space<vmem>>, %arg4: memref<5x32x288xbf16, #tpu.memory_space<vmem>>, %arg5: memref<5x32x1xf32, #tpu.memory_space<vmem>>, %arg6: memref<1x324xf32, #tpu.memory_space<vmem>>, %arg7: memref<1x32x324xf32, #tpu.memory_space<vmem>>, %arg8: memref<32x580xf32, #tpu.memory_space<vmem>>, %arg9: memref<32x580xf32, #tpu.memory_space<vmem>>, %arg10: memref<288x324xbf16, #tpu.memory_space<vmem>>) attributes {dimension_semantics = [#tpu.dimension_semantics<parallel>], iteration_bounds = array<i64: 2>, scalar_prefetch = 0 : i64, scratch_operands = 3 : i64, tpu.core_type = #tpu.core_type<tc>, window_params = [{transform_indices = @transform_0, window_bounds = array<i64: 1, 16, 580>}, {pipeline_mode = #tpu.pipeline_mode<synchronous>, transform_indices = @transform_1, window_bounds = array<i64: 32, 144>}, {pipeline_mode = #tpu.pipeline_mode<synchronous>, transform_indices = @transform_2, window_bounds = array<i64: 32, 1>}, {pipeline_mode = #tpu.pipeline_mode<synchronous>, transform_indices = @transform_3, window_bounds = array<i64: 5, 32, 288>}, {pipeline_mode = #tpu.pipeline_mode<synchronous>, transform_indices = @transform_4, window_bounds = array<i64: 5, 32, 1>}, {pipeline_mode = #tpu.pipeline_mode<synchronous>, transform_indices = @transform_5, window_bounds = array<i64: 1, 324>}, {transform_indices = @transform_6, window_bounds = array<i64: 1, 32, 324>}]} {
    %cst = arith.constant 0.000000e+00 : f32
    %0 = vector.broadcast %cst : f32 to vector<32x128xf32>
    %c0 = arith.constant 0 : index
    %c0_0 = arith.constant 0 : index
    %1 = vector.load %arg8[%c0, %c0_0] : memref<32x580xf32, #tpu.memory_space<vmem>>, vector<32x128xf32>
    tpu.vector_store %arg8[%c0, %c0_0], %0 {strides = array<i32>} : memref<32x580xf32, #tpu.memory_space<vmem>>, vector<32x128xf32>,
    %cst_1 = arith.constant 0.000000e+00 : f32
    %2 = vector.broadcast %cst_1 : f32 to vector<32x128xf32>
    %c0_2 = arith.constant 0 : index
    %c452 = arith.constant 452 : index
    %3 = vector.load %arg8[%c0_2, %c452] : memref<32x580xf32, #tpu.memory_space<vmem>>, vector<32x128xf32>
    tpu.vector_store %arg8[%c0_2, %c452], %2 {strides = array<i32>} : memref<32x580xf32, #tpu.memory_space<vmem>>, vector<32x128xf32>,
    %cst_3 = arith.constant 0.000000e+00 : f32
    %4 = vector.broadcast %cst_3 : f32 to vector<32x128xf32>
    %c0_4 = arith.constant 0 : index
    %c0_5 = arith.constant 0 : index
    %5 = vector.load %arg9[%c0_4, %c0_5] : memref<32x580xf32, #tpu.memory_space<vmem>>, vector<32x128xf32>
    tpu.vector_store %arg9[%c0_4, %c0_5], %4 {strides = array<i32>} : memref<32x580xf32, #tpu.memory_space<vmem>>, vector<32x128xf32>,
    %cst_6 = arith.constant 0.000000e+00 : f32
    %6 = vector.broadcast %cst_6 : f32 to vector<32x128xf32>
    %c0_7 = arith.constant 0 : index
    %c452_8 = arith.constant 452 : index
    %7 = vector.load %arg9[%c0_7, %c452_8] : memref<32x580xf32, #tpu.memory_space<vmem>>, vector<32x128xf32>
    tpu.vector_store %arg9[%c0_7, %c452_8], %6 {strides = array<i32>} : memref<32x580xf32, #tpu.memory_space<vmem>>, vector<32x128xf32>,
    %c0_9 = arith.constant 0 : index
    %c0_10 = arith.constant 0 : index
    %8 = vector.load %arg6[%c0_9, %c0_10] : memref<1x324xf32, #tpu.memory_space<vmem>>, vector<1x324xf32>
    %c0_11 = arith.constant 0 : index
    %c0_12 = arith.constant 0 : index
    %c0_13 = arith.constant 0 : index
    %9 = vector.load %arg1[%c0_11, %c0_12, %c0_13] : memref<1x16x580xf32, #tpu.memory_space<vmem>>, vector<1x16x580xf32>
    %10 = vector.shape_cast %9 : vector<1x16x580xf32> to vector<16x580xf32>
    %11 = vector.extract_strided_slice %10 {offsets = [0, 109], sizes = [16, 324], strides = [1, 1]} : vector<16x580xf32> to vector<16x324xf32>
    %12 = arith.truncf %11 : vector<16x324xf32> to vector<16x324xbf16>
    %c0_14 = arith.constant 0 : index
    %c0_15 = arith.constant 0 : index
    %13 = vector.load %arg10[%c0_14, %c0_15] : memref<288x324xbf16, #tpu.memory_space<vmem>>, vector<16x324xbf16>
    tpu.vector_store %arg10[%c0_14, %c0_15], %12 {strides = array<i32>} : memref<288x324xbf16, #tpu.memory_space<vmem>>, vector<16x324xbf16>,
    %14 = vector.extract_strided_slice %10 {offsets = [0, 110], sizes = [16, 324], strides = [1, 1]} : vector<16x580xf32> to vector<16x324xf32>
    %15 = arith.truncf %14 : vector<16x324xf32> to vector<16x324xbf16>
    %c16 = arith.constant 16 : index
    %c0_16 = arith.constant 0 : index
    %16 = vector.load %arg10[%c16, %c0_16] : memref<288x324xbf16, #tpu.memory_space<vmem>>, vector<16x324xbf16>
    tpu.vector_store %arg10[%c16, %c0_16], %15 {strides = array<i32>} : memref<288x324xbf16, #tpu.memory_space<vmem>>, vector<16x324xbf16>,
    %17 = vector.extract_strided_slice %10 {offsets = [0, 111], sizes = [16, 324], strides = [1, 1]} : vector<16x580xf32> to vector<16x324xf32>
    %18 = arith.truncf %17 : vector<16x324xf32> to vector<16x324xbf16>
    %c32 = arith.constant 32 : index
    %c0_17 = arith.constant 0 : index
    %19 = vector.load %arg10[%c32, %c0_17] : memref<288x324xbf16, #tpu.memory_space<vmem>>, vector<16x324xbf16>
    tpu.vector_store %arg10[%c32, %c0_17], %18 {strides = array<i32>} : memref<288x324xbf16, #tpu.memory_space<vmem>>, vector<16x324xbf16>,
    %20 = vector.extract_strided_slice %10 {offsets = [0, 127], sizes = [16, 324], strides = [1, 1]} : vector<16x580xf32> to vector<16x324xf32>
    %21 = arith.truncf %20 : vector<16x324xf32> to vector<16x324xbf16>
    %c48 = arith.constant 48 : index
    %c0_18 = arith.constant 0 : index
    %22 = vector.load %arg10[%c48, %c0_18] : memref<288x324xbf16, #tpu.memory_space<vmem>>, vector<16x324xbf16>
    tpu.vector_store %arg10[%c48, %c0_18], %21 {strides = array<i32>} : memref<288x324xbf16, #tpu.memory_space<vmem>>, vector<16x324xbf16>,
    %23 = vector.extract_strided_slice %10 {offsets = [0, 128], sizes = [16, 324], strides = [1, 1]} : vector<16x580xf32> to vector<16x324xf32>
    %24 = arith.truncf %23 : vector<16x324xf32> to vector<16x324xbf16>
    %c64 = arith.constant 64 : index
    %c0_19 = arith.constant 0 : index
    %25 = vector.load %arg10[%c64, %c0_19] : memref<288x324xbf16, #tpu.memory_space<vmem>>, vector<16x324xbf16>
    tpu.vector_store %arg10[%c64, %c0_19], %24 {strides = array<i32>} : memref<288x324xbf16, #tpu.memory_space<vmem>>, vector<16x324xbf16>,
    %26 = vector.extract_strided_slice %10 {offsets = [0, 129], sizes = [16, 324], strides = [1, 1]} : vector<16x580xf32> to vector<16x324xf32>
    %27 = arith.truncf %26 : vector<16x324xf32> to vector<16x324xbf16>
    %c80 = arith.constant 80 : index
    %c0_20 = arith.constant 0 : index
    %28 = vector.load %arg10[%c80, %c0_20] : memref<288x324xbf16, #tpu.memory_space<vmem>>, vector<16x324xbf16>
    tpu.vector_store %arg10[%c80, %c0_20], %27 {strides = array<i32>} : memref<288x324xbf16, #tpu.memory_space<vmem>>, vector<16x324xbf16>,
    %29 = vector.extract_strided_slice %10 {offsets = [0, 145], sizes = [16, 324], strides = [1, 1]} : vector<16x580xf32> to vector<16x324xf32>
    %30 = arith.truncf %29 : vector<16x324xf32> to vector<16x324xbf16>
    %c96 = arith.constant 96 : index
    %c0_21 = arith.constant 0 : index
    %31 = vector.load %arg10[%c96, %c0_21] : memref<288x324xbf16, #tpu.memory_space<vmem>>, vector<16x324xbf16>
    tpu.vector_store %arg10[%c96, %c0_21], %30 {strides = array<i32>} : memref<288x324xbf16, #tpu.memory_space<vmem>>, vector<16x324xbf16>,
    %32 = vector.extract_strided_slice %10 {offsets = [0, 146], sizes = [16, 324], strides = [1, 1]} : vector<16x580xf32> to vector<16x324xf32>
    %33 = arith.truncf %32 : vector<16x324xf32> to vector<16x324xbf16>
    %c112 = arith.constant 112 : index
    %c0_22 = arith.constant 0 : index
    %34 = vector.load %arg10[%c112, %c0_22] : memref<288x324xbf16, #tpu.memory_space<vmem>>, vector<16x324xbf16>
    tpu.vector_store %arg10[%c112, %c0_22], %33 {strides = array<i32>} : memref<288x324xbf16, #tpu.memory_space<vmem>>, vector<16x324xbf16>,
    %35 = vector.extract_strided_slice %10 {offsets = [0, 147], sizes = [16, 324], strides = [1, 1]} : vector<16x580xf32> to vector<16x324xf32>
    %36 = arith.truncf %35 : vector<16x324xf32> to vector<16x324xbf16>
    %c128 = arith.constant 128 : index
    %c0_23 = arith.constant 0 : index
    %37 = vector.load %arg10[%c128, %c0_23] : memref<288x324xbf16, #tpu.memory_space<vmem>>, vector<16x324xbf16>
    tpu.vector_store %arg10[%c128, %c0_23], %36 {strides = array<i32>} : memref<288x324xbf16, #tpu.memory_space<vmem>>, vector<16x324xbf16>,
    %c0_24 = arith.constant 0 : index
    %c0_25 = arith.constant 0 : index
    %38 = vector.load %arg2[%c0_24, %c0_25] : memref<32x144xbf16, #tpu.memory_space<vmem>>, vector<32x144xbf16>
    %c0_26 = arith.constant 0 : index
    %c0_27 = arith.constant 0 : index
    %39 = vector.load %arg10[%c0_26, %c0_27] : memref<288x324xbf16, #tpu.memory_space<vmem>>, vector<144x324xbf16>
    %cst_28 = arith.constant dense<0.000000e+00> : vector<32x324xf32>
    %40 = tpu.matmul %38, %39, %cst_28 {dimension_numbers = #tpu.dot_dimension_numbers<[1], [0], [0], [1], [0, 0, 1, 1], [], []>} : vector<32x144xbf16>, vector<144x324xbf16>, vector<32x324xf32> -> vector<32x324xf32>
    %c0_29 = arith.constant 0 : index
    %c0_30 = arith.constant 0 : index
    %41 = vector.load %arg3[%c0_29, %c0_30] : memref<32x1xf32, #tpu.memory_space<vmem>>, vector<32x1xf32>
    %42 = vector.broadcast %41 : vector<32x1xf32> to vector<32x324xf32>
    %43 = arith.addf %40, %42 : vector<32x324xf32>
    %cst_31 = arith.constant 0.000000e+00 : f32
    %44 = vector.broadcast %cst_31 : f32 to vector<32x324xf32>
    %45 = arith.maximumf %43, %44 : vector<32x324xf32>
    %46 = vector.broadcast %8 : vector<1x324xf32> to vector<32x324xf32>
    %47 = arith.mulf %46, %45 : vector<32x324xf32>
    %c0_32 = arith.constant 0 : index
    %c0_33 = arith.constant 0 : index
    %c0_34 = arith.constant 0 : index
    %48 = vector.load %arg7[%c0_32, %c0_33, %c0_34] : memref<1x32x324xf32, #tpu.memory_space<vmem>>, vector<1x32x324xf32>
    %49 = vector.shape_cast %48 : vector<1x32x324xf32> to vector<32x324xf32>
    %50 = vector.shape_cast %47 : vector<32x324xf32> to vector<1x32x324xf32>
    tpu.vector_store %arg7[%c0_32, %c0_33, %c0_34], %50 {strides = array<i32>} : memref<1x32x324xf32, #tpu.memory_space<vmem>>, vector<1x32x324xf32>,
    %c0_35 = arith.constant 0 : index
    %c128_36 = arith.constant 128 : index
    %51 = vector.load %arg8[%c0_35, %c128_36] : memref<32x580xf32, #tpu.memory_space<vmem>>, vector<32x324xf32>
    tpu.vector_store %arg8[%c0_35, %c128_36], %47 {strides = array<i32>} : memref<32x580xf32, #tpu.memory_space<vmem>>, vector<32x324xf32>,
    %c0_i32 = arith.constant 0 : i32
    %c2_i32 = arith.constant 2 : i32
    %52 = arith.addi %c0_i32, %c2_i32 : i32
    %c1_i32 = arith.constant 1 : i32
    scf.for %arg11 = %c0_i32 to %52 step %c1_i32  : i32 {
      %c1_i32_76 = arith.constant 1 : i32
      %94 = arith.muli %arg11, %c1_i32_76 : i32
      %c0_i32_77 = arith.constant 0 : i32
      %95 = arith.addi %c0_i32_77, %94 : i32
      %c2_i32_78 = arith.constant 2 : i32
      %96 = arith.muli %c2_i32_78, %95 : i32
      %97 = arith.index_cast %96 : i32 to index
      %c0_79 = arith.constant 0 : index
      %c0_80 = arith.constant 0 : index
      %98 = vector.load %arg4[%97, %c0_79, %c0_80] : memref<5x32x288xbf16, #tpu.memory_space<vmem>>, vector<1x32x288xbf16>
      %99 = vector.shape_cast %98 : vector<1x32x288xbf16> to vector<32x288xbf16>
      %c2_i32_81 = arith.constant 2 : i32
      %100 = arith.muli %c2_i32_81, %95 : i32
      %101 = arith.index_cast %100 : i32 to index
      %c0_82 = arith.constant 0 : index
      %c0_83 = arith.constant 0 : index
      %102 = vector.load %arg5[%101, %c0_82, %c0_83] : memref<5x32x1xf32, #tpu.memory_space<vmem>>, vector<1x32x1xf32>
      %103 = vector.shape_cast %102 : vector<1x32x1xf32> to vector<32x1xf32>
      %c2_i32_84 = arith.constant 2 : i32
      %104 = arith.muli %c2_i32_84, %95 : i32
      %c1_i32_85 = arith.constant 1 : i32
      %105 = arith.addi %104, %c1_i32_85 : i32
      %106 = arith.index_cast %105 : i32 to index
      %c0_86 = arith.constant 0 : index
      %c0_87 = arith.constant 0 : index
      %107 = vector.load %arg4[%106, %c0_86, %c0_87] : memref<5x32x288xbf16, #tpu.memory_space<vmem>>, vector<1x32x288xbf16>
      %108 = vector.shape_cast %107 : vector<1x32x288xbf16> to vector<32x288xbf16>
      %c2_i32_88 = arith.constant 2 : i32
      %109 = arith.muli %c2_i32_88, %95 : i32
      %c1_i32_89 = arith.constant 1 : i32
      %110 = arith.addi %109, %c1_i32_89 : i32
      %111 = arith.index_cast %110 : i32 to index
      %c0_90 = arith.constant 0 : index
      %c0_91 = arith.constant 0 : index
      %112 = vector.load %arg5[%111, %c0_90, %c0_91] : memref<5x32x1xf32, #tpu.memory_space<vmem>>, vector<1x32x1xf32>
      %113 = vector.shape_cast %112 : vector<1x32x1xf32> to vector<32x1xf32>
      %c0_92 = arith.constant 0 : index
      %c109_93 = arith.constant 109 : index
      %114 = vector.load %arg8[%c0_92, %c109_93] : memref<32x580xf32, #tpu.memory_space<vmem>>, vector<32x324xf32>
      %115 = arith.truncf %114 : vector<32x324xf32> to vector<32x324xbf16>
      %c0_94 = arith.constant 0 : index
      %c0_95 = arith.constant 0 : index
      %116 = vector.load %arg10[%c0_94, %c0_95] : memref<288x324xbf16, #tpu.memory_space<vmem>>, vector<32x324xbf16>
      tpu.vector_store %arg10[%c0_94, %c0_95], %115 {strides = array<i32>} : memref<288x324xbf16, #tpu.memory_space<vmem>>, vector<32x324xbf16>,
      %c0_96 = arith.constant 0 : index
      %c110_97 = arith.constant 110 : index
      %117 = vector.load %arg8[%c0_96, %c110_97] : memref<32x580xf32, #tpu.memory_space<vmem>>, vector<32x324xf32>
      %118 = arith.truncf %117 : vector<32x324xf32> to vector<32x324xbf16>
      %c32_98 = arith.constant 32 : index
      %c0_99 = arith.constant 0 : index
      %119 = vector.load %arg10[%c32_98, %c0_99] : memref<288x324xbf16, #tpu.memory_space<vmem>>, vector<32x324xbf16>
      tpu.vector_store %arg10[%c32_98, %c0_99], %118 {strides = array<i32>} : memref<288x324xbf16, #tpu.memory_space<vmem>>, vector<32x324xbf16>,
      %c0_100 = arith.constant 0 : index
      %c111_101 = arith.constant 111 : index
      %120 = vector.load %arg8[%c0_100, %c111_101] : memref<32x580xf32, #tpu.memory_space<vmem>>, vector<32x324xf32>
      %121 = arith.truncf %120 : vector<32x324xf32> to vector<32x324xbf16>
      %c64_102 = arith.constant 64 : index
      %c0_103 = arith.constant 0 : index
      %122 = vector.load %arg10[%c64_102, %c0_103] : memref<288x324xbf16, #tpu.memory_space<vmem>>, vector<32x324xbf16>
      tpu.vector_store %arg10[%c64_102, %c0_103], %121 {strides = array<i32>} : memref<288x324xbf16, #tpu.memory_space<vmem>>, vector<32x324xbf16>,
      %c0_104 = arith.constant 0 : index
      %c127_105 = arith.constant 127 : index
      %123 = vector.load %arg8[%c0_104, %c127_105] : memref<32x580xf32, #tpu.memory_space<vmem>>, vector<32x324xf32>
      %124 = arith.truncf %123 : vector<32x324xf32> to vector<32x324xbf16>
      %c96_106 = arith.constant 96 : index
      %c0_107 = arith.constant 0 : index
      %125 = vector.load %arg10[%c96_106, %c0_107] : memref<288x324xbf16, #tpu.memory_space<vmem>>, vector<32x324xbf16>
      tpu.vector_store %arg10[%c96_106, %c0_107], %124 {strides = array<i32>} : memref<288x324xbf16, #tpu.memory_space<vmem>>, vector<32x324xbf16>,
      %c0_108 = arith.constant 0 : index
      %c128_109 = arith.constant 128 : index
      %126 = vector.load %arg8[%c0_108, %c128_109] : memref<32x580xf32, #tpu.memory_space<vmem>>, vector<32x324xf32>
      %127 = arith.truncf %126 : vector<32x324xf32> to vector<32x324xbf16>
      %c128_110 = arith.constant 128 : index
      %c0_111 = arith.constant 0 : index
      %128 = vector.load %arg10[%c128_110, %c0_111] : memref<288x324xbf16, #tpu.memory_space<vmem>>, vector<32x324xbf16>
      tpu.vector_store %arg10[%c128_110, %c0_111], %127 {strides = array<i32>} : memref<288x324xbf16, #tpu.memory_space<vmem>>, vector<32x324xbf16>,
      %c0_112 = arith.constant 0 : index
      %c129_113 = arith.constant 129 : index
      %129 = vector.load %arg8[%c0_112, %c129_113] : memref<32x580xf32, #tpu.memory_space<vmem>>, vector<32x324xf32>
      %130 = arith.truncf %129 : vector<32x324xf32> to vector<32x324xbf16>
      %c160_114 = arith.constant 160 : index
      %c0_115 = arith.constant 0 : index
      %131 = vector.load %arg10[%c160_114, %c0_115] : memref<288x324xbf16, #tpu.memory_space<vmem>>, vector<32x324xbf16>
      tpu.vector_store %arg10[%c160_114, %c0_115], %130 {strides = array<i32>} : memref<288x324xbf16, #tpu.memory_space<vmem>>, vector<32x324xbf16>,
      %c0_116 = arith.constant 0 : index
      %c145_117 = arith.constant 145 : index
      %132 = vector.load %arg8[%c0_116, %c145_117] : memref<32x580xf32, #tpu.memory_space<vmem>>, vector<32x324xf32>
      %133 = arith.truncf %132 : vector<32x324xf32> to vector<32x324xbf16>
      %c192_118 = arith.constant 192 : index
      %c0_119 = arith.constant 0 : index
      %134 = vector.load %arg10[%c192_118, %c0_119] : memref<288x324xbf16, #tpu.memory_space<vmem>>, vector<32x324xbf16>
      tpu.vector_store %arg10[%c192_118, %c0_119], %133 {strides = array<i32>} : memref<288x324xbf16, #tpu.memory_space<vmem>>, vector<32x324xbf16>,
      %c0_120 = arith.constant 0 : index
      %c146_121 = arith.constant 146 : index
      %135 = vector.load %arg8[%c0_120, %c146_121] : memref<32x580xf32, #tpu.memory_space<vmem>>, vector<32x324xf32>
      %136 = arith.truncf %135 : vector<32x324xf32> to vector<32x324xbf16>
      %c224_122 = arith.constant 224 : index
      %c0_123 = arith.constant 0 : index
      %137 = vector.load %arg10[%c224_122, %c0_123] : memref<288x324xbf16, #tpu.memory_space<vmem>>, vector<32x324xbf16>
      tpu.vector_store %arg10[%c224_122, %c0_123], %136 {strides = array<i32>} : memref<288x324xbf16, #tpu.memory_space<vmem>>, vector<32x324xbf16>,
      %c0_124 = arith.constant 0 : index
      %c147_125 = arith.constant 147 : index
      %138 = vector.load %arg8[%c0_124, %c147_125] : memref<32x580xf32, #tpu.memory_space<vmem>>, vector<32x324xf32>
      %139 = arith.truncf %138 : vector<32x324xf32> to vector<32x324xbf16>
      %c256_126 = arith.constant 256 : index
      %c0_127 = arith.constant 0 : index
      %140 = vector.load %arg10[%c256_126, %c0_127] : memref<288x324xbf16, #tpu.memory_space<vmem>>, vector<32x324xbf16>
      tpu.vector_store %arg10[%c256_126, %c0_127], %139 {strides = array<i32>} : memref<288x324xbf16, #tpu.memory_space<vmem>>, vector<32x324xbf16>,
      %c0_128 = arith.constant 0 : index
      %c0_129 = arith.constant 0 : index
      %141 = vector.load %arg10[%c0_128, %c0_129] : memref<288x324xbf16, #tpu.memory_space<vmem>>, vector<288x324xbf16>
      %cst_130 = arith.constant dense<0.000000e+00> : vector<32x324xf32>
      %142 = tpu.matmul %99, %141, %cst_130 {dimension_numbers = #tpu.dot_dimension_numbers<[1], [0], [0], [1], [0, 0, 1, 1], [], []>} : vector<32x288xbf16>, vector<288x324xbf16>, vector<32x324xf32> -> vector<32x324xf32>
      %143 = vector.broadcast %103 : vector<32x1xf32> to vector<32x324xf32>
      %144 = arith.addf %142, %143 : vector<32x324xf32>
      %cst_131 = arith.constant 0.000000e+00 : f32
      %145 = vector.broadcast %cst_131 : f32 to vector<32x324xf32>
      %146 = arith.maximumf %144, %145 : vector<32x324xf32>
      %147 = vector.broadcast %8 : vector<1x324xf32> to vector<32x324xf32>
      %148 = arith.mulf %147, %146 : vector<32x324xf32>
      %c0_132 = arith.constant 0 : index
      %c128_133 = arith.constant 128 : index
      %149 = vector.load %arg9[%c0_132, %c128_133] : memref<32x580xf32, #tpu.memory_space<vmem>>, vector<32x324xf32>
      tpu.vector_store %arg9[%c0_132, %c128_133], %148 {strides = array<i32>} : memref<32x580xf32, #tpu.memory_space<vmem>>, vector<32x324xf32>,
      %c0_134 = arith.constant 0 : index
      %c109_135 = arith.constant 109 : index
      %150 = vector.load %arg9[%c0_134, %c109_135] : memref<32x580xf32, #tpu.memory_space<vmem>>, vector<32x324xf32>
      %151 = arith.truncf %150 : vector<32x324xf32> to vector<32x324xbf16>
      %c0_136 = arith.constant 0 : index
      %c0_137 = arith.constant 0 : index
      %152 = vector.load %arg10[%c0_136, %c0_137] : memref<288x324xbf16, #tpu.memory_space<vmem>>, vector<32x324xbf16>
      tpu.vector_store %arg10[%c0_136, %c0_137], %151 {strides = array<i32>} : memref<288x324xbf16, #tpu.memory_space<vmem>>, vector<32x324xbf16>,
      %c0_138 = arith.constant 0 : index
      %c110_139 = arith.constant 110 : index
      %153 = vector.load %arg9[%c0_138, %c110_139] : memref<32x580xf32, #tpu.memory_space<vmem>>, vector<32x324xf32>
      %154 = arith.truncf %153 : vector<32x324xf32> to vector<32x324xbf16>
      %c32_140 = arith.constant 32 : index
      %c0_141 = arith.constant 0 : index
      %155 = vector.load %arg10[%c32_140, %c0_141] : memref<288x324xbf16, #tpu.memory_space<vmem>>, vector<32x324xbf16>
      tpu.vector_store %arg10[%c32_140, %c0_141], %154 {strides = array<i32>} : memref<288x324xbf16, #tpu.memory_space<vmem>>, vector<32x324xbf16>,
      %c0_142 = arith.constant 0 : index
      %c111_143 = arith.constant 111 : index
      %156 = vector.load %arg9[%c0_142, %c111_143] : memref<32x580xf32, #tpu.memory_space<vmem>>, vector<32x324xf32>
      %157 = arith.truncf %156 : vector<32x324xf32> to vector<32x324xbf16>
      %c64_144 = arith.constant 64 : index
      %c0_145 = arith.constant 0 : index
      %158 = vector.load %arg10[%c64_144, %c0_145] : memref<288x324xbf16, #tpu.memory_space<vmem>>, vector<32x324xbf16>
      tpu.vector_store %arg10[%c64_144, %c0_145], %157 {strides = array<i32>} : memref<288x324xbf16, #tpu.memory_space<vmem>>, vector<32x324xbf16>,
      %c0_146 = arith.constant 0 : index
      %c127_147 = arith.constant 127 : index
      %159 = vector.load %arg9[%c0_146, %c127_147] : memref<32x580xf32, #tpu.memory_space<vmem>>, vector<32x324xf32>
      %160 = arith.truncf %159 : vector<32x324xf32> to vector<32x324xbf16>
      %c96_148 = arith.constant 96 : index
      %c0_149 = arith.constant 0 : index
      %161 = vector.load %arg10[%c96_148, %c0_149] : memref<288x324xbf16, #tpu.memory_space<vmem>>, vector<32x324xbf16>
      tpu.vector_store %arg10[%c96_148, %c0_149], %160 {strides = array<i32>} : memref<288x324xbf16, #tpu.memory_space<vmem>>, vector<32x324xbf16>,
      %c0_150 = arith.constant 0 : index
      %c128_151 = arith.constant 128 : index
      %162 = vector.load %arg9[%c0_150, %c128_151] : memref<32x580xf32, #tpu.memory_space<vmem>>, vector<32x324xf32>
      %163 = arith.truncf %162 : vector<32x324xf32> to vector<32x324xbf16>
      %c128_152 = arith.constant 128 : index
      %c0_153 = arith.constant 0 : index
      %164 = vector.load %arg10[%c128_152, %c0_153] : memref<288x324xbf16, #tpu.memory_space<vmem>>, vector<32x324xbf16>
      tpu.vector_store %arg10[%c128_152, %c0_153], %163 {strides = array<i32>} : memref<288x324xbf16, #tpu.memory_space<vmem>>, vector<32x324xbf16>,
      %c0_154 = arith.constant 0 : index
      %c129_155 = arith.constant 129 : index
      %165 = vector.load %arg9[%c0_154, %c129_155] : memref<32x580xf32, #tpu.memory_space<vmem>>, vector<32x324xf32>
      %166 = arith.truncf %165 : vector<32x324xf32> to vector<32x324xbf16>
      %c160_156 = arith.constant 160 : index
      %c0_157 = arith.constant 0 : index
      %167 = vector.load %arg10[%c160_156, %c0_157] : memref<288x324xbf16, #tpu.memory_space<vmem>>, vector<32x324xbf16>
      tpu.vector_store %arg10[%c160_156, %c0_157], %166 {strides = array<i32>} : memref<288x324xbf16, #tpu.memory_space<vmem>>, vector<32x324xbf16>,
      %c0_158 = arith.constant 0 : index
      %c145_159 = arith.constant 145 : index
      %168 = vector.load %arg9[%c0_158, %c145_159] : memref<32x580xf32, #tpu.memory_space<vmem>>, vector<32x324xf32>
      %169 = arith.truncf %168 : vector<32x324xf32> to vector<32x324xbf16>
      %c192_160 = arith.constant 192 : index
      %c0_161 = arith.constant 0 : index
      %170 = vector.load %arg10[%c192_160, %c0_161] : memref<288x324xbf16, #tpu.memory_space<vmem>>, vector<32x324xbf16>
      tpu.vector_store %arg10[%c192_160, %c0_161], %169 {strides = array<i32>} : memref<288x324xbf16, #tpu.memory_space<vmem>>, vector<32x324xbf16>,
      %c0_162 = arith.constant 0 : index
      %c146_163 = arith.constant 146 : index
      %171 = vector.load %arg9[%c0_162, %c146_163] : memref<32x580xf32, #tpu.memory_space<vmem>>, vector<32x324xf32>
      %172 = arith.truncf %171 : vector<32x324xf32> to vector<32x324xbf16>
      %c224_164 = arith.constant 224 : index
      %c0_165 = arith.constant 0 : index
      %173 = vector.load %arg10[%c224_164, %c0_165] : memref<288x324xbf16, #tpu.memory_space<vmem>>, vector<32x324xbf16>
      tpu.vector_store %arg10[%c224_164, %c0_165], %172 {strides = array<i32>} : memref<288x324xbf16, #tpu.memory_space<vmem>>, vector<32x324xbf16>,
      %c0_166 = arith.constant 0 : index
      %c147_167 = arith.constant 147 : index
      %174 = vector.load %arg9[%c0_166, %c147_167] : memref<32x580xf32, #tpu.memory_space<vmem>>, vector<32x324xf32>
      %175 = arith.truncf %174 : vector<32x324xf32> to vector<32x324xbf16>
      %c256_168 = arith.constant 256 : index
      %c0_169 = arith.constant 0 : index
      %176 = vector.load %arg10[%c256_168, %c0_169] : memref<288x324xbf16, #tpu.memory_space<vmem>>, vector<32x324xbf16>
      tpu.vector_store %arg10[%c256_168, %c0_169], %175 {strides = array<i32>} : memref<288x324xbf16, #tpu.memory_space<vmem>>, vector<32x324xbf16>,
      %c0_170 = arith.constant 0 : index
      %c0_171 = arith.constant 0 : index
      %177 = vector.load %arg10[%c0_170, %c0_171] : memref<288x324xbf16, #tpu.memory_space<vmem>>, vector<288x324xbf16>
      %cst_172 = arith.constant dense<0.000000e+00> : vector<32x324xf32>
      %178 = tpu.matmul %108, %177, %cst_172 {dimension_numbers = #tpu.dot_dimension_numbers<[1], [0], [0], [1], [0, 0, 1, 1], [], []>} : vector<32x288xbf16>, vector<288x324xbf16>, vector<32x324xf32> -> vector<32x324xf32>
      %179 = vector.broadcast %113 : vector<32x1xf32> to vector<32x324xf32>
      %180 = arith.addf %178, %179 : vector<32x324xf32>
      %c0_173 = arith.constant 0 : index
      %c128_174 = arith.constant 128 : index
      %181 = vector.load %arg8[%c0_173, %c128_174] : memref<32x580xf32, #tpu.memory_space<vmem>>, vector<32x324xf32>
      %182 = arith.addf %181, %180 : vector<32x324xf32>
      %183 = vector.broadcast %8 : vector<1x324xf32> to vector<32x324xf32>
      %184 = arith.mulf %183, %182 : vector<32x324xf32>
      %c0_175 = arith.constant 0 : index
      %c128_176 = arith.constant 128 : index
      %185 = vector.load %arg8[%c0_175, %c128_176] : memref<32x580xf32, #tpu.memory_space<vmem>>, vector<32x324xf32>
      tpu.vector_store %arg8[%c0_175, %c128_176], %184 {strides = array<i32>} : memref<32x580xf32, #tpu.memory_space<vmem>>, vector<32x324xf32>,
    }
    %c2_i32_37 = arith.constant 2 : i32
    %c4 = arith.constant 4 : index
    %c0_38 = arith.constant 0 : index
    %c0_39 = arith.constant 0 : index
    %53 = vector.load %arg4[%c4, %c0_38, %c0_39] : memref<5x32x288xbf16, #tpu.memory_space<vmem>>, vector<1x32x288xbf16>
    %54 = vector.shape_cast %53 : vector<1x32x288xbf16> to vector<32x288xbf16>
    %c4_40 = arith.constant 4 : index
    %c0_41 = arith.constant 0 : index
    %c0_42 = arith.constant 0 : index
    %55 = vector.load %arg5[%c4_40, %c0_41, %c0_42] : memref<5x32x1xf32, #tpu.memory_space<vmem>>, vector<1x32x1xf32>
    %56 = vector.shape_cast %55 : vector<1x32x1xf32> to vector<32x1xf32>
    %c0_43 = arith.constant 0 : index
    %c0_44 = arith.constant 0 : index
    %c0_45 = arith.constant 0 : index
    %57 = vector.load %arg7[%c0_43, %c0_44, %c0_45] : memref<1x32x324xf32, #tpu.memory_space<vmem>>, vector<1x32x324xf32>
    %58 = vector.shape_cast %57 : vector<1x32x324xf32> to vector<32x324xf32>
    %c0_46 = arith.constant 0 : index
    %c109 = arith.constant 109 : index
    %59 = vector.load %arg8[%c0_46, %c109] : memref<32x580xf32, #tpu.memory_space<vmem>>, vector<32x324xf32>
    %60 = arith.truncf %59 : vector<32x324xf32> to vector<32x324xbf16>
    %c0_47 = arith.constant 0 : index
    %c0_48 = arith.constant 0 : index
    %61 = vector.load %arg10[%c0_47, %c0_48] : memref<288x324xbf16, #tpu.memory_space<vmem>>, vector<32x324xbf16>
    tpu.vector_store %arg10[%c0_47, %c0_48], %60 {strides = array<i32>} : memref<288x324xbf16, #tpu.memory_space<vmem>>, vector<32x324xbf16>,
    %c0_49 = arith.constant 0 : index
    %c110 = arith.constant 110 : index
    %62 = vector.load %arg8[%c0_49, %c110] : memref<32x580xf32, #tpu.memory_space<vmem>>, vector<32x324xf32>
    %63 = arith.truncf %62 : vector<32x324xf32> to vector<32x324xbf16>
    %c32_50 = arith.constant 32 : index
    %c0_51 = arith.constant 0 : index
    %64 = vector.load %arg10[%c32_50, %c0_51] : memref<288x324xbf16, #tpu.memory_space<vmem>>, vector<32x324xbf16>
    tpu.vector_store %arg10[%c32_50, %c0_51], %63 {strides = array<i32>} : memref<288x324xbf16, #tpu.memory_space<vmem>>, vector<32x324xbf16>,
    %c0_52 = arith.constant 0 : index
    %c111 = arith.constant 111 : index
    %65 = vector.load %arg8[%c0_52, %c111] : memref<32x580xf32, #tpu.memory_space<vmem>>, vector<32x324xf32>
    %66 = arith.truncf %65 : vector<32x324xf32> to vector<32x324xbf16>
    %c64_53 = arith.constant 64 : index
    %c0_54 = arith.constant 0 : index
    %67 = vector.load %arg10[%c64_53, %c0_54] : memref<288x324xbf16, #tpu.memory_space<vmem>>, vector<32x324xbf16>
    tpu.vector_store %arg10[%c64_53, %c0_54], %66 {strides = array<i32>} : memref<288x324xbf16, #tpu.memory_space<vmem>>, vector<32x324xbf16>,
    %c0_55 = arith.constant 0 : index
    %c127 = arith.constant 127 : index
    %68 = vector.load %arg8[%c0_55, %c127] : memref<32x580xf32, #tpu.memory_space<vmem>>, vector<32x324xf32>
    %69 = arith.truncf %68 : vector<32x324xf32> to vector<32x324xbf16>
    %c96_56 = arith.constant 96 : index
    %c0_57 = arith.constant 0 : index
    %70 = vector.load %arg10[%c96_56, %c0_57] : memref<288x324xbf16, #tpu.memory_space<vmem>>, vector<32x324xbf16>
    tpu.vector_store %arg10[%c96_56, %c0_57], %69 {strides = array<i32>} : memref<288x324xbf16, #tpu.memory_space<vmem>>, vector<32x324xbf16>,
    %c0_58 = arith.constant 0 : index
    %c128_59 = arith.constant 128 : index
    %71 = vector.load %arg8[%c0_58, %c128_59] : memref<32x580xf32, #tpu.memory_space<vmem>>, vector<32x324xf32>
    %72 = arith.truncf %71 : vector<32x324xf32> to vector<32x324xbf16>
    %c128_60 = arith.constant 128 : index
    %c0_61 = arith.constant 0 : index
    %73 = vector.load %arg10[%c128_60, %c0_61] : memref<288x324xbf16, #tpu.memory_space<vmem>>, vector<32x324xbf16>
    tpu.vector_store %arg10[%c128_60, %c0_61], %72 {strides = array<i32>} : memref<288x324xbf16, #tpu.memory_space<vmem>>, vector<32x324xbf16>,
    %c0_62 = arith.constant 0 : index
    %c129 = arith.constant 129 : index
    %74 = vector.load %arg8[%c0_62, %c129] : memref<32x580xf32, #tpu.memory_space<vmem>>, vector<32x324xf32>
    %75 = arith.truncf %74 : vector<32x324xf32> to vector<32x324xbf16>
    %c160 = arith.constant 160 : index
    %c0_63 = arith.constant 0 : index
    %76 = vector.load %arg10[%c160, %c0_63] : memref<288x324xbf16, #tpu.memory_space<vmem>>, vector<32x324xbf16>
    tpu.vector_store %arg10[%c160, %c0_63], %75 {strides = array<i32>} : memref<288x324xbf16, #tpu.memory_space<vmem>>, vector<32x324xbf16>,
    %c0_64 = arith.constant 0 : index
    %c145 = arith.constant 145 : index
    %77 = vector.load %arg8[%c0_64, %c145] : memref<32x580xf32, #tpu.memory_space<vmem>>, vector<32x324xf32>
    %78 = arith.truncf %77 : vector<32x324xf32> to vector<32x324xbf16>
    %c192 = arith.constant 192 : index
    %c0_65 = arith.constant 0 : index
    %79 = vector.load %arg10[%c192, %c0_65] : memref<288x324xbf16, #tpu.memory_space<vmem>>, vector<32x324xbf16>
    tpu.vector_store %arg10[%c192, %c0_65], %78 {strides = array<i32>} : memref<288x324xbf16, #tpu.memory_space<vmem>>, vector<32x324xbf16>,
    %c0_66 = arith.constant 0 : index
    %c146 = arith.constant 146 : index
    %80 = vector.load %arg8[%c0_66, %c146] : memref<32x580xf32, #tpu.memory_space<vmem>>, vector<32x324xf32>
    %81 = arith.truncf %80 : vector<32x324xf32> to vector<32x324xbf16>
    %c224 = arith.constant 224 : index
    %c0_67 = arith.constant 0 : index
    %82 = vector.load %arg10[%c224, %c0_67] : memref<288x324xbf16, #tpu.memory_space<vmem>>, vector<32x324xbf16>
    tpu.vector_store %arg10[%c224, %c0_67], %81 {strides = array<i32>} : memref<288x324xbf16, #tpu.memory_space<vmem>>, vector<32x324xbf16>,
    %c0_68 = arith.constant 0 : index
    %c147 = arith.constant 147 : index
    %83 = vector.load %arg8[%c0_68, %c147] : memref<32x580xf32, #tpu.memory_space<vmem>>, vector<32x324xf32>
    %84 = arith.truncf %83 : vector<32x324xf32> to vector<32x324xbf16>
    %c256 = arith.constant 256 : index
    %c0_69 = arith.constant 0 : index
    %85 = vector.load %arg10[%c256, %c0_69] : memref<288x324xbf16, #tpu.memory_space<vmem>>, vector<32x324xbf16>
    tpu.vector_store %arg10[%c256, %c0_69], %84 {strides = array<i32>} : memref<288x324xbf16, #tpu.memory_space<vmem>>, vector<32x324xbf16>,
    %c0_70 = arith.constant 0 : index
    %c0_71 = arith.constant 0 : index
    %86 = vector.load %arg10[%c0_70, %c0_71] : memref<288x324xbf16, #tpu.memory_space<vmem>>, vector<288x324xbf16>
    %cst_72 = arith.constant dense<0.000000e+00> : vector<32x324xf32>
    %87 = tpu.matmul %54, %86, %cst_72 {dimension_numbers = #tpu.dot_dimension_numbers<[1], [0], [0], [1], [0, 0, 1, 1], [], []>} : vector<32x288xbf16>, vector<288x324xbf16>, vector<32x324xf32> -> vector<32x324xf32>
    %88 = vector.broadcast %56 : vector<32x1xf32> to vector<32x324xf32>
    %89 = arith.addf %87, %88 : vector<32x324xf32>
    %90 = arith.addf %58, %89 : vector<32x324xf32>
    %c0_73 = arith.constant 0 : index
    %c0_74 = arith.constant 0 : index
    %c0_75 = arith.constant 0 : index
    %91 = vector.load %arg7[%c0_73, %c0_74, %c0_75] : memref<1x32x324xf32, #tpu.memory_space<vmem>>, vector<1x32x324xf32>
    %92 = vector.shape_cast %91 : vector<1x32x324xf32> to vector<32x324xf32>
    %93 = vector.shape_cast %90 : vector<32x324xf32> to vector<1x32x324xf32>
    tpu.vector_store %arg7[%c0_73, %c0_74, %c0_75], %93 {strides = array<i32>} : memref<1x32x324xf32, #tpu.memory_space<vmem>>, vector<1x32x324xf32>,
    return
  }
  func.func @transform_0(%arg0: i32) -> (i32, i32, i32) {
    %c0_i32 = arith.constant 0 : i32
    %c0_i32_0 = arith.constant 0 : i32
    %c0_i32_1 = arith.constant 0 : i32
    return %arg0, %c0_i32, %c0_i32_0 : i32, i32, i32
  }
  func.func @transform_1(%arg0: i32) -> (i32, i32) {
    %c0_i32 = arith.constant 0 : i32
    %c0_i32_0 = arith.constant 0 : i32
    %c0_i32_1 = arith.constant 0 : i32
    return %c0_i32, %c0_i32_0 : i32, i32
  }
  func.func @transform_2(%arg0: i32) -> (i32, i32) {
    %c0_i32 = arith.constant 0 : i32
    %c0_i32_0 = arith.constant 0 : i32
    %c0_i32_1 = arith.constant 0 : i32
    return %c0_i32, %c0_i32_0 : i32, i32
  }
  func.func @transform_3(%arg0: i32) -> (i32, i32, i32) {
    %c0_i32 = arith.constant 0 : i32
    %c0_i32_0 = arith.constant 0 : i32
    %c0_i32_1 = arith.constant 0 : i32
    %c0_i32_2 = arith.constant 0 : i32
    return %c0_i32, %c0_i32_0, %c0_i32_1 : i32, i32, i32
  }
  func.func @transform_4(%arg0: i32) -> (i32, i32, i32) {
    %c0_i32 = arith.constant 0 : i32
    %c0_i32_0 = arith.constant 0 : i32
    %c0_i32_1 = arith.constant 0 : i32
    %c0_i32_2 = arith.constant 0 : i32
    return %c0_i32, %c0_i32_0, %c0_i32_1 : i32, i32, i32
  }
  func.func @transform_5(%arg0: i32) -> (i32, i32) {
    %c0_i32 = arith.constant 0 : i32
    %c0_i32_0 = arith.constant 0 : i32
    %c0_i32_1 = arith.constant 0 : i32
    return %c0_i32, %c0_i32_0 : i32, i32
  }
  func.func @transform_6(%arg0: i32) -> (i32, i32, i32) {
    %c0_i32 = arith.constant 0 : i32
    %c0_i32_0 = arith.constant 0 : i32
    %c0_i32_1 = arith.constant 0 : i32
    return %arg0, %c0_i32, %c0_i32_0 : i32, i32, i32
  }
}

</mosaic_0001>

<llo_original>
// kernel: tpu_custom_call.1
$region0: #{tpu_custom_call.1}
  #allocation0 [shape = 'u32[]', space=smem, size = 0x4, offset = 0x4, fixed_abs, tag = 'smem constant byte address 0x4 - core index']
  #allocation1 [shape = 'u32[144,128]{1,0:T(1,128)}', space=vmem, size = 0x12000, scoped, tag = 'internal scratch']
  #allocation2 [shape = 'f32[32,580]{1,0:T(8,128)}', space=vmem, size = 0x14000, scoped, tag = 'scratch operand']
  #allocation3 [shape = 'f32[32,580]{1,0:T(8,128)}', space=vmem, size = 0x14000, scoped, tag = 'scratch operand']
  #allocation4 [shape = 'bf16[288,324]{1,0:T(16,128)(2,1)}', space=vmem, size = 0x36000, scoped, tag = 'scratch operand']
  %s0 = inlined_call_operand.vmem [shape: f32[2,16,580], index: 0, kind: input, shape index: {}]
  %s1 = inlined_call_operand.vmem [shape: bf16[32,144], index: 1, kind: input, shape index: {}]
  %s2 = inlined_call_operand.vmem [shape: f32[32,1], index: 2, kind: input, shape index: {}]
  %s3 = inlined_call_operand.hbm [shape: bf16[5,32,288], index: 3, kind: input, shape index: {}]
  %s4 = inlined_call_operand.vmem [shape: f32[5,32,1], index: 4, kind: input, shape index: {}]
  %s5 = inlined_call_operand.vmem [shape: f32[1,324], index: 5, kind: input, shape index: {}]
  %s6 = inlined_call_operand.hbm [shape: f32[2,32,324], index: 6, kind: output, shape index: {}]
  %s7 = sld [smem:[#allocation0]]
  $region68: #{tpu_custom_call.1} parent=0
    _
  %s9 = ssub.s32 1, %s7
  %s10 = scalar_select 0, %s9, %s7
  $region1: #{tpu_custom_call.1} parent=0
    #allocation5 [shape = 'u8[122880]{0}', space=vmem, size = 0x1e000, scoped, tag = 'input window, operand 3, single buffered']
    #allocation6 [shape = 's32[2]{0}', space=sflag, size = 0x8, scoped, tag = 'scoped memory for tpu_custom_call.1']
    #allocation7 [shape = 's32[2]{0}', space=sflag, size = 0x8, scoped, tag = 'scoped memory for tpu_custom_call.1']
    #allocation8 [shape = 'u8[98304]{0}', space=vmem, size = 0x18000, scoped, tag = 'output window, operand 0']
    %11 = vsyncpa [#allocation6], 0
    %12 = vsyncpa [#allocation7], 0
    %s13 = scalar_lea.sflag [#allocation7], 1
    %14 = vsyncpa %s13, 0
    loop: start=0, step=1, limit=4
    $region2: #{tpu_custom_call.1} parent=1 // loop_pre_header
      _
    $region3: #{tpu_custom_call.1} parent=1 // loop_header
      %s16 = sphi 0, %s20
      %p17 = scmp.ge.s32.totalorder %s16, 4
      %s26 = sphi 0, %s28
      %s29 = sphi 0, %s26
      %s30 = sphi 0, %s29
      %s46 = sphi 0, %s30
      %s50 = sphi 0, %s50
      %s52 = sphi 0, %s50
      %s53 = sphi 0, %s52
      %s67 = sphi 0, %s53
      %s71 = sphi 0, %s71
      %s73 = sphi 0, %s71
      %s74 = sphi 0, %s73
      %s88 = sphi 0, %s74
      %s92 = sphi 0, %s92
      %s94 = sphi 0, %s92
      %s95 = sphi 0, %s94
      %s109 = sphi 0, %s95
      %s113 = sphi 0, %s113
      %s115 = sphi 0, %s113
      %s116 = sphi 0, %s115
      %s130 = sphi 0, %s116
      %s134 = sphi 0, %s134
      %s136 = sphi 0, %s134
      %s137 = sphi 0, %s136
      %s151 = sphi 0, %s137
      %s157 = sphi 0, %s159
      %s160 = sphi 0, %s157
      %s161 = sphi 0, %s160
      %s177 = sphi 0, %s161
    $region4: #{tpu_custom_call.1} parent=1 // loop_header_branch
      %19 = sbr.rel (%p17) target = $region8
    $region5: #{tpu_custom_call.1} parent=1 // loop_body
      %s21 = ssub.s32 %s16, 1
      %s22 = ssub.s32 %s16, 2
      %s23 = sadd.s32 %s16, 1
      %s24 = ssub.s32 %s16, %s23
      %p25 = scmp.eq.s32.totalorder %s24, 0
      %s27 = sadd.s32 %s26, 1
      %s28 = scalar_select %p25, %s26, %s27
      %p31 = pneg %p25
      %p32 = scmp.eq.s32.totalorder %s16, 1
      %p33 = por %p31, %p32
      %p34 = scmp.ne.s32.totalorder %s26, %s29
      %p35 = scmp.eq.s32.totalorder %s16, 0
      %p36 = por %p34, %p35
      %p37 = scmp.ne.s32.totalorder %s26, %s29
      %p38 = scmp.eq.s32.totalorder %s21, 1
      %p39 = por %p37, %p38
      %p40 = scmp.ne.s32.totalorder %s29, %s30
      %p41 = scmp.eq.s32.totalorder %s21, 0
      %p42 = por %p40, %p41
      %p43 = scmp.ne.s32.totalorder %s29, %s30
      %p44 = scmp.eq.s32.totalorder %s22, 1
      %p45 = por %p43, %p44
      %p47 = scmp.ne.s32.totalorder %s30, %s46
      %p48 = scmp.eq.s32.totalorder %s22, 0
      %p49 = por %p47, %p48
      %s51 = sadd.s32 %s50, 1
      %p54 = scmp.eq.s32.totalorder %s16, 1
      %p55 = scmp.ne.s32.totalorder %s50, %s52
      %p56 = scmp.eq.s32.totalorder %s16, 0
      %p57 = por %p55, %p56
      %p58 = scmp.ne.s32.totalorder %s50, %s52
      %p59 = scmp.eq.s32.totalorder %s21, 1
      %p60 = por %p58, %p59
      %p61 = scmp.ne.s32.totalorder %s52, %s53
      %p62 = scmp.eq.s32.totalorder %s21, 0
      %p63 = por %p61, %p62
      %p64 = scmp.ne.s32.totalorder %s52, %s53
      %p65 = scmp.eq.s32.totalorder %s22, 1
      %p66 = por %p64, %p65
      %p68 = scmp.ne.s32.totalorder %s53, %s67
      %p69 = scmp.eq.s32.totalorder %s22, 0
      %p70 = por %p68, %p69
      %s72 = sadd.s32 %s71, 1
      %p75 = scmp.eq.s32.totalorder %s16, 1
      %p76 = scmp.ne.s32.totalorder %s71, %s73
      %p77 = scmp.eq.s32.totalorder %s16, 0
      %p78 = por %p76, %p77
      %p79 = scmp.ne.s32.totalorder %s71, %s73
      %p80 = scmp.eq.s32.totalorder %s21, 1
      %p81 = por %p79, %p80
      %p82 = scmp.ne.s32.totalorder %s73, %s74
      %p83 = scmp.eq.s32.totalorder %s21, 0
      %p84 = por %p82, %p83
      %p85 = scmp.ne.s32.totalorder %s73, %s74
      %p86 = scmp.eq.s32.totalorder %s22, 1
      %p87 = por %p85, %p86
      %p89 = scmp.ne.s32.totalorder %s74, %s88
      %p90 = scmp.eq.s32.totalorder %s22, 0
      %p91 = por %p89, %p90
      %s93 = sadd.s32 %s92, 1
      %p96 = scmp.eq.s32.totalorder %s16, 1
      %p97 = scmp.ne.s32.totalorder %s92, %s94
      %p98 = scmp.eq.s32.totalorder %s16, 0
      %p99 = por %p97, %p98
      %p100 = scmp.ne.s32.totalorder %s92, %s94
      %p101 = scmp.eq.s32.totalorder %s21, 1
      %p102 = por %p100, %p101
      %p103 = scmp.ne.s32.totalorder %s94, %s95
      %p104 = scmp.eq.s32.totalorder %s21, 0
      %p105 = por %p103, %p104
      %p106 = scmp.ne.s32.totalorder %s94, %s95
      %p107 = scmp.eq.s32.totalorder %s22, 1
      %p108 = por %p106, %p107
      %p110 = scmp.ne.s32.totalorder %s95, %s109
      %p111 = scmp.eq.s32.totalorder %s22, 0
      %p112 = por %p110, %p111
      %s114 = sadd.s32 %s113, 1
      %p117 = scmp.eq.s32.totalorder %s16, 1
      %p118 = scmp.ne.s32.totalorder %s113, %s115
      %p119 = scmp.eq.s32.totalorder %s16, 0
      %p120 = por %p118, %p119
      %p121 = scmp.ne.s32.totalorder %s113, %s115
      %p122 = scmp.eq.s32.totalorder %s21, 1
      %p123 = por %p121, %p122
      %p124 = scmp.ne.s32.totalorder %s115, %s116
      %p125 = scmp.eq.s32.totalorder %s21, 0
      %p126 = por %p124, %p125
      %p127 = scmp.ne.s32.totalorder %s115, %s116
      %p128 = scmp.eq.s32.totalorder %s22, 1
      %p129 = por %p127, %p128
      %p131 = scmp.ne.s32.totalorder %s116, %s130
      %p132 = scmp.eq.s32.totalorder %s22, 0
      %p133 = por %p131, %p132
      %s135 = sadd.s32 %s134, 1
      %p138 = scmp.eq.s32.totalorder %s16, 1
      %p139 = scmp.ne.s32.totalorder %s134, %s136
      %p140 = scmp.eq.s32.totalorder %s16, 0
      %p141 = por %p139, %p140
      %p142 = scmp.ne.s32.totalorder %s134, %s136
      %p143 = scmp.eq.s32.totalorder %s21, 1
      %p144 = por %p142, %p143
      %p145 = scmp.ne.s32.totalorder %s136, %s137
      %p146 = scmp.eq.s32.totalorder %s21, 0
      %p147 = por %p145, %p146
      %p148 = scmp.ne.s32.totalorder %s136, %s137
      %p149 = scmp.eq.s32.totalorder %s22, 1
      %p150 = por %p148, %p149
      %p152 = scmp.ne.s32.totalorder %s137, %s151
      %p153 = scmp.eq.s32.totalorder %s22, 0
      %p154 = por %p152, %p153
      %s155 = ssub.s32 %s16, %s23
      %p156 = scmp.eq.s32.totalorder %s155, 0
      %s158 = sadd.s32 %s157, 1
      %s159 = scalar_select %p156, %s157, %s158
      %p162 = pneg %p156
      %p163 = scmp.eq.s32.totalorder %s16, 1
      %p164 = por %p162, %p163
      %p165 = scmp.ne.s32.totalorder %s157, %s160
      %p166 = scmp.eq.s32.totalorder %s16, 0
      %p167 = por %p165, %p166
      %p168 = scmp.ne.s32.totalorder %s157, %s160
      %p169 = scmp.eq.s32.totalorder %s21, 1
      %p170 = por %p168, %p169
      %p171 = scmp.ne.s32.totalorder %s160, %s161
      %p172 = scmp.eq.s32.totalorder %s21, 0
      %p173 = por %p171, %p172
      %p174 = scmp.ne.s32.totalorder %s160, %s161
      %p175 = scmp.eq.s32.totalorder %s22, 1
      %p176 = por %p174, %p175
      %p178 = scmp.ne.s32.totalorder %s161, %s177
      %p179 = scmp.eq.s32.totalorder %s22, 0
      %p180 = por %p178, %p179
      %p181 = scmp.le.s32.totalorder 1, %s16
      %p182 = scmp.lt.s32.totalorder %s16, 3
      %p183 = pnand %p181, %p182
      %p184 = pneg %p183
      // Predicated region
      $region9: #{tpu_custom_call.1} parent=5 // pred_check
        _
      $region10: #{tpu_custom_call.1} parent=5 // pred_check_branch
        %186 = sbr.rel (%p183) target = $region12
      $region11: #{tpu_custom_call.1} parent=5 // pred_region
        %s187 = ssub.s32 %s16, 1
        // Predicated region
        $region13: #{tpu_custom_call.1} parent=11 // pred_check
          %p188 = pneg %p63
        $region14: #{tpu_custom_call.1} parent=11 // pred_check_branch
          %190 = sbr.rel (%p188) target = $region16
        $region15: #{tpu_custom_call.1} parent=11 // pred_region
          _
        $region16: #{tpu_custom_call.1} parent=11 // pred_fallthru
          _
        // Predicated region
        $region17: #{tpu_custom_call.1} parent=11 // pred_check
          %p191 = pneg %p84
        $region18: #{tpu_custom_call.1} parent=11 // pred_check_branch
          %193 = sbr.rel (%p191) target = $region20
        $region19: #{tpu_custom_call.1} parent=11 // pred_region
          _
        $region20: #{tpu_custom_call.1} parent=11 // pred_fallthru
          _
        // Predicated region
        $region21: #{tpu_custom_call.1} parent=11 // pred_check
          %p194 = pneg %p105
        $region22: #{tpu_custom_call.1} parent=11 // pred_check_branch
          %196 = sbr.rel (%p194) target = $region24
        $region23: #{tpu_custom_call.1} parent=11 // pred_region
          %s198 = ssub.s32 3840, 3840
          %199 = vsyncadd [#allocation6], %s198
          %s200 = sshll.u32 [#allocation5], 4
          %s201 = int_to_ptr.vmem [resolvable:$true] %s200
          %206 = dma.hbm_to_vmem [thread:$0]  %s3, 3840, %s201, [#allocation6], 192, 192, 12
        $region24: #{tpu_custom_call.1} parent=11 // pred_fallthru
          _
        // Predicated region
        $region25: #{tpu_custom_call.1} parent=11 // pred_check
          %p207 = pneg %p126
        $region26: #{tpu_custom_call.1} parent=11 // pred_check_branch
          %209 = sbr.rel (%p207) target = $region28
        $region27: #{tpu_custom_call.1} parent=11 // pred_region
          _
        $region28: #{tpu_custom_call.1} parent=11 // pred_fallthru
          _
        // Predicated region
        $region29: #{tpu_custom_call.1} parent=11 // pred_check
          %p210 = pneg %p147
        $region30: #{tpu_custom_call.1} parent=11 // pred_check_branch
          %212 = sbr.rel (%p210) target = $region32
        $region31: #{tpu_custom_call.1} parent=11 // pred_region
          _
        $region32: #{tpu_custom_call.1} parent=11 // pred_fallthru
          _
      $region12: #{tpu_custom_call.1} parent=5 // pred_fallthru
        _
      %p213 = scmp.lt.s32.totalorder %s16, 2
      // Predicated region
      $region33: #{tpu_custom_call.1} parent=5 // pred_check
        %p214 = pneg %p213
      $region34: #{tpu_custom_call.1} parent=5 // pred_check_branch
        %216 = sbr.rel (%p214) target = $region36
      $region35: #{tpu_custom_call.1} parent=5 // pred_region
        // Predicated region
        $region37: #{tpu_custom_call.1} parent=35 // pred_check
          %p217 = pneg %p36
        $region38: #{tpu_custom_call.1} parent=35 // pred_check_branch
          %219 = sbr.rel (%p217) target = $region40
        $region39: #{tpu_custom_call.1} parent=35 // pred_region
          %p220 = scmp.lt.s32.totalorder %s16, 1
          %s221 = scalar_select %p220, %s16, 1
          %s222 = smul.addr %s221, 10
          %s223 = smul.addr %s222, 8
          %s224 = scalar_lea.vmem %s0, %s223
        $region40: #{tpu_custom_call.1} parent=35 // pred_fallthru
          _
      $region36: #{tpu_custom_call.1} parent=5 // pred_fallthru
        _
      %p225 = scmp.le.s32.totalorder 1, %s16
      %p226 = scmp.lt.s32.totalorder %s16, 3
      %p227 = pnand %p225, %p226
      %p228 = pneg %p227
      // Predicated region
      $region41: #{tpu_custom_call.1} parent=5 // pred_check
        _
      $region42: #{tpu_custom_call.1} parent=5 // pred_check_branch
        %230 = sbr.rel (%p227) target = $region44
      $region43: #{tpu_custom_call.1} parent=5 // pred_region
        %s231 = ssub.s32 %s16, 1
        // Predicated region
        $region45: #{tpu_custom_call.1} parent=43 // pred_check
          %p232 = pneg %p105
        $region46: #{tpu_custom_call.1} parent=43 // pred_check_branch
          %234 = sbr.rel (%p232) target = $region48
        $region47: #{tpu_custom_call.1} parent=43 // pred_region
          %235 = dma.done [#allocation6], 3840
        $region48: #{tpu_custom_call.1} parent=43 // pred_fallthru
          _
        %p236 = scmp.lt.s32.totalorder %s21, 1
        %s237 = scalar_select %p236, %s21, 1
        %s238 = smul.addr %s237, 10
        %s239 = smul.addr %s238, 8
        %s240 = scalar_lea.vmem %s0, %s239
        %p241 = pneg %p42
        %p242 = pneg %p39
        %p243 = pneg %p63
        %p244 = pneg %p60
        %p245 = pneg %p84
        %p246 = pneg %p81
        %p247 = pneg %p105
        %p248 = pneg %p102
        %p249 = pneg %p126
        %p250 = pneg %p123
        %p251 = pneg %p147
        %p252 = pneg %p144
        %p253 = pneg %p173
        %p254 = pneg %p170
        %s255 = sand.u32 %s160, 1
        %s256 = scalar_lea.sflag [#allocation7], %s255
        %s257 = sand.u32 %s160, 1
        %s258 = smul.addr %s257, 96
        %s259 = scalar_lea.vmem [#allocation8], %s258
        %p260 = scmp.lt.s32.totalorder %s21, 1
        %s261 = scalar_select %p260, %s21, 1
        %s262 = smul.addr %s261, 10
        %s263 = smul.addr %s262, 8
        %s264 = scalar_lea.vmem %s0, %s263
        %266 = vst [vmem:[#allocation2] sm:$0xff] 0.0
        %267 = vst [vmem:[#allocation2 + $0x28] sm:$0xff] 0.0
        %268 = vst [vmem:[#allocation2 + $0x50] sm:$0xff] 0.0
        %269 = vst [vmem:[#allocation2 + $0x78] sm:$0xff] 0.0
        %vm270 = vcmask 1048096
        %271 = vst.msk [vmem:[#allocation2 + $0x18] sm:$0xff] %vm270, 0.0
        %vm272 = vcmask 556032
        %273 = vst.msk [vmem:[#allocation2 + $0x20] sm:$0xff] %vm272, 0.0
        %274 = vst.msk [vmem:[#allocation2 + $0x40] sm:$0xff] %vm270, 0.0
        %275 = vst.msk [vmem:[#allocation2 + $0x48] sm:$0xff] %vm272, 0.0
        %276 = vst.msk [vmem:[#allocation2 + $0x68] sm:$0xff] %vm270, 0.0
        %277 = vst.msk [vmem:[#allocation2 + $0x70] sm:$0xff] %vm272, 0.0
        %278 = vst.msk [vmem:[#allocation2 + $0x90] sm:$0xff] %vm270, 0.0
        %279 = vst.msk [vmem:[#allocation2 + $0x98] sm:$0xff] %vm272, 0.0
        %280 = vst [vmem:[#allocation3] sm:$0xff] 0.0
        %281 = vst [vmem:[#allocation3 + $0x28] sm:$0xff] 0.0
        %282 = vst [vmem:[#allocation3 + $0x50] sm:$0xff] 0.0
        %283 = vst [vmem:[#allocation3 + $0x78] sm:$0xff] 0.0
        %284 = vst.msk [vmem:[#allocation3 + $0x18] sm:$0xff] %vm270, 0.0
        %285 = vst.msk [vmem:[#allocation3 + $0x20] sm:$0xff] %vm272, 0.0
        %286 = vst.msk [vmem:[#allocation3 + $0x40] sm:$0xff] %vm270, 0.0
        %287 = vst.msk [vmem:[#allocation3 + $0x48] sm:$0xff] %vm272, 0.0
        %288 = vst.msk [vmem:[#allocation3 + $0x68] sm:$0xff] %vm270, 0.0
        %289 = vst.msk [vmem:[#allocation3 + $0x70] sm:$0xff] %vm272, 0.0
        %290 = vst.msk [vmem:[#allocation3 + $0x90] sm:$0xff] %vm270, 0.0
        %291 = vst.msk [vmem:[#allocation3 + $0x98] sm:$0xff] %vm272, 0.0
        %v292 = vld [vmem:[%s5] sm:$0x7]
        %v293 = vld [vmem:[%s264] sm:$0xff]
        %v294 = vld [vmem:[%s264 + $0x8] sm:$0xff]
        %v295 = vld [vmem:[%s264 + $0x10] sm:$0xff]
        %v296 = vld [vmem:[%s264 + $0x18] sm:$0xff]
        %v297 = vld [vmem:[%s264 + $0x28] sm:$0xff]
        %v298 = vld [vmem:[%s264 + $0x30] sm:$0xff]
        %v299 = vld [vmem:[%s264 + $0x38] sm:$0xff]
        %v300 = vld [vmem:[%s264 + $0x40] sm:$0xff]
        %v301 = vpack.c.bf16 %v297, %v293
        %v302 = vpack.c.bf16 %v298, %v294
        %v303 = vpack.c.bf16 %v299, %v295
        %v304 = vpack.c.bf16 %v300, %v296
        %309 = vrot.lane.b32.xlu0 %v301, 19
        %v310 = vpop.permute.xlu0 %309
        %311 = vrot.lane.b32.xlu0 %v302, 19
        %v312 = vpop.permute.xlu0 %311
        %313 = vrot.lane.b32.xlu0 %v303, 19
        %v314 = vpop.permute.xlu0 %313
        %315 = vrot.lane.b32.xlu0 %v304, 19
        %v316 = vpop.permute.xlu0 %315
        %vm317 = vcmask 154624
        %v318 = vsel %vm317, %v310, %v312
        %v319 = vsel %vm317, %v312, %v314
        %v320 = vsel %vm317, %v314, %v316
        %324 = vst [vmem:[#allocation4] sm:$0xff] %v318
        %325 = vst [vmem:[#allocation4 + $0x8] sm:$0xff] %v319
        %326 = vst.msk [vmem:[#allocation4 + $0x10] sm:$0xff] %vm272, %v320
        %327 = vrot.lane.b32.xlu0 %v301, 18
        %v328 = vpop.permute.xlu0 %327
        %329 = vrot.lane.b32.xlu0 %v302, 18
        %v330 = vpop.permute.xlu0 %329
        %331 = vrot.lane.b32.xlu0 %v303, 18
        %v332 = vpop.permute.xlu0 %331
        %333 = vrot.lane.b32.xlu0 %v304, 18
        %v334 = vpop.permute.xlu0 %333
        %vm335 = vcmask 146432
        %v336 = vsel %vm335, %v328, %v330
        %v337 = vsel %vm335, %v330, %v332
        %v338 = vsel %vm335, %v332, %v334
        %342 = vst [vmem:[#allocation4 + $0x18] sm:$0xff] %v336
        %343 = vst [vmem:[#allocation4 + $0x20] sm:$0xff] %v337
        %344 = vst.msk [vmem:[#allocation4 + $0x28] sm:$0xff] %vm272, %v338
        %345 = vrot.lane.b32.xlu0 %v301, 17
        %v346 = vpop.permute.xlu0 %345
        %347 = vrot.lane.b32.xlu0 %v302, 17
        %v348 = vpop.permute.xlu0 %347
        %349 = vrot.lane.b32.xlu0 %v303, 17
        %v350 = vpop.permute.xlu0 %349
        %351 = vrot.lane.b32.xlu0 %v304, 17
        %v352 = vpop.permute.xlu0 %351
        %vm353 = vcmask 138240
        %v354 = vsel %vm353, %v346, %v348
        %v355 = vsel %vm353, %v348, %v350
        %v356 = vsel %vm353, %v350, %v352
        %360 = vst [vmem:[#allocation4 + $0x30] sm:$0xff] %v354
        %361 = vst [vmem:[#allocation4 + $0x38] sm:$0xff] %v355
        %362 = vst.msk [vmem:[#allocation4 + $0x40] sm:$0xff] %vm272, %v356
        %363 = vrot.lane.b32.xlu0 %v301, 1
        %v364 = vpop.permute.xlu0 %363
        %365 = vrot.lane.b32.xlu0 %v302, 1
        %v366 = vpop.permute.xlu0 %365
        %367 = vrot.lane.b32.xlu0 %v303, 1
        %v368 = vpop.permute.xlu0 %367
        %369 = vrot.lane.b32.xlu0 %v304, 1
        %v370 = vpop.permute.xlu0 %369
        %vm371 = vcmask 7168
        %v372 = vsel %vm371, %v364, %v366
        %v373 = vsel %vm371, %v366, %v368
        %v374 = vsel %vm371, %v368, %v370
        %378 = vst [vmem:[#allocation4 + $0x48] sm:$0xff] %v372
        %379 = vst [vmem:[#allocation4 + $0x50] sm:$0xff] %v373
        %380 = vst.msk [vmem:[#allocation4 + $0x58] sm:$0xff] %vm272, %v374
        %381 = vst [vmem:[#allocation4 + $0x60] sm:$0xff] %v302
        %382 = vst [vmem:[#allocation4 + $0x68] sm:$0xff] %v303
        %383 = vst.msk [vmem:[#allocation4 + $0x70] sm:$0xff] %vm272, %v304
        %384 = vrot.lane.b32.xlu0 %v302, 127
        %v385 = vpop.permute.xlu0 %384
        %386 = vrot.lane.b32.xlu0 %v303, 127
        %v387 = vpop.permute.xlu0 %386
        %388 = vrot.lane.b32.xlu0 %v304, 127
        %v389 = vpop.permute.xlu0 %388
        %vm390 = vcmask 1039360
        %v391 = vsel %vm390, %v385, %v387
        %v392 = vsel %vm390, %v387, %v389
        %396 = vst [vmem:[#allocation4 + $0x78] sm:$0xff] %v391
        %397 = vst [vmem:[#allocation4 + $0x80] sm:$0xff] %v392
        %398 = vst.msk [vmem:[#allocation4 + $0x88] sm:$0xff] %vm272, %v389
        %399 = vrot.lane.b32.xlu0 %v302, 111
        %v400 = vpop.permute.xlu0 %399
        %401 = vrot.lane.b32.xlu0 %v303, 111
        %v402 = vpop.permute.xlu0 %401
        %403 = vrot.lane.b32.xlu0 %v304, 111
        %v404 = vpop.permute.xlu0 %403
        %vm405 = vcmask 908288
        %v406 = vsel %vm405, %v400, %v402
        %v407 = vsel %vm405, %v402, %v404
        %411 = vst [vmem:[#allocation4 + $0x90] sm:$0xff] %v406
        %412 = vst [vmem:[#allocation4 + $0x98] sm:$0xff] %v407
        %413 = vst.msk [vmem:[#allocation4 + $0xa0] sm:$0xff] %vm272, %v404
        %414 = vrot.lane.b32.xlu0 %v302, 110
        %v415 = vpop.permute.xlu0 %414
        %416 = vrot.lane.b32.xlu0 %v303, 110
        %v417 = vpop.permute.xlu0 %416
        %418 = vrot.lane.b32.xlu0 %v304, 110
        %v419 = vpop.permute.xlu0 %418
        %vm420 = vcmask 900096
        %v421 = vsel %vm420, %v415, %v417
        %v422 = vsel %vm420, %v417, %v419
        %426 = vst [vmem:[#allocation4 + $0xa8] sm:$0xff] %v421
        %427 = vst [vmem:[#allocation4 + $0xb0] sm:$0xff] %v422
        %428 = vst.msk [vmem:[#allocation4 + $0xb8] sm:$0xff] %vm272, %v419
        %429 = vrot.lane.b32.xlu0 %v302, 109
        %v430 = vpop.permute.xlu0 %429
        %431 = vrot.lane.b32.xlu0 %v303, 109
        %v432 = vpop.permute.xlu0 %431
        %433 = vrot.lane.b32.xlu0 %v304, 109
        %v434 = vpop.permute.xlu0 %433
        %vm435 = vcmask 891904
        %v436 = vsel %vm435, %v430, %v432
        %v437 = vsel %vm435, %v432, %v434
        %441 = vst [vmem:[#allocation4 + $0xc0] sm:$0xff] %v436
        %442 = vst [vmem:[#allocation4 + $0xc8] sm:$0xff] %v437
        %443 = vst.msk [vmem:[#allocation4 + $0xd0] sm:$0xff] %vm272, %v434
        %v444 = vld [vmem:[%s1] sm:$0xff]
        %v445 = vld [vmem:[%s1 + $0x8] sm:$0xff]
        %v446 = vld [vmem:[%s1 + $0x10] sm:$0xff]
        %v447 = vld [vmem:[%s1 + $0x18] sm:$0xff]
        %v448 = vld [vmem:[#allocation4] sm:$0xff]
        %v449 = vld [vmem:[#allocation4 + $0x8] sm:$0xff]
        %v450 = vld [vmem:[#allocation4 + $0x10] sm:$0xff]
        %v451 = vld [vmem:[#allocation4 + $0x18] sm:$0xff]
        %v452 = vld [vmem:[#allocation4 + $0x20] sm:$0xff]
        %v453 = vld [vmem:[#allocation4 + $0x28] sm:$0xff]
        %v454 = vld [vmem:[#allocation4 + $0x30] sm:$0xff]
        %v455 = vld [vmem:[#allocation4 + $0x38] sm:$0xff]
        %v456 = vld [vmem:[#allocation4 + $0x40] sm:$0xff]
        %v457 = vld [vmem:[#allocation4 + $0x48] sm:$0xff]
        %v458 = vld [vmem:[#allocation4 + $0x50] sm:$0xff]
        %v459 = vld [vmem:[#allocation4 + $0x58] sm:$0xff]
        %v460 = vld [vmem:[#allocation4 + $0x60] sm:$0xff]
        %v461 = vld [vmem:[#allocation4 + $0x68] sm:$0xff]
        %v462 = vld [vmem:[#allocation4 + $0x70] sm:$0xff]
        %v463 = vld [vmem:[#allocation4 + $0x78] sm:$0xff]
        %v464 = vld [vmem:[#allocation4 + $0x80] sm:$0xff]
        %v465 = vld [vmem:[#allocation4 + $0x88] sm:$0xff]
        %v466 = vld [vmem:[#allocation4 + $0x90] sm:$0xff]
        %v467 = vld [vmem:[#allocation4 + $0x98] sm:$0xff]
        %v468 = vld [vmem:[#allocation4 + $0xa0] sm:$0xff]
        %v469 = vld [vmem:[#allocation4 + $0xa8] sm:$0xff]
        %v470 = vld [vmem:[#allocation4 + $0xb0] sm:$0xff]
        %v471 = vld [vmem:[#allocation4 + $0xb8] sm:$0xff]
        %v472 = vld [vmem:[#allocation4 + $0xc0] sm:$0xff]
        %v473 = vld [vmem:[#allocation4 + $0xc8] sm:$0xff]
        %v474 = vld [vmem:[#allocation4 + $0xd0] sm:$0xff]
        %v475 = vld [vmem:[%s2] sm:$0xff]
        %v476 = vld [vmem:[%s2 + $0x8] sm:$0xff]
        %v477 = vld [vmem:[%s2 + $0x10] sm:$0xff]
        %v478 = vld [vmem:[%s2 + $0x18] sm:$0xff]
        %480 = vset.pattern.permute.xlu0 0
        %481 = vperm.xlu0 %480, %v475
        %v482 = vpop.permute.xlu0 %481
        %485 = vset.pattern.permute.xlu0 0
        %486 = vperm.xlu0 %485, %v476
        %v487 = vpop.permute.xlu0 %486
        %490 = vset.pattern.permute.xlu0 0
        %491 = vperm.xlu0 %490, %v477
        %v492 = vpop.permute.xlu0 %491
        %495 = vset.pattern.permute.xlu0 0
        %496 = vperm.xlu0 %495, %v478
        %v497 = vpop.permute.xlu0 %496
        %v503 = vunpack.c.l.b16 %v444
        %v504 = vunpack.c.h.b16 %v444
        %v505 = vunpack.c.l.b16 %v445
        %v506 = vunpack.c.h.b16 %v445
        %v507 = vunpack.c.l.b16 %v446
        %v508 = vunpack.c.h.b16 %v446
        %v509 = vunpack.c.l.b16 %v447
        %v510 = vunpack.c.h.b16 %v447
        %v511 = vpack.c.b16 %v505, %v503
        %v512 = vpack.c.b16 %v506, %v504
        %v513 = vpack.c.b16 %v509, %v507
        %v514 = vpack.c.b16 %v510, %v508
        %vm517 = vcmask 130048
        %v519 = vsel %vm517, %v512, 0
        %v522 = vsel %vm517, %v514, 0
        %524 = vmatprep.subr.bf16.mxu0 %v449
        %525 = vmatpush1.bf16.msra.mxu0 %v448
        %526 = vmatprep.subr.bf16.mxu0 %v452
        %527 = vmatpush1.bf16.msra.mxu0 %v451
        %528 = vmatprep.subr.bf16.mxu0 %v455
        %529 = vmatpush1.bf16.msra.mxu0 %v454
        %530 = vmatprep.subr.bf16.mxu0 %v458
        %531 = vmatpush1.bf16.msra.mxu0 %v457
        %532 = vmatprep.subr.bf16.mxu0 %v461
        %533 = vmatpush1.bf16.msra.mxu0 %v460
        %534 = vmatprep.subr.bf16.mxu0 %v464
        %535 = vmatpush1.bf16.msra.mxu0 %v463
        %536 = vmatprep.subr.bf16.mxu0 %v467
        %537 = vmatpush1.bf16.msra.mxu0 %v466
        %538 = vmatprep.subr.bf16.mxu0 %v470
        %539 = vmatpush1.bf16.msra.mxu0 %v469
        %540 = vmatprep.subr.bf16.mxu0 %v473
        %541 = vmatpush1.bf16.msra.mxu0 %v472
        %542 = vmatprep.subr.bf16.mxu0 0
        %543 = vmatpush1.bf16.msra.mxu0 0
        %544 = vmatprep.subr.bf16.mxu0 0
        %545 = vmatpush1.bf16.msra.mxu0 0
        %546 = vmatprep.subr.bf16.mxu0 0
        %547 = vmatpush1.bf16.msra.mxu0 0
        %548 = vmatprep.subr.bf16.mxu0 0
        %549 = vmatpush1.bf16.msra.mxu0 0
        %550 = vmatprep.subr.bf16.mxu0 0
        %551 = vmatpush1.bf16.msra.mxu0 0
        %552 = vmatprep.subr.bf16.mxu0 0
        %553 = vmatpush1.bf16.msra.mxu0 0
        %554 = vmatprep.subr.bf16.mxu0 0
        %555 = vmatpush1.bf16.msra.mxu0 0
        %556 = vmatprep.mubr.bf16.mxu0 %v519
        %557 = vmatmul.mubr.bf16.gmra.mrb[0].mxu0 %v511
        %v558 = vpop.f32.mrb[0].mxu0
        %v559 = vadd.f32 %v482, %v558
        %v560 = vpop.f32.mrb[0].mxu0
        %v561 = vadd.f32 %v482, %v560
        %v562 = vpop.f32.mrb[0].mxu0
        %v563 = vadd.f32 %v487, %v562
        %v564 = vpop.f32.mrb[0].mxu0
        %v565 = vadd.f32 %v487, %v564
        %566 = vmatprep.mubr.bf16.mxu0 %v522
        %567 = vmatmul.mubr.bf16.gmra.mrb[0].mxu0 %v513
        %v568 = vpop.f32.mrb[0].mxu0
        %v569 = vadd.f32 %v492, %v568
        %v570 = vpop.f32.mrb[0].mxu0
        %v571 = vadd.f32 %v492, %v570
        %v572 = vpop.f32.mrb[0].mxu0
        %v573 = vadd.f32 %v497, %v572
        %v574 = vpop.f32.mrb[0].mxu0
        %v575 = vadd.f32 %v497, %v574
        %576 = vdwg.mxu0
        %577 = vmatprep.subr.bf16.mxu0 0
        %578 = vmatpush1.bf16.msra.mxu0 %v450
        %579 = vmatprep.subr.bf16.mxu0 0
        %580 = vmatpush1.bf16.msra.mxu0 %v453
        %581 = vmatprep.subr.bf16.mxu0 0
        %582 = vmatpush1.bf16.msra.mxu0 %v456
        %583 = vmatprep.subr.bf16.mxu0 0
        %584 = vmatpush1.bf16.msra.mxu0 %v459
        %585 = vmatprep.subr.bf16.mxu0 0
        %586 = vmatpush1.bf16.msra.mxu0 %v462
        %587 = vmatprep.subr.bf16.mxu0 0
        %588 = vmatpush1.bf16.msra.mxu0 %v465
        %589 = vmatprep.subr.bf16.mxu0 0
        %590 = vmatpush1.bf16.msra.mxu0 %v468
        %591 = vmatprep.subr.bf16.mxu0 0
        %592 = vmatpush1.bf16.msra.mxu0 %v471
        %593 = vmatprep.subr.bf16.mxu0 0
        %594 = vmatpush1.bf16.msra.mxu0 %v474
        %595 = vmatprep.subr.bf16.mxu0 0
        %596 = vmatpush1.bf16.msra.mxu0 0
        %597 = vmatprep.subr.bf16.mxu0 0
        %598 = vmatpush1.bf16.msra.mxu0 0
        %599 = vmatprep.subr.bf16.mxu0 0
        %600 = vmatpush1.bf16.msra.mxu0 0
        %601 = vmatprep.subr.bf16.mxu0 0
        %602 = vmatpush1.bf16.msra.mxu0 0
        %603 = vmatprep.subr.bf16.mxu0 0
        %604 = vmatpush1.bf16.msra.mxu0 0
        %605 = vmatprep.subr.bf16.mxu0 0
        %606 = vmatpush1.bf16.msra.mxu0 0
        %607 = vmatprep.subr.bf16.mxu0 0
        %608 = vmatpush1.bf16.msra.mxu0 0
        %609 = vmatprep.mubr.bf16.mxu0 %v519
        %610 = vmatmul.mubr.bf16.gmra.mrb[0].mxu0 %v511
        %v611 = vpop.f32.mrb[0].mxu0
        %v612 = vadd.f32 %v482, %v611
        %v613 = vpop.f32.mrb[0].mxu0
        %v614 = vpop.f32.mrb[0].mxu0
        %v615 = vadd.f32 %v487, %v614
        %v616 = vpop.f32.mrb[0].mxu0
        %617 = vmatprep.mubr.bf16.mxu0 %v522
        %618 = vmatmul.mubr.bf16.gmra.mrb[0].mxu0 %v513
        %v619 = vpop.f32.mrb[0].mxu0
        %v620 = vadd.f32 %v492, %v619
        %v621 = vpop.f32.mrb[0].mxu0
        %v622 = vpop.f32.mrb[0].mxu0
        %v623 = vadd.f32 %v497, %v622
        %v624 = vpop.f32.mrb[0].mxu0
        %625 = vdwg.mxu0
        %v626 = vmax.f32 %v559, 0.0
        %v627 = vmax.f32 %v561, 0.0
        %v628 = vmax.f32 %v612, 0.0
        %v629 = vmax.f32 %v563, 0.0
        %v630 = vmax.f32 %v565, 0.0
        %v631 = vmax.f32 %v615, 0.0
        %v632 = vmax.f32 %v569, 0.0
        %v633 = vmax.f32 %v571, 0.0
        %v634 = vmax.f32 %v620, 0.0
        %v635 = vmax.f32 %v573, 0.0
        %v636 = vmax.f32 %v575, 0.0
        %v637 = vmax.f32 %v623, 0.0
        %v639 = vlaneseq
        %v640 = vshrl.u32 %v639, 7
        %v641 = vsub.s32 0, %v640
        %v642 = vrot.slane %v292, %v641
        %v643 = vlaneseq
        %v644 = vshrl.u32 %v643, 7
        %v645 = vsub.s32 1, %v644
        %v646 = vrot.slane %v292, %v645
        %v647 = vlaneseq
        %v648 = vshrl.u32 %v647, 7
        %v649 = vsub.s32 2, %v648
        %v650 = vrot.slane %v292, %v649
        %v654 = vmul.f32 %v642, %v626
        %v655 = vmul.f32 %v646, %v627
        %v656 = vmul.f32 %v650, %v628
        %v657 = vmul.f32 %v642, %v629
        %v658 = vmul.f32 %v646, %v630
        %v659 = vmul.f32 %v650, %v631
        %v660 = vmul.f32 %v642, %v632
        %v661 = vmul.f32 %v646, %v633
        %v662 = vmul.f32 %v650, %v634
        %v663 = vmul.f32 %v642, %v635
        %v664 = vmul.f32 %v646, %v636
        %v665 = vmul.f32 %v650, %v637
        %666 = vst [vmem:[%s259] sm:$0xff] %v654
        %667 = vst [vmem:[%s259 + $0x8] sm:$0xff] %v655
        %668 = vst.msk [vmem:[%s259 + $0x10] sm:$0xff] %vm272, %v656
        %669 = vst [vmem:[%s259 + $0x18] sm:$0xff] %v657
        %670 = vst [vmem:[%s259 + $0x20] sm:$0xff] %v658
        %671 = vst.msk [vmem:[%s259 + $0x28] sm:$0xff] %vm272, %v659
        %672 = vst [vmem:[%s259 + $0x30] sm:$0xff] %v660
        %673 = vst [vmem:[%s259 + $0x38] sm:$0xff] %v661
        %674 = vst.msk [vmem:[%s259 + $0x40] sm:$0xff] %vm272, %v662
        %675 = vst [vmem:[%s259 + $0x48] sm:$0xff] %v663
        %676 = vst [vmem:[%s259 + $0x50] sm:$0xff] %v664
        %677 = vst.msk [vmem:[%s259 + $0x58] sm:$0xff] %vm272, %v665
        %678 = vst [vmem:[#allocation2 + $0x8] sm:$0xff] %v654
        %679 = vst [vmem:[#allocation2 + $0x10] sm:$0xff] %v655
        %680 = vst.msk [vmem:[#allocation2 + $0x18] sm:$0xff] %vm272, %v656
        %681 = vst [vmem:[#allocation2 + $0x30] sm:$0xff] %v657
        %682 = vst [vmem:[#allocation2 + $0x38] sm:$0xff] %v658
        %683 = vst.msk [vmem:[#allocation2 + $0x40] sm:$0xff] %vm272, %v659
        %684 = vst [vmem:[#allocation2 + $0x58] sm:$0xff] %v660
        %685 = vst [vmem:[#allocation2 + $0x60] sm:$0xff] %v661
        %686 = vst.msk [vmem:[#allocation2 + $0x68] sm:$0xff] %vm272, %v662
        %687 = vst [vmem:[#allocation2 + $0x80] sm:$0xff] %v663
        %688 = vst [vmem:[#allocation2 + $0x88] sm:$0xff] %v664
        %689 = vst.msk [vmem:[#allocation2 + $0x90] sm:$0xff] %vm272, %v665
        loop: start=0, step=1, limit=2
        $region49: #{tpu_custom_call.1} parent=43 // loop_pre_header
          _
        $region50: #{tpu_custom_call.1} parent=43 // loop_header
          %s691 = sphi 0, %s695
          %p692 = scmp.ge.s32.totalorder %s691, 2
        $region51: #{tpu_custom_call.1} parent=43 // loop_header_branch
          %694 = sbr.rel (%p692) target = $region55
        $region52: #{tpu_custom_call.1} parent=43 // loop_body
          %s696 = smul.u32 %s691, 2
          %s697 = smul.u32 %s696, 12
          %s698 = smul.addr %s697, 4
          %s699 = scalar_lea.vmem [#allocation5], %s698
          %v700 = vld [vmem:[%s699] sm:$0xff]
          %v701 = vld [vmem:[%s699 + $0x8] sm:$0xf]
          %v702 = vld [vmem:[%s699 + $0xc] sm:$0xff]
          %v703 = vld [vmem:[%s699 + $0x14] sm:$0xf]
          %v704 = vld [vmem:[%s699 + $0x18] sm:$0xff]
          %v705 = vld [vmem:[%s699 + $0x20] sm:$0xf]
          %v706 = vld [vmem:[%s699 + $0x24] sm:$0xff]
          %v707 = vld [vmem:[%s699 + $0x2c] sm:$0xf]
          %s708 = smul.u32 %s696, 32
          %s709 = scalar_lea.vmem %s4, %s708
          %v710 = vld [vmem:[%s709] sm:$0xff]
          %v711 = vld [vmem:[%s709 + $0x8] sm:$0xff]
          %v712 = vld [vmem:[%s709 + $0x10] sm:$0xff]
          %v713 = vld [vmem:[%s709 + $0x18] sm:$0xff]
          %s714 = sadd.s32 %s696, 1
          %s715 = smul.u32 %s714, 12
          %s716 = smul.addr %s715, 4
          %s717 = scalar_lea.vmem [#allocation5], %s716
          %v718 = vld [vmem:[%s717] sm:$0xff]
          %v719 = vld [vmem:[%s717 + $0x8] sm:$0xf]
          %v720 = vld [vmem:[%s717 + $0xc] sm:$0xff]
          %v721 = vld [vmem:[%s717 + $0x14] sm:$0xf]
          %v722 = vld [vmem:[%s717 + $0x18] sm:$0xff]
          %v723 = vld [vmem:[%s717 + $0x20] sm:$0xf]
          %v724 = vld [vmem:[%s717 + $0x24] sm:$0xff]
          %v725 = vld [vmem:[%s717 + $0x2c] sm:$0xf]
          %s726 = smul.u32 %s714, 32
          %s727 = scalar_lea.vmem %s4, %s726
          %v728 = vld [vmem:[%s727] sm:$0xff]
          %v729 = vld [vmem:[%s727 + $0x8] sm:$0xff]
          %v730 = vld [vmem:[%s727 + $0x10] sm:$0xff]
          %v731 = vld [vmem:[%s727 + $0x18] sm:$0xff]
          %v732 = vld [vmem:[#allocation2] sm:$0xff]
          %v733 = vld [vmem:[#allocation2 + $0x8] sm:$0xff]
          %v734 = vld [vmem:[#allocation2 + $0x10] sm:$0xff]
          %v735 = vld [vmem:[#allocation2 + $0x18] sm:$0xff]
          %v736 = vld [vmem:[#allocation2 + $0x28] sm:$0xff]
          %v737 = vld [vmem:[#allocation2 + $0x30] sm:$0xff]
          %v738 = vld [vmem:[#allocation2 + $0x38] sm:$0xff]
          %v739 = vld [vmem:[#allocation2 + $0x40] sm:$0xff]
          %v740 = vld [vmem:[#allocation2 + $0x50] sm:$0xff]
          %v741 = vld [vmem:[#allocation2 + $0x58] sm:$0xff]
          %v742 = vld [vmem:[#allocation2 + $0x60] sm:$0xff]
          %v743 = vld [vmem:[#allocation2 + $0x68] sm:$0xff]
          %v744 = vld [vmem:[#allocation2 + $0x78] sm:$0xff]
          %v745 = vld [vmem:[#allocation2 + $0x80] sm:$0xff]
          %v746 = vld [vmem:[#allocation2 + $0x88] sm:$0xff]
          %v747 = vld [vmem:[#allocation2 + $0x90] sm:$0xff]
          %v748 = vpack.c.bf16 %v736, %v732
          %v749 = vpack.c.bf16 %v737, %v733
          %v750 = vpack.c.bf16 %v738, %v734
          %v751 = vpack.c.bf16 %v739, %v735
          %v752 = vpack.c.bf16 %v744, %v740
          %v753 = vpack.c.bf16 %v745, %v741
          %v754 = vpack.c.bf16 %v746, %v742
          %v755 = vpack.c.bf16 %v747, %v743
          %764 = vrot.lane.b32.xlu0 %v748, 19
          %v765 = vpop.permute.xlu0 %764
          %766 = vrot.lane.b32.xlu0 %v749, 19
          %v767 = vpop.permute.xlu0 %766
          %768 = vrot.lane.b32.xlu0 %v750, 19
          %v769 = vpop.permute.xlu0 %768
          %770 = vrot.lane.b32.xlu0 %v751, 19
          %v771 = vpop.permute.xlu0 %770
          %772 = vrot.lane.b32.xlu0 %v752, 19
          %v773 = vpop.permute.xlu0 %772
          %774 = vrot.lane.b32.xlu0 %v753, 19
          %v775 = vpop.permute.xlu0 %774
          %776 = vrot.lane.b32.xlu0 %v754, 19
          %v777 = vpop.permute.xlu0 %776
          %778 = vrot.lane.b32.xlu0 %v755, 19
          %v779 = vpop.permute.xlu0 %778
          %v780 = vsel %vm317, %v765, %v767
          %v781 = vsel %vm317, %v767, %v769
          %v782 = vsel %vm317, %v769, %v771
          %v783 = vsel %vm317, %v773, %v775
          %v784 = vsel %vm317, %v775, %v777
          %v785 = vsel %vm317, %v777, %v779
          %792 = vst [vmem:[#allocation4] sm:$0xff] %v780
          %793 = vst [vmem:[#allocation4 + $0x8] sm:$0xff] %v781
          %794 = vst.msk [vmem:[#allocation4 + $0x10] sm:$0xff] %vm272, %v782
          %795 = vst [vmem:[#allocation4 + $0x18] sm:$0xff] %v783
          %796 = vst [vmem:[#allocation4 + $0x20] sm:$0xff] %v784
          %797 = vst.msk [vmem:[#allocation4 + $0x28] sm:$0xff] %vm272, %v785
          %v798 = vld [vmem:[#allocation2] sm:$0xff]
          %v799 = vld [vmem:[#allocation2 + $0x8] sm:$0xff]
          %v800 = vld [vmem:[#allocation2 + $0x10] sm:$0xff]
          %v801 = vld [vmem:[#allocation2 + $0x18] sm:$0xff]
          %v802 = vld [vmem:[#allocation2 + $0x28] sm:$0xff]
          %v803 = vld [vmem:[#allocation2 + $0x30] sm:$0xff]
          %v804 = vld [vmem:[#allocation2 + $0x38] sm:$0xff]
          %v805 = vld [vmem:[#allocation2 + $0x40] sm:$0xff]
          %v806 = vld [vmem:[#allocation2 + $0x50] sm:$0xff]
          %v807 = vld [vmem:[#allocation2 + $0x58] sm:$0xff]
          %v808 = vld [vmem:[#allocation2 + $0x60] sm:$0xff]
          %v809 = vld [vmem:[#allocation2 + $0x68] sm:$0xff]
          %v810 = vld [vmem:[#allocation2 + $0x78] sm:$0xff]
          %v811 = vld [vmem:[#allocation2 + $0x80] sm:$0xff]
          %v812 = vld [vmem:[#allocation2 + $0x88] sm:$0xff]
          %v813 = vld [vmem:[#allocation2 + $0x90] sm:$0xff]
          %v814 = vpack.c.bf16 %v802, %v798
          %v815 = vpack.c.bf16 %v803, %v799
          %v816 = vpack.c.bf16 %v804, %v800
          %v817 = vpack.c.bf16 %v805, %v801
          %v818 = vpack.c.bf16 %v810, %v806
          %v819 = vpack.c.bf16 %v811, %v807
          %v820 = vpack.c.bf16 %v812, %v808
          %v821 = vpack.c.bf16 %v813, %v809
          %830 = vrot.lane.b32.xlu0 %v814, 18
          %v831 = vpop.permute.xlu0 %830
          %832 = vrot.lane.b32.xlu0 %v815, 18
          %v833 = vpop.permute.xlu0 %832
          %834 = vrot.lane.b32.xlu0 %v816, 18
          %v835 = vpop.permute.xlu0 %834
          %836 = vrot.lane.b32.xlu0 %v817, 18
          %v837 = vpop.permute.xlu0 %836
          %838 = vrot.lane.b32.xlu0 %v818, 18
          %v839 = vpop.permute.xlu0 %838
          %840 = vrot.lane.b32.xlu0 %v819, 18
          %v841 = vpop.permute.xlu0 %840
          %842 = vrot.lane.b32.xlu0 %v820, 18
          %v843 = vpop.permute.xlu0 %842
          %844 = vrot.lane.b32.xlu0 %v821, 18
          %v845 = vpop.permute.xlu0 %844
          %v846 = vsel %vm335, %v831, %v833
          %v847 = vsel %vm335, %v833, %v835
          %v848 = vsel %vm335, %v835, %v837
          %v849 = vsel %vm335, %v839, %v841
          %v850 = vsel %vm335, %v841, %v843
          %v851 = vsel %vm335, %v843, %v845
          %858 = vst [vmem:[#allocation4 + $0x30] sm:$0xff] %v846
          %859 = vst [vmem:[#allocation4 + $0x38] sm:$0xff] %v847
          %860 = vst.msk [vmem:[#allocation4 + $0x40] sm:$0xff] %vm272, %v848
          %861 = vst [vmem:[#allocation4 + $0x48] sm:$0xff] %v849
          %862 = vst [vmem:[#allocation4 + $0x50] sm:$0xff] %v850
          %863 = vst.msk [vmem:[#allocation4 + $0x58] sm:$0xff] %vm272, %v851
          %v864 = vld [vmem:[#allocation2] sm:$0xff]
          %v865 = vld [vmem:[#allocation2 + $0x8] sm:$0xff]
          %v866 = vld [vmem:[#allocation2 + $0x10] sm:$0xff]
          %v867 = vld [vmem:[#allocation2 + $0x18] sm:$0xff]
          %v868 = vld [vmem:[#allocation2 + $0x28] sm:$0xff]
          %v869 = vld [vmem:[#allocation2 + $0x30] sm:$0xff]
          %v870 = vld [vmem:[#allocation2 + $0x38] sm:$0xff]
          %v871 = vld [vmem:[#allocation2 + $0x40] sm:$0xff]
          %v872 = vld [vmem:[#allocation2 + $0x50] sm:$0xff]
          %v873 = vld [vmem:[#allocation2 + $0x58] sm:$0xff]
          %v874 = vld [vmem:[#allocation2 + $0x60] sm:$0xff]
          %v875 = vld [vmem:[#allocation2 + $0x68] sm:$0xff]
          %v876 = vld [vmem:[#allocation2 + $0x78] sm:$0xff]
          %v877 = vld [vmem:[#allocation2 + $0x80] sm:$0xff]
          %v878 = vld [vmem:[#allocation2 + $0x88] sm:$0xff]
          %v879 = vld [vmem:[#allocation2 + $0x90] sm:$0xff]
          %v880 = vpack.c.bf16 %v868, %v864
          %v881 = vpack.c.bf16 %v869, %v865
          %v882 = vpack.c.bf16 %v870, %v866
          %v883 = vpack.c.bf16 %v871, %v867
          %v884 = vpack.c.bf16 %v876, %v872
          %v885 = vpack.c.bf16 %v877, %v873
          %v886 = vpack.c.bf16 %v878, %v874
          %v887 = vpack.c.bf16 %v879, %v875
          %896 = vrot.lane.b32.xlu0 %v880, 17
          %v897 = vpop.permute.xlu0 %896
          %898 = vrot.lane.b32.xlu0 %v881, 17
          %v899 = vpop.permute.xlu0 %898
          %900 = vrot.lane.b32.xlu0 %v882, 17
          %v901 = vpop.permute.xlu0 %900
          %902 = vrot.lane.b32.xlu0 %v883, 17
          %v903 = vpop.permute.xlu0 %902
          %904 = vrot.lane.b32.xlu0 %v884, 17
          %v905 = vpop.permute.xlu0 %904
          %906 = vrot.lane.b32.xlu0 %v885, 17
          %v907 = vpop.permute.xlu0 %906
          %908 = vrot.lane.b32.xlu0 %v886, 17
          %v909 = vpop.permute.xlu0 %908
          %910 = vrot.lane.b32.xlu0 %v887, 17
          %v911 = vpop.permute.xlu0 %910
          %v912 = vsel %vm353, %v897, %v899
          %v913 = vsel %vm353, %v899, %v901
          %v914 = vsel %vm353, %v901, %v903
          %v915 = vsel %vm353, %v905, %v907
          %v916 = vsel %vm353, %v907, %v909
          %v917 = vsel %vm353, %v909, %v911
          %924 = vst [vmem:[#allocation4 + $0x60] sm:$0xff] %v912
          %925 = vst [vmem:[#allocation4 + $0x68] sm:$0xff] %v913
          %926 = vst.msk [vmem:[#allocation4 + $0x70] sm:$0xff] %vm272, %v914
          %927 = vst [vmem:[#allocation4 + $0x78] sm:$0xff] %v915
          %928 = vst [vmem:[#allocation4 + $0x80] sm:$0xff] %v916
          %929 = vst.msk [vmem:[#allocation4 + $0x88] sm:$0xff] %vm272, %v917
          %v930 = vld [vmem:[#allocation2] sm:$0xff]
          %v931 = vld [vmem:[#allocation2 + $0x8] sm:$0xff]
          %v932 = vld [vmem:[#allocation2 + $0x10] sm:$0xff]
          %v933 = vld [vmem:[#allocation2 + $0x18] sm:$0xff]
          %v934 = vld [vmem:[#allocation2 + $0x28] sm:$0xff]
          %v935 = vld [vmem:[#allocation2 + $0x30] sm:$0xff]
          %v936 = vld [vmem:[#allocation2 + $0x38] sm:$0xff]
          %v937 = vld [vmem:[#allocation2 + $0x40] sm:$0xff]
          %v938 = vld [vmem:[#allocation2 + $0x50] sm:$0xff]
          %v939 = vld [vmem:[#allocation2 + $0x58] sm:$0xff]
          %v940 = vld [vmem:[#allocation2 + $0x60] sm:$0xff]
          %v941 = vld [vmem:[#allocation2 + $0x68] sm:$0xff]
          %v942 = vld [vmem:[#allocation2 + $0x78] sm:$0xff]
          %v943 = vld [vmem:[#allocation2 + $0x80] sm:$0xff]
          %v944 = vld [vmem:[#allocation2 + $0x88] sm:$0xff]
          %v945 = vld [vmem:[#allocation2 + $0x90] sm:$0xff]
          %v946 = vpack.c.bf16 %v934, %v930
          %v947 = vpack.c.bf16 %v935, %v931
          %v948 = vpack.c.bf16 %v936, %v932
          %v949 = vpack.c.bf16 %v937, %v933
          %v950 = vpack.c.bf16 %v942, %v938
          %v951 = vpack.c.bf16 %v943, %v939
          %v952 = vpack.c.bf16 %v944, %v940
          %v953 = vpack.c.bf16 %v945, %v941
          %962 = vrot.lane.b32.xlu0 %v946, 1
          %v963 = vpop.permute.xlu0 %962
          %964 = vrot.lane.b32.xlu0 %v947, 1
          %v965 = vpop.permute.xlu0 %964
          %966 = vrot.lane.b32.xlu0 %v948, 1
          %v967 = vpop.permute.xlu0 %966
          %968 = vrot.lane.b32.xlu0 %v949, 1
          %v969 = vpop.permute.xlu0 %968
          %970 = vrot.lane.b32.xlu0 %v950, 1
          %v971 = vpop.permute.xlu0 %970
          %972 = vrot.lane.b32.xlu0 %v951, 1
          %v973 = vpop.permute.xlu0 %972
          %974 = vrot.lane.b32.xlu0 %v952, 1
          %v975 = vpop.permute.xlu0 %974
          %976 = vrot.lane.b32.xlu0 %v953, 1
          %v977 = vpop.permute.xlu0 %976
          %v978 = vsel %vm371, %v963, %v965
          %v979 = vsel %vm371, %v965, %v967
          %v980 = vsel %vm371, %v967, %v969
          %v981 = vsel %vm371, %v971, %v973
          %v982 = vsel %vm371, %v973, %v975
          %v983 = vsel %vm371, %v975, %v977
          %990 = vst [vmem:[#allocation4 + $0x90] sm:$0xff] %v978
          %991 = vst [vmem:[#allocation4 + $0x98] sm:$0xff] %v979
          %992 = vst.msk [vmem:[#allocation4 + $0xa0] sm:$0xff] %vm272, %v980
          %993 = vst [vmem:[#allocation4 + $0xa8] sm:$0xff] %v981
          %994 = vst [vmem:[#allocation4 + $0xb0] sm:$0xff] %v982
          %995 = vst.msk [vmem:[#allocation4 + $0xb8] sm:$0xff] %vm272, %v983
          %v996 = vld [vmem:[#allocation2 + $0x8] sm:$0xff]
          %v997 = vld [vmem:[#allocation2 + $0x10] sm:$0xff]
          %v998 = vld [vmem:[#allocation2 + $0x18] sm:$0xff]
          %v999 = vld [vmem:[#allocation2 + $0x30] sm:$0xff]
          %v1000 = vld [vmem:[#allocation2 + $0x38] sm:$0xff]
          %v1001 = vld [vmem:[#allocation2 + $0x40] sm:$0xff]
          %v1002 = vld [vmem:[#allocation2 + $0x58] sm:$0xff]
          %v1003 = vld [vmem:[#allocation2 + $0x60] sm:$0xff]
          %v1004 = vld [vmem:[#allocation2 + $0x68] sm:$0xff]
          %v1005 = vld [vmem:[#allocation2 + $0x80] sm:$0xff]
          %v1006 = vld [vmem:[#allocation2 + $0x88] sm:$0xff]
          %v1007 = vld [vmem:[#allocation2 + $0x90] sm:$0xff]
          %v1008 = vpack.c.bf16 %v999, %v996
          %v1009 = vpack.c.bf16 %v1000, %v997
          %v1010 = vpack.c.bf16 %v1001, %v998
          %v1011 = vpack.c.bf16 %v1005, %v1002
          %v1012 = vpack.c.bf16 %v1006, %v1003
          %v1013 = vpack.c.bf16 %v1007, %v1004
          %1014 = vst [vmem:[#allocation4 + $0xc0] sm:$0xff] %v1008
          %1015 = vst [vmem:[#allocation4 + $0xc8] sm:$0xff] %v1009
          %1016 = vst.msk [vmem:[#allocation4 + $0xd0] sm:$0xff] %vm272, %v1010
          %1017 = vst [vmem:[#allocation4 + $0xd8] sm:$0xff] %v1011
          %1018 = vst [vmem:[#allocation4 + $0xe0] sm:$0xff] %v1012
          %1019 = vst.msk [vmem:[#allocation4 + $0xe8] sm:$0xff] %vm272, %v1013
          %v1020 = vld [vmem:[#allocation2 + $0x8] sm:$0xff]
          %v1021 = vld [vmem:[#allocation2 + $0x10] sm:$0xff]
          %v1022 = vld [vmem:[#allocation2 + $0x18] sm:$0xff]
          %v1023 = vld [vmem:[#allocation2 + $0x30] sm:$0xff]
          %v1024 = vld [vmem:[#allocation2 + $0x38] sm:$0xff]
          %v1025 = vld [vmem:[#allocation2 + $0x40] sm:$0xff]
          %v1026 = vld [vmem:[#allocation2 + $0x58] sm:$0xff]
          %v1027 = vld [vmem:[#allocation2 + $0x60] sm:$0xff]
          %v1028 = vld [vmem:[#allocation2 + $0x68] sm:$0xff]
          %v1029 = vld [vmem:[#allocation2 + $0x80] sm:$0xff]
          %v1030 = vld [vmem:[#allocation2 + $0x88] sm:$0xff]
          %v1031 = vld [vmem:[#allocation2 + $0x90] sm:$0xff]
          %v1032 = vpack.c.bf16 %v1023, %v1020
          %v1033 = vpack.c.bf16 %v1024, %v1021
          %v1034 = vpack.c.bf16 %v1025, %v1022
          %v1035 = vpack.c.bf16 %v1029, %v1026
          %v1036 = vpack.c.bf16 %v1030, %v1027
          %v1037 = vpack.c.bf16 %v1031, %v1028
          %1044 = vrot.lane.b32.xlu0 %v1032, 127
          %v1045 = vpop.permute.xlu0 %1044
          %1046 = vrot.lane.b32.xlu0 %v1033, 127
          %v1047 = vpop.permute.xlu0 %1046
          %1048 = vrot.lane.b32.xlu0 %v1034, 127
          %v1049 = vpop.permute.xlu0 %1048
          %1050 = vrot.lane.b32.xlu0 %v1035, 127
          %v1051 = vpop.permute.xlu0 %1050
          %1052 = vrot.lane.b32.xlu0 %v1036, 127
          %v1053 = vpop.permute.xlu0 %1052
          %1054 = vrot.lane.b32.xlu0 %v1037, 127
          %v1055 = vpop.permute.xlu0 %1054
          %v1056 = vsel %vm390, %v1045, %v1047
          %v1057 = vsel %vm390, %v1047, %v1049
          %v1058 = vsel %vm390, %v1051, %v1053
          %v1059 = vsel %vm390, %v1053, %v1055
          %1066 = vst [vmem:[#allocation4 + $0xf0] sm:$0xff] %v1056
          %1067 = vst [vmem:[#allocation4 + $0xf8] sm:$0xff] %v1057
          %1068 = vst.msk [vmem:[#allocation4 + $0x100] sm:$0xff] %vm272, %v1049
          %1069 = vst [vmem:[#allocation4 + $0x108] sm:$0xff] %v1058
          %1070 = vst [vmem:[#allocation4 + $0x110] sm:$0xff] %v1059
          %1071 = vst.msk [vmem:[#allocation4 + $0x118] sm:$0xff] %vm272, %v1055
          %v1072 = vld [vmem:[#allocation2 + $0x8] sm:$0xff]
          %v1073 = vld [vmem:[#allocation2 + $0x10] sm:$0xff]
          %v1074 = vld [vmem:[#allocation2 + $0x18] sm:$0xff]
          %v1075 = vld [vmem:[#allocation2 + $0x30] sm:$0xff]
          %v1076 = vld [vmem:[#allocation2 + $0x38] sm:$0xff]
          %v1077 = vld [vmem:[#allocation2 + $0x40] sm:$0xff]
          %v1078 = vld [vmem:[#allocation2 + $0x58] sm:$0xff]
          %v1079 = vld [vmem:[#allocation2 + $0x60] sm:$0xff]
          %v1080 = vld [vmem:[#allocation2 + $0x68] sm:$0xff]
          %v1081 = vld [vmem:[#allocation2 + $0x80] sm:$0xff]
          %v1082 = vld [vmem:[#allocation2 + $0x88] sm:$0xff]
          %v1083 = vld [vmem:[#allocation2 + $0x90] sm:$0xff]
          %v1084 = vpack.c.bf16 %v1075, %v1072
          %v1085 = vpack.c.bf16 %v1076, %v1073
          %v1086 = vpack.c.bf16 %v1077, %v1074
          %v1087 = vpack.c.bf16 %v1081, %v1078
          %v1088 = vpack.c.bf16 %v1082, %v1079
          %v1089 = vpack.c.bf16 %v1083, %v1080
          %1096 = vrot.lane.b32.xlu0 %v1084, 111
          %v1097 = vpop.permute.xlu0 %1096
          %1098 = vrot.lane.b32.xlu0 %v1085, 111
          %v1099 = vpop.permute.xlu0 %1098
          %1100 = vrot.lane.b32.xlu0 %v1086, 111
          %v1101 = vpop.permute.xlu0 %1100
          %1102 = vrot.lane.b32.xlu0 %v1087, 111
          %v1103 = vpop.permute.xlu0 %1102
          %1104 = vrot.lane.b32.xlu0 %v1088, 111
          %v1105 = vpop.permute.xlu0 %1104
          %1106 = vrot.lane.b32.xlu0 %v1089, 111
          %v1107 = vpop.permute.xlu0 %1106
          %v1108 = vsel %vm405, %v1097, %v1099
          %v1109 = vsel %vm405, %v1099, %v1101
          %v1110 = vsel %vm405, %v1103, %v1105
          %v1111 = vsel %vm405, %v1105, %v1107
          %1118 = vst [vmem:[#allocation4 + $0x120] sm:$0xff] %v1108
          %1119 = vst [vmem:[#allocation4 + $0x128] sm:$0xff] %v1109
          %1120 = vst.msk [vmem:[#allocation4 + $0x130] sm:$0xff] %vm272, %v1101
          %1121 = vst [vmem:[#allocation4 + $0x138] sm:$0xff] %v1110
          %1122 = vst [vmem:[#allocation4 + $0x140] sm:$0xff] %v1111
          %1123 = vst.msk [vmem:[#allocation4 + $0x148] sm:$0xff] %vm272, %v1107
          %v1124 = vld [vmem:[#allocation2 + $0x8] sm:$0xff]
          %v1125 = vld [vmem:[#allocation2 + $0x10] sm:$0xff]
          %v1126 = vld [vmem:[#allocation2 + $0x18] sm:$0xff]
          %v1127 = vld [vmem:[#allocation2 + $0x30] sm:$0xff]
          %v1128 = vld [vmem:[#allocation2 + $0x38] sm:$0xff]
          %v1129 = vld [vmem:[#allocation2 + $0x40] sm:$0xff]
          %v1130 = vld [vmem:[#allocation2 + $0x58] sm:$0xff]
          %v1131 = vld [vmem:[#allocation2 + $0x60] sm:$0xff]
          %v1132 = vld [vmem:[#allocation2 + $0x68] sm:$0xff]
          %v1133 = vld [vmem:[#allocation2 + $0x80] sm:$0xff]
          %v1134 = vld [vmem:[#allocation2 + $0x88] sm:$0xff]
          %v1135 = vld [vmem:[#allocation2 + $0x90] sm:$0xff]
          %v1136 = vpack.c.bf16 %v1127, %v1124
          %v1137 = vpack.c.bf16 %v1128, %v1125
          %v1138 = vpack.c.bf16 %v1129, %v1126
          %v1139 = vpack.c.bf16 %v1133, %v1130
          %v1140 = vpack.c.bf16 %v1134, %v1131
          %v1141 = vpack.c.bf16 %v1135, %v1132
          %1148 = vrot.lane.b32.xlu0 %v1136, 110
          %v1149 = vpop.permute.xlu0 %1148
          %1150 = vrot.lane.b32.xlu0 %v1137, 110
          %v1151 = vpop.permute.xlu0 %1150
          %1152 = vrot.lane.b32.xlu0 %v1138, 110
          %v1153 = vpop.permute.xlu0 %1152
          %1154 = vrot.lane.b32.xlu0 %v1139, 110
          %v1155 = vpop.permute.xlu0 %1154
          %1156 = vrot.lane.b32.xlu0 %v1140, 110
          %v1157 = vpop.permute.xlu0 %1156
          %1158 = vrot.lane.b32.xlu0 %v1141, 110
          %v1159 = vpop.permute.xlu0 %1158
          %v1160 = vsel %vm420, %v1149, %v1151
          %v1161 = vsel %vm420, %v1151, %v1153
          %v1162 = vsel %vm420, %v1155, %v1157
          %v1163 = vsel %vm420, %v1157, %v1159
          %1170 = vst [vmem:[#allocation4 + $0x150] sm:$0xff] %v1160
          %1171 = vst [vmem:[#allocation4 + $0x158] sm:$0xff] %v1161
          %1172 = vst.msk [vmem:[#allocation4 + $0x160] sm:$0xff] %vm272, %v1153
          %1173 = vst [vmem:[#allocation4 + $0x168] sm:$0xff] %v1162
          %1174 = vst [vmem:[#allocation4 + $0x170] sm:$0xff] %v1163
          %1175 = vst.msk [vmem:[#allocation4 + $0x178] sm:$0xff] %vm272, %v1159
          %v1176 = vld [vmem:[#allocation2 + $0x8] sm:$0xff]
          %v1177 = vld [vmem:[#allocation2 + $0x10] sm:$0xff]
          %v1178 = vld [vmem:[#allocation2 + $0x18] sm:$0xff]
          %v1179 = vld [vmem:[#allocation2 + $0x30] sm:$0xff]
          %v1180 = vld [vmem:[#allocation2 + $0x38] sm:$0xff]
          %v1181 = vld [vmem:[#allocation2 + $0x40] sm:$0xff]
          %v1182 = vld [vmem:[#allocation2 + $0x58] sm:$0xff]
          %v1183 = vld [vmem:[#allocation2 + $0x60] sm:$0xff]
          %v1184 = vld [vmem:[#allocation2 + $0x68] sm:$0xff]
          %v1185 = vld [vmem:[#allocation2 + $0x80] sm:$0xff]
          %v1186 = vld [vmem:[#allocation2 + $0x88] sm:$0xff]
          %v1187 = vld [vmem:[#allocation2 + $0x90] sm:$0xff]
          %v1188 = vpack.c.bf16 %v1179, %v1176
          %v1189 = vpack.c.bf16 %v1180, %v1177
          %v1190 = vpack.c.bf16 %v1181, %v1178
          %v1191 = vpack.c.bf16 %v1185, %v1182
          %v1192 = vpack.c.bf16 %v1186, %v1183
          %v1193 = vpack.c.bf16 %v1187, %v1184
          %1200 = vrot.lane.b32.xlu0 %v1188, 109
          %v1201 = vpop.permute.xlu0 %1200
          %1202 = vrot.lane.b32.xlu0 %v1189, 109
          %v1203 = vpop.permute.xlu0 %1202
          %1204 = vrot.lane.b32.xlu0 %v1190, 109
          %v1205 = vpop.permute.xlu0 %1204
          %1206 = vrot.lane.b32.xlu0 %v1191, 109
          %v1207 = vpop.permute.xlu0 %1206
          %1208 = vrot.lane.b32.xlu0 %v1192, 109
          %v1209 = vpop.permute.xlu0 %1208
          %1210 = vrot.lane.b32.xlu0 %v1193, 109
          %v1211 = vpop.permute.xlu0 %1210
          %v1212 = vsel %vm435, %v1201, %v1203
          %v1213 = vsel %vm435, %v1203, %v1205
          %v1214 = vsel %vm435, %v1207, %v1209
          %v1215 = vsel %vm435, %v1209, %v1211
          %1222 = vst [vmem:[#allocation4 + $0x180] sm:$0xff] %v1212
          %1223 = vst [vmem:[#allocation4 + $0x188] sm:$0xff] %v1213
          %1224 = vst.msk [vmem:[#allocation4 + $0x190] sm:$0xff] %vm272, %v1205
          %1225 = vst [vmem:[#allocation4 + $0x198] sm:$0xff] %v1214
          %1226 = vst [vmem:[#allocation4 + $0x1a0] sm:$0xff] %v1215
          %1227 = vst.msk [vmem:[#allocation4 + $0x1a8] sm:$0xff] %vm272, %v1211
          %v1228 = vld [vmem:[#allocation4] sm:$0xff]
          %v1229 = vld [vmem:[#allocation4 + $0x8] sm:$0xff]
          %v1230 = vld [vmem:[#allocation4 + $0x10] sm:$0xff]
          %v1231 = vld [vmem:[#allocation4 + $0x18] sm:$0xff]
          %v1232 = vld [vmem:[#allocation4 + $0x20] sm:$0xff]
          %v1233 = vld [vmem:[#allocation4 + $0x28] sm:$0xff]
          %v1234 = vld [vmem:[#allocation4 + $0x30] sm:$0xff]
          %v1235 = vld [vmem:[#allocation4 + $0x38] sm:$0xff]
          %v1236 = vld [vmem:[#allocation4 + $0x40] sm:$0xff]
          %v1237 = vld [vmem:[#allocation4 + $0x48] sm:$0xff]
          %v1238 = vld [vmem:[#allocation4 + $0x50] sm:$0xff]
          %v1239 = vld [vmem:[#allocation4 + $0x58] sm:$0xff]
          %v1240 = vld [vmem:[#allocation4 + $0x60] sm:$0xff]
          %v1241 = vld [vmem:[#allocation4 + $0x68] sm:$0xff]
          %v1242 = vld [vmem:[#allocation4 + $0x70] sm:$0xff]
          %v1243 = vld [vmem:[#allocation4 + $0x78] sm:$0xff]
          %v1244 = vld [vmem:[#allocation4 + $0x80] sm:$0xff]
          %v1245 = vld [vmem:[#allocation4 + $0x88] sm:$0xff]
          %v1246 = vld [vmem:[#allocation4 + $0x90] sm:$0xff]
          %v1247 = vld [vmem:[#allocation4 + $0x98] sm:$0xff]
          %v1248 = vld [vmem:[#allocation4 + $0xa0] sm:$0xff]
          %v1249 = vld [vmem:[#allocation4 + $0xa8] sm:$0xff]
          %v1250 = vld [vmem:[#allocation4 + $0xb0] sm:$0xff]
          %v1251 = vld [vmem:[#allocation4 + $0xb8] sm:$0xff]
          %v1252 = vld [vmem:[#allocation4 + $0xc0] sm:$0xff]
          %v1253 = vld [vmem:[#allocation4 + $0xc8] sm:$0xff]
          %v1254 = vld [vmem:[#allocation4 + $0xd0] sm:$0xff]
          %v1255 = vld [vmem:[#allocation4 + $0xd8] sm:$0xff]
          %v1256 = vld [vmem:[#allocation4 + $0xe0] sm:$0xff]
          %v1257 = vld [vmem:[#allocation4 + $0xe8] sm:$0xff]
          %v1258 = vld [vmem:[#allocation4 + $0xf0] sm:$0xff]
          %v1259 = vld [vmem:[#allocation4 + $0xf8] sm:$0xff]
          %v1260 = vld [vmem:[#allocation4 + $0x100] sm:$0xff]
          %v1261 = vld [vmem:[#allocation4 + $0x108] sm:$0xff]
          %v1262 = vld [vmem:[#allocation4 + $0x110] sm:$0xff]
          %v1263 = vld [vmem:[#allocation4 + $0x118] sm:$0xff]
          %v1264 = vld [vmem:[#allocation4 + $0x120] sm:$0xff]
          %v1265 = vld [vmem:[#allocation4 + $0x128] sm:$0xff]
          %v1266 = vld [vmem:[#allocation4 + $0x130] sm:$0xff]
          %v1267 = vld [vmem:[#allocation4 + $0x138] sm:$0xff]
          %v1268 = vld [vmem:[#allocation4 + $0x140] sm:$0xff]
          %v1269 = vld [vmem:[#allocation4 + $0x148] sm:$0xff]
          %v1270 = vld [vmem:[#allocation4 + $0x150] sm:$0xff]
          %v1271 = vld [vmem:[#allocation4 + $0x158] sm:$0xff]
          %v1272 = vld [vmem:[#allocation4 + $0x160] sm:$0xff]
          %v1273 = vld [vmem:[#allocation4 + $0x168] sm:$0xff]
          %v1274 = vld [vmem:[#allocation4 + $0x170] sm:$0xff]
          %v1275 = vld [vmem:[#allocation4 + $0x178] sm:$0xff]
          %v1276 = vld [vmem:[#allocation4 + $0x180] sm:$0xff]
          %v1277 = vld [vmem:[#allocation4 + $0x188] sm:$0xff]
          %v1278 = vld [vmem:[#allocation4 + $0x190] sm:$0xff]
          %v1279 = vld [vmem:[#allocation4 + $0x198] sm:$0xff]
          %v1280 = vld [vmem:[#allocation4 + $0x1a0] sm:$0xff]
          %v1281 = vld [vmem:[#allocation4 + $0x1a8] sm:$0xff]
          %1283 = vset.pattern.permute.xlu0 0
          %1284 = vperm.xlu0 %1283, %v710
          %v1285 = vpop.permute.xlu0 %1284
          %1288 = vset.pattern.permute.xlu0 0
          %1289 = vperm.xlu0 %1288, %v711
          %v1290 = vpop.permute.xlu0 %1289
          %1293 = vset.pattern.permute.xlu0 0
          %1294 = vperm.xlu0 %1293, %v712
          %v1295 = vpop.permute.xlu0 %1294
          %1298 = vset.pattern.permute.xlu0 0
          %1299 = vperm.xlu0 %1298, %v713
          %v1300 = vpop.permute.xlu0 %1299
          %v1310 = vunpack.c.l.b16 %v700
          %v1311 = vunpack.c.h.b16 %v700
          %v1312 = vunpack.c.l.b16 %v701
          %v1313 = vunpack.c.l.b16 %v702
          %v1314 = vunpack.c.h.b16 %v702
          %v1315 = vunpack.c.l.b16 %v703
          %v1316 = vunpack.c.l.b16 %v704
          %v1317 = vunpack.c.h.b16 %v704
          %v1318 = vunpack.c.l.b16 %v705
          %v1319 = vunpack.c.l.b16 %v706
          %v1320 = vunpack.c.h.b16 %v706
          %v1321 = vunpack.c.l.b16 %v707
          %v1322 = vpack.c.b16 %v1313, %v1310
          %v1323 = vpack.c.b16 %v1314, %v1311
          %v1324 = vpack.c.b16 %v1315, %v1312
          %v1325 = vpack.c.b16 %v1319, %v1316
          %v1326 = vpack.c.b16 %v1320, %v1317
          %v1327 = vpack.c.b16 %v1321, %v1318
          %vm1332 = vcmask 261120
          %v1334 = vsel %vm1332, %v1324, 0
          %v1337 = vsel %vm1332, %v1327, 0
          %1339 = vmatprep.subr.bf16.mxu0 %v1229
          %1340 = vmatpush1.bf16.msra.mxu0 %v1228
          %1341 = vmatprep.subr.bf16.mxu0 %v1232
          %1342 = vmatpush1.bf16.msra.mxu0 %v1231
          %1343 = vmatprep.subr.bf16.mxu0 %v1235
          %1344 = vmatpush1.bf16.msra.mxu0 %v1234
          %1345 = vmatprep.subr.bf16.mxu0 %v1238
          %1346 = vmatpush1.bf16.msra.mxu0 %v1237
          %1347 = vmatprep.subr.bf16.mxu0 %v1241
          %1348 = vmatpush1.bf16.msra.mxu0 %v1240
          %1349 = vmatprep.subr.bf16.mxu0 %v1244
          %1350 = vmatpush1.bf16.msra.mxu0 %v1243
          %1351 = vmatprep.subr.bf16.mxu0 %v1247
          %1352 = vmatpush1.bf16.msra.mxu0 %v1246
          %1353 = vmatprep.subr.bf16.mxu0 %v1250
          %1354 = vmatpush1.bf16.msra.mxu0 %v1249
          %1355 = vmatprep.subr.bf16.mxu0 %v1253
          %1356 = vmatpush1.bf16.msra.mxu0 %v1252
          %1357 = vmatprep.subr.bf16.mxu0 %v1256
          %1358 = vmatpush1.bf16.msra.mxu0 %v1255
          %1359 = vmatprep.subr.bf16.mxu0 %v1259
          %1360 = vmatpush1.bf16.msra.mxu0 %v1258
          %1361 = vmatprep.subr.bf16.mxu0 %v1262
          %1362 = vmatpush1.bf16.msra.mxu0 %v1261
          %1363 = vmatprep.subr.bf16.mxu0 %v1265
          %1364 = vmatpush1.bf16.msra.mxu0 %v1264
          %1365 = vmatprep.subr.bf16.mxu0 %v1268
          %1366 = vmatpush1.bf16.msra.mxu0 %v1267
          %1367 = vmatprep.subr.bf16.mxu0 %v1271
          %1368 = vmatpush1.bf16.msra.mxu0 %v1270
          %1369 = vmatprep.subr.bf16.mxu0 %v1274
          %1370 = vmatpush1.bf16.msra.mxu0 %v1273
          %1371 = vmatprep.mubr.bf16.mxu0 %v1323
          %1372 = vmatmul.mubr.bf16.gmra.mrb[0].mxu0 %v1322
          %v1373 = vpop.f32.mrb[0].mxu0
          %v1374 = vadd.f32 %v1285, %v1373
          %v1375 = vpop.f32.mrb[0].mxu0
          %v1376 = vadd.f32 %v1285, %v1375
          %v1377 = vpop.f32.mrb[0].mxu0
          %v1378 = vadd.f32 %v1290, %v1377
          %v1379 = vpop.f32.mrb[0].mxu0
          %v1380 = vadd.f32 %v1290, %v1379
          %1381 = vmatprep.mubr.bf16.mxu0 %v1326
          %1382 = vmatmul.mubr.bf16.gmra.mrb[0].mxu0 %v1325
          %v1383 = vpop.f32.mrb[0].mxu0
          %v1384 = vadd.f32 %v1295, %v1383
          %v1385 = vpop.f32.mrb[0].mxu0
          %v1386 = vadd.f32 %v1295, %v1385
          %v1387 = vpop.f32.mrb[0].mxu0
          %v1388 = vadd.f32 %v1300, %v1387
          %v1389 = vpop.f32.mrb[0].mxu0
          %v1390 = vadd.f32 %v1300, %v1389
          %1391 = vdwg.mxu0
          %1392 = vmatprep.subr.bf16.mxu0 %v1277
          %1393 = vmatpush1.bf16.msra.mxu0 %v1276
          %1394 = vmatprep.subr.bf16.mxu0 %v1280
          %1395 = vmatpush1.bf16.msra.mxu0 %v1279
          %1396 = vmatprep.subr.bf16.mxu0 0
          %1397 = vmatpush1.bf16.msra.mxu0 0
          %1398 = vmatprep.subr.bf16.mxu0 0
          %1399 = vmatpush1.bf16.msra.mxu0 0
          %1400 = vmatprep.subr.bf16.mxu0 0
          %1401 = vmatpush1.bf16.msra.mxu0 0
          %1402 = vmatprep.subr.bf16.mxu0 0
          %1403 = vmatpush1.bf16.msra.mxu0 0
          %1404 = vmatprep.subr.bf16.mxu0 0
          %1405 = vmatpush1.bf16.msra.mxu0 0
          %1406 = vmatprep.subr.bf16.mxu0 0
          %1407 = vmatpush1.bf16.msra.mxu0 0
          %1408 = vmatprep.subr.bf16.mxu0 0
          %1409 = vmatpush1.bf16.msra.mxu0 0
          %1410 = vmatprep.subr.bf16.mxu0 0
          %1411 = vmatpush1.bf16.msra.mxu0 0
          %1412 = vmatprep.subr.bf16.mxu0 0
          %1413 = vmatpush1.bf16.msra.mxu0 0
          %1414 = vmatprep.subr.bf16.mxu0 0
          %1415 = vmatpush1.bf16.msra.mxu0 0
          %1416 = vmatprep.subr.bf16.mxu0 0
          %1417 = vmatpush1.bf16.msra.mxu0 0
          %1418 = vmatprep.subr.bf16.mxu0 0
          %1419 = vmatpush1.bf16.msra.mxu0 0
          %1420 = vmatprep.subr.bf16.mxu0 0
          %1421 = vmatpush1.bf16.msra.mxu0 0
          %1422 = vmatprep.subr.bf16.mxu0 0
          %1423 = vmatpush1.bf16.msra.mxu0 0
          %1424 = vmatprep.mubr.bf16.mxu0 0
          %1425 = vmatmul.mubr.bf16.gmra.mrb[0].mxu0 %v1334
          %v1426 = vpop.f32.mrb[0].mxu0
          %v1427 = vadd.f32 %v1374, %v1426
          %v1428 = vpop.f32.mrb[0].mxu0
          %v1429 = vadd.f32 %v1376, %v1428
          %v1430 = vpop.f32.mrb[0].mxu0
          %v1431 = vadd.f32 %v1378, %v1430
          %v1432 = vpop.f32.mrb[0].mxu0
          %v1433 = vadd.f32 %v1380, %v1432
          %1434 = vmatprep.mubr.bf16.mxu0 0
          %1435 = vmatmul.mubr.bf16.gmra.mrb[0].mxu0 %v1337
          %v1436 = vpop.f32.mrb[0].mxu0
          %v1437 = vadd.f32 %v1384, %v1436
          %v1438 = vpop.f32.mrb[0].mxu0
          %v1439 = vadd.f32 %v1386, %v1438
          %v1440 = vpop.f32.mrb[0].mxu0
          %v1441 = vadd.f32 %v1388, %v1440
          %v1442 = vpop.f32.mrb[0].mxu0
          %v1443 = vadd.f32 %v1390, %v1442
          %1444 = vdwg.mxu0
          %1445 = vmatprep.subr.bf16.mxu0 0
          %1446 = vmatpush1.bf16.msra.mxu0 %v1230
          %1447 = vmatprep.subr.bf16.mxu0 0
          %1448 = vmatpush1.bf16.msra.mxu0 %v1233
          %1449 = vmatprep.subr.bf16.mxu0 0
          %1450 = vmatpush1.bf16.msra.mxu0 %v1236
          %1451 = vmatprep.subr.bf16.mxu0 0
          %1452 = vmatpush1.bf16.msra.mxu0 %v1239
          %1453 = vmatprep.subr.bf16.mxu0 0
          %1454 = vmatpush1.bf16.msra.mxu0 %v1242
          %1455 = vmatprep.subr.bf16.mxu0 0
          %1456 = vmatpush1.bf16.msra.mxu0 %v1245
          %1457 = vmatprep.subr.bf16.mxu0 0
          %1458 = vmatpush1.bf16.msra.mxu0 %v1248
          %1459 = vmatprep.subr.bf16.mxu0 0
          %1460 = vmatpush1.bf16.msra.mxu0 %v1251
          %1461 = vmatprep.subr.bf16.mxu0 0
          %1462 = vmatpush1.bf16.msra.mxu0 %v1254
          %1463 = vmatprep.subr.bf16.mxu0 0
          %1464 = vmatpush1.bf16.msra.mxu0 %v1257
          %1465 = vmatprep.subr.bf16.mxu0 0
          %1466 = vmatpush1.bf16.msra.mxu0 %v1260
          %1467 = vmatprep.subr.bf16.mxu0 0
          %1468 = vmatpush1.bf16.msra.mxu0 %v1263
          %1469 = vmatprep.subr.bf16.mxu0 0
          %1470 = vmatpush1.bf16.msra.mxu0 %v1266
          %1471 = vmatprep.subr.bf16.mxu0 0
          %1472 = vmatpush1.bf16.msra.mxu0 %v1269
          %1473 = vmatprep.subr.bf16.mxu0 0
          %1474 = vmatpush1.bf16.msra.mxu0 %v1272
          %1475 = vmatprep.subr.bf16.mxu0 0
          %1476 = vmatpush1.bf16.msra.mxu0 %v1275
          %1477 = vmatprep.mubr.bf16.mxu0 %v1323
          %1478 = vmatmul.mubr.bf16.gmra.mrb[0].mxu0 %v1322
          %v1479 = vpop.f32.mrb[0].mxu0
          %v1480 = vadd.f32 %v1285, %v1479
          %v1481 = vpop.f32.mrb[0].mxu0
          %v1482 = vpop.f32.mrb[0].mxu0
          %v1483 = vadd.f32 %v1290, %v1482
          %v1484 = vpop.f32.mrb[0].mxu0
          %1485 = vmatprep.mubr.bf16.mxu0 %v1326
          %1486 = vmatmul.mubr.bf16.gmra.mrb[0].mxu0 %v1325
          %v1487 = vpop.f32.mrb[0].mxu0
          %v1488 = vadd.f32 %v1295, %v1487
          %v1489 = vpop.f32.mrb[0].mxu0
          %v1490 = vpop.f32.mrb[0].mxu0
          %v1491 = vadd.f32 %v1300, %v1490
          %v1492 = vpop.f32.mrb[0].mxu0
          %1493 = vdwg.mxu0
          %1494 = vmatprep.subr.bf16.mxu0 0
          %1495 = vmatpush1.bf16.msra.mxu0 %v1278
          %1496 = vmatprep.subr.bf16.mxu0 0
          %1497 = vmatpush1.bf16.msra.mxu0 %v1281
          %1498 = vmatprep.subr.bf16.mxu0 0
          %1499 = vmatpush1.bf16.msra.mxu0 0
          %1500 = vmatprep.subr.bf16.mxu0 0
          %1501 = vmatpush1.bf16.msra.mxu0 0
          %1502 = vmatprep.subr.bf16.mxu0 0
          %1503 = vmatpush1.bf16.msra.mxu0 0
          %1504 = vmatprep.subr.bf16.mxu0 0
          %1505 = vmatpush1.bf16.msra.mxu0 0
          %1506 = vmatprep.subr.bf16.mxu0 0
          %1507 = vmatpush1.bf16.msra.mxu0 0
          %1508 = vmatprep.subr.bf16.mxu0 0
          %1509 = vmatpush1.bf16.msra.mxu0 0
          %1510 = vmatprep.subr.bf16.mxu0 0
          %1511 = vmatpush1.bf16.msra.mxu0 0
          %1512 = vmatprep.subr.bf16.mxu0 0
          %1513 = vmatpush1.bf16.msra.mxu0 0
          %1514 = vmatprep.subr.bf16.mxu0 0
          %1515 = vmatpush1.bf16.msra.mxu0 0
          %1516 = vmatprep.subr.bf16.mxu0 0
          %1517 = vmatpush1.bf16.msra.mxu0 0
          %1518 = vmatprep.subr.bf16.mxu0 0
          %1519 = vmatpush1.bf16.msra.mxu0 0
          %1520 = vmatprep.subr.bf16.mxu0 0
          %1521 = vmatpush1.bf16.msra.mxu0 0
          %1522 = vmatprep.subr.bf16.mxu0 0
          %1523 = vmatpush1.bf16.msra.mxu0 0
          %1524 = vmatprep.subr.bf16.mxu0 0
          %1525 = vmatpush1.bf16.msra.mxu0 0
          %1526 = vmatprep.mubr.bf16.mxu0 0
          %1527 = vmatmul.mubr.bf16.gmra.mrb[0].mxu0 %v1334
          %v1528 = vpop.f32.mrb[0].mxu0
          %v1529 = vadd.f32 %v1480, %v1528
          %v1530 = vpop.f32.mrb[0].mxu0
          %v1531 = vpop.f32.mrb[0].mxu0
          %v1532 = vadd.f32 %v1483, %v1531
          %v1533 = vpop.f32.mrb[0].mxu0
          %1534 = vmatprep.mubr.bf16.mxu0 0
          %1535 = vmatmul.mubr.bf16.gmra.mrb[0].mxu0 %v1337
          %v1536 = vpop.f32.mrb[0].mxu0
          %v1537 = vadd.f32 %v1488, %v1536
          %v1538 = vpop.f32.mrb[0].mxu0
          %v1539 = vpop.f32.mrb[0].mxu0
          %v1540 = vadd.f32 %v1491, %v1539
          %v1541 = vpop.f32.mrb[0].mxu0
          %1542 = vdwg.mxu0
          %v1543 = vmax.f32 %v1427, 0.0
          %v1544 = vmax.f32 %v1429, 0.0
          %v1545 = vmax.f32 %v1529, 0.0
          %v1546 = vmax.f32 %v1431, 0.0
          %v1547 = vmax.f32 %v1433, 0.0
          %v1548 = vmax.f32 %v1532, 0.0
          %v1549 = vmax.f32 %v1437, 0.0
          %v1550 = vmax.f32 %v1439, 0.0
          %v1551 = vmax.f32 %v1537, 0.0
          %v1552 = vmax.f32 %v1441, 0.0
          %v1553 = vmax.f32 %v1443, 0.0
          %v1554 = vmax.f32 %v1540, 0.0
          %v1555 = vmul.f32 %v642, %v1543
          %v1556 = vmul.f32 %v646, %v1544
          %v1557 = vmul.f32 %v650, %v1545
          %v1558 = vmul.f32 %v642, %v1546
          %v1559 = vmul.f32 %v646, %v1547
          %v1560 = vmul.f32 %v650, %v1548
          %v1561 = vmul.f32 %v642, %v1549
          %v1562 = vmul.f32 %v646, %v1550
          %v1563 = vmul.f32 %v650, %v1551
          %v1564 = vmul.f32 %v642, %v1552
          %v1565 = vmul.f32 %v646, %v1553
          %v1566 = vmul.f32 %v650, %v1554
          %1567 = vst [vmem:[#allocation3 + $0x8] sm:$0xff] %v1555
          %1568 = vst [vmem:[#allocation3 + $0x10] sm:$0xff] %v1556
          %1569 = vst.msk [vmem:[#allocation3 + $0x18] sm:$0xff] %vm272, %v1557
          %1570 = vst [vmem:[#allocation3 + $0x30] sm:$0xff] %v1558
          %1571 = vst [vmem:[#allocation3 + $0x38] sm:$0xff] %v1559
          %1572 = vst.msk [vmem:[#allocation3 + $0x40] sm:$0xff] %vm272, %v1560
          %1573 = vst [vmem:[#allocation3 + $0x58] sm:$0xff] %v1561
          %1574 = vst [vmem:[#allocation3 + $0x60] sm:$0xff] %v1562
          %1575 = vst.msk [vmem:[#allocation3 + $0x68] sm:$0xff] %vm272, %v1563
          %1576 = vst [vmem:[#allocation3 + $0x80] sm:$0xff] %v1564
          %1577 = vst [vmem:[#allocation3 + $0x88] sm:$0xff] %v1565
          %1578 = vst.msk [vmem:[#allocation3 + $0x90] sm:$0xff] %vm272, %v1566
          %v1579 = vld [vmem:[#allocation3] sm:$0xff]
          %v1580 = vld [vmem:[#allocation3 + $0x8] sm:$0xff]
          %v1581 = vld [vmem:[#allocation3 + $0x10] sm:$0xff]
          %v1582 = vld [vmem:[#allocation3 + $0x18] sm:$0xff]
          %v1583 = vld [vmem:[#allocation3 + $0x28] sm:$0xff]
          %v1584 = vld [vmem:[#allocation3 + $0x30] sm:$0xff]
          %v1585 = vld [vmem:[#allocation3 + $0x38] sm:$0xff]
          %v1586 = vld [vmem:[#allocation3 + $0x40] sm:$0xff]
          %v1587 = vld [vmem:[#allocation3 + $0x50] sm:$0xff]
          %v1588 = vld [vmem:[#allocation3 + $0x58] sm:$0xff]
          %v1589 = vld [vmem:[#allocation3 + $0x60] sm:$0xff]
          %v1590 = vld [vmem:[#allocation3 + $0x68] sm:$0xff]
          %v1591 = vld [vmem:[#allocation3 + $0x78] sm:$0xff]
          %v1592 = vld [vmem:[#allocation3 + $0x80] sm:$0xff]
          %v1593 = vld [vmem:[#allocation3 + $0x88] sm:$0xff]
          %v1594 = vld [vmem:[#allocation3 + $0x90] sm:$0xff]
          %v1595 = vpack.c.bf16 %v1583, %v1579
          %v1596 = vpack.c.bf16 %v1584, %v1580
          %v1597 = vpack.c.bf16 %v1585, %v1581
          %v1598 = vpack.c.bf16 %v1586, %v1582
          %v1599 = vpack.c.bf16 %v1591, %v1587
          %v1600 = vpack.c.bf16 %v1592, %v1588
          %v1601 = vpack.c.bf16 %v1593, %v1589
          %v1602 = vpack.c.bf16 %v1594, %v1590
          %1611 = vrot.lane.b32.xlu0 %v1595, 19
          %v1612 = vpop.permute.xlu0 %1611
          %1613 = vrot.lane.b32.xlu0 %v1596, 19
          %v1614 = vpop.permute.xlu0 %1613
          %1615 = vrot.lane.b32.xlu0 %v1597, 19
          %v1616 = vpop.permute.xlu0 %1615
          %1617 = vrot.lane.b32.xlu0 %v1598, 19
          %v1618 = vpop.permute.xlu0 %1617
          %1619 = vrot.lane.b32.xlu0 %v1599, 19
          %v1620 = vpop.permute.xlu0 %1619
          %1621 = vrot.lane.b32.xlu0 %v1600, 19
          %v1622 = vpop.permute.xlu0 %1621
          %1623 = vrot.lane.b32.xlu0 %v1601, 19
          %v1624 = vpop.permute.xlu0 %1623
          %1625 = vrot.lane.b32.xlu0 %v1602, 19
          %v1626 = vpop.permute.xlu0 %1625
          %v1627 = vsel %vm317, %v1612, %v1614
          %v1628 = vsel %vm317, %v1614, %v1616
          %v1629 = vsel %vm317, %v1616, %v1618
          %v1630 = vsel %vm317, %v1620, %v1622
          %v1631 = vsel %vm317, %v1622, %v1624
          %v1632 = vsel %vm317, %v1624, %v1626
          %1639 = vst [vmem:[#allocation4] sm:$0xff] %v1627
          %1640 = vst [vmem:[#allocation4 + $0x8] sm:$0xff] %v1628
          %1641 = vst.msk [vmem:[#allocation4 + $0x10] sm:$0xff] %vm272, %v1629
          %1642 = vst [vmem:[#allocation4 + $0x18] sm:$0xff] %v1630
          %1643 = vst [vmem:[#allocation4 + $0x20] sm:$0xff] %v1631
          %1644 = vst.msk [vmem:[#allocation4 + $0x28] sm:$0xff] %vm272, %v1632
          %v1645 = vld [vmem:[#allocation3] sm:$0xff]
          %v1646 = vld [vmem:[#allocation3 + $0x8] sm:$0xff]
          %v1647 = vld [vmem:[#allocation3 + $0x10] sm:$0xff]
          %v1648 = vld [vmem:[#allocation3 + $0x18] sm:$0xff]
          %v1649 = vld [vmem:[#allocation3 + $0x28] sm:$0xff]
          %v1650 = vld [vmem:[#allocation3 + $0x30] sm:$0xff]
          %v1651 = vld [vmem:[#allocation3 + $0x38] sm:$0xff]
          %v1652 = vld [vmem:[#allocation3 + $0x40] sm:$0xff]
          %v1653 = vld [vmem:[#allocation3 + $0x50] sm:$0xff]
          %v1654 = vld [vmem:[#allocation3 + $0x58] sm:$0xff]
          %v1655 = vld [vmem:[#allocation3 + $0x60] sm:$0xff]
          %v1656 = vld [vmem:[#allocation3 + $0x68] sm:$0xff]
          %v1657 = vld [vmem:[#allocation3 + $0x78] sm:$0xff]
          %v1658 = vld [vmem:[#allocation3 + $0x80] sm:$0xff]
          %v1659 = vld [vmem:[#allocation3 + $0x88] sm:$0xff]
          %v1660 = vld [vmem:[#allocation3 + $0x90] sm:$0xff]
          %v1661 = vpack.c.bf16 %v1649, %v1645
          %v1662 = vpack.c.bf16 %v1650, %v1646
          %v1663 = vpack.c.bf16 %v1651, %v1647
          %v1664 = vpack.c.bf16 %v1652, %v1648
          %v1665 = vpack.c.bf16 %v1657, %v1653
          %v1666 = vpack.c.bf16 %v1658, %v1654
          %v1667 = vpack.c.bf16 %v1659, %v1655
          %v1668 = vpack.c.bf16 %v1660, %v1656
          %1677 = vrot.lane.b32.xlu0 %v1661, 18
          %v1678 = vpop.permute.xlu0 %1677
          %1679 = vrot.lane.b32.xlu0 %v1662, 18
          %v1680 = vpop.permute.xlu0 %1679
          %1681 = vrot.lane.b32.xlu0 %v1663, 18
          %v1682 = vpop.permute.xlu0 %1681
          %1683 = vrot.lane.b32.xlu0 %v1664, 18
          %v1684 = vpop.permute.xlu0 %1683
          %1685 = vrot.lane.b32.xlu0 %v1665, 18
          %v1686 = vpop.permute.xlu0 %1685
          %1687 = vrot.lane.b32.xlu0 %v1666, 18
          %v1688 = vpop.permute.xlu0 %1687
          %1689 = vrot.lane.b32.xlu0 %v1667, 18
          %v1690 = vpop.permute.xlu0 %1689
          %1691 = vrot.lane.b32.xlu0 %v1668, 18
          %v1692 = vpop.permute.xlu0 %1691
          %v1693 = vsel %vm335, %v1678, %v1680
          %v1694 = vsel %vm335, %v1680, %v1682
          %v1695 = vsel %vm335, %v1682, %v1684
          %v1696 = vsel %vm335, %v1686, %v1688
          %v1697 = vsel %vm335, %v1688, %v1690
          %v1698 = vsel %vm335, %v1690, %v1692
          %1705 = vst [vmem:[#allocation4 + $0x30] sm:$0xff] %v1693
          %1706 = vst [vmem:[#allocation4 + $0x38] sm:$0xff] %v1694
          %1707 = vst.msk [vmem:[#allocation4 + $0x40] sm:$0xff] %vm272, %v1695
          %1708 = vst [vmem:[#allocation4 + $0x48] sm:$0xff] %v1696
          %1709 = vst [vmem:[#allocation4 + $0x50] sm:$0xff] %v1697
          %1710 = vst.msk [vmem:[#allocation4 + $0x58] sm:$0xff] %vm272, %v1698
          %v1711 = vld [vmem:[#allocation3] sm:$0xff]
          %v1712 = vld [vmem:[#allocation3 + $0x8] sm:$0xff]
          %v1713 = vld [vmem:[#allocation3 + $0x10] sm:$0xff]
          %v1714 = vld [vmem:[#allocation3 + $0x18] sm:$0xff]
          %v1715 = vld [vmem:[#allocation3 + $0x28] sm:$0xff]
          %v1716 = vld [vmem:[#allocation3 + $0x30] sm:$0xff]
          %v1717 = vld [vmem:[#allocation3 + $0x38] sm:$0xff]
          %v1718 = vld [vmem:[#allocation3 + $0x40] sm:$0xff]
          %v1719 = vld [vmem:[#allocation3 + $0x50] sm:$0xff]
          %v1720 = vld [vmem:[#allocation3 + $0x58] sm:$0xff]
          %v1721 = vld [vmem:[#allocation3 + $0x60] sm:$0xff]
          %v1722 = vld [vmem:[#allocation3 + $0x68] sm:$0xff]
          %v1723 = vld [vmem:[#allocation3 + $0x78] sm:$0xff]
          %v1724 = vld [vmem:[#allocation3 + $0x80] sm:$0xff]
          %v1725 = vld [vmem:[#allocation3 + $0x88] sm:$0xff]
          %v1726 = vld [vmem:[#allocation3 + $0x90] sm:$0xff]
          %v1727 = vpack.c.bf16 %v1715, %v1711
          %v1728 = vpack.c.bf16 %v1716, %v1712
          %v1729 = vpack.c.bf16 %v1717, %v1713
          %v1730 = vpack.c.bf16 %v1718, %v1714
          %v1731 = vpack.c.bf16 %v1723, %v1719
          %v1732 = vpack.c.bf16 %v1724, %v1720
          %v1733 = vpack.c.bf16 %v1725, %v1721
          %v1734 = vpack.c.bf16 %v1726, %v1722
          %1743 = vrot.lane.b32.xlu0 %v1727, 17
          %v1744 = vpop.permute.xlu0 %1743
          %1745 = vrot.lane.b32.xlu0 %v1728, 17
          %v1746 = vpop.permute.xlu0 %1745
          %1747 = vrot.lane.b32.xlu0 %v1729, 17
          %v1748 = vpop.permute.xlu0 %1747
          %1749 = vrot.lane.b32.xlu0 %v1730, 17
          %v1750 = vpop.permute.xlu0 %1749
          %1751 = vrot.lane.b32.xlu0 %v1731, 17
          %v1752 = vpop.permute.xlu0 %1751
          %1753 = vrot.lane.b32.xlu0 %v1732, 17
          %v1754 = vpop.permute.xlu0 %1753
          %1755 = vrot.lane.b32.xlu0 %v1733, 17
          %v1756 = vpop.permute.xlu0 %1755
          %1757 = vrot.lane.b32.xlu0 %v1734, 17
          %v1758 = vpop.permute.xlu0 %1757
          %v1759 = vsel %vm353, %v1744, %v1746
          %v1760 = vsel %vm353, %v1746, %v1748
          %v1761 = vsel %vm353, %v1748, %v1750
          %v1762 = vsel %vm353, %v1752, %v1754
          %v1763 = vsel %vm353, %v1754, %v1756
          %v1764 = vsel %vm353, %v1756, %v1758
          %1771 = vst [vmem:[#allocation4 + $0x60] sm:$0xff] %v1759
          %1772 = vst [vmem:[#allocation4 + $0x68] sm:$0xff] %v1760
          %1773 = vst.msk [vmem:[#allocation4 + $0x70] sm:$0xff] %vm272, %v1761
          %1774 = vst [vmem:[#allocation4 + $0x78] sm:$0xff] %v1762
          %1775 = vst [vmem:[#allocation4 + $0x80] sm:$0xff] %v1763
          %1776 = vst.msk [vmem:[#allocation4 + $0x88] sm:$0xff] %vm272, %v1764
          %v1777 = vld [vmem:[#allocation3] sm:$0xff]
          %v1778 = vld [vmem:[#allocation3 + $0x8] sm:$0xff]
          %v1779 = vld [vmem:[#allocation3 + $0x10] sm:$0xff]
          %v1780 = vld [vmem:[#allocation3 + $0x18] sm:$0xff]
          %v1781 = vld [vmem:[#allocation3 + $0x28] sm:$0xff]
          %v1782 = vld [vmem:[#allocation3 + $0x30] sm:$0xff]
          %v1783 = vld [vmem:[#allocation3 + $0x38] sm:$0xff]
          %v1784 = vld [vmem:[#allocation3 + $0x40] sm:$0xff]
          %v1785 = vld [vmem:[#allocation3 + $0x50] sm:$0xff]
          %v1786 = vld [vmem:[#allocation3 + $0x58] sm:$0xff]
          %v1787 = vld [vmem:[#allocation3 + $0x60] sm:$0xff]
          %v1788 = vld [vmem:[#allocation3 + $0x68] sm:$0xff]
          %v1789 = vld [vmem:[#allocation3 + $0x78] sm:$0xff]
          %v1790 = vld [vmem:[#allocation3 + $0x80] sm:$0xff]
          %v1791 = vld [vmem:[#allocation3 + $0x88] sm:$0xff]
          %v1792 = vld [vmem:[#allocation3 + $0x90] sm:$0xff]
          %v1793 = vpack.c.bf16 %v1781, %v1777
          %v1794 = vpack.c.bf16 %v1782, %v1778
          %v1795 = vpack.c.bf16 %v1783, %v1779
          %v1796 = vpack.c.bf16 %v1784, %v1780
          %v1797 = vpack.c.bf16 %v1789, %v1785
          %v1798 = vpack.c.bf16 %v1790, %v1786
          %v1799 = vpack.c.bf16 %v1791, %v1787
          %v1800 = vpack.c.bf16 %v1792, %v1788
          %1809 = vrot.lane.b32.xlu0 %v1793, 1
          %v1810 = vpop.permute.xlu0 %1809
          %1811 = vrot.lane.b32.xlu0 %v1794, 1
          %v1812 = vpop.permute.xlu0 %1811
          %1813 = vrot.lane.b32.xlu0 %v1795, 1
          %v1814 = vpop.permute.xlu0 %1813
          %1815 = vrot.lane.b32.xlu0 %v1796, 1
          %v1816 = vpop.permute.xlu0 %1815
          %1817 = vrot.lane.b32.xlu0 %v1797, 1
          %v1818 = vpop.permute.xlu0 %1817
          %1819 = vrot.lane.b32.xlu0 %v1798, 1
          %v1820 = vpop.permute.xlu0 %1819
          %1821 = vrot.lane.b32.xlu0 %v1799, 1
          %v1822 = vpop.permute.xlu0 %1821
          %1823 = vrot.lane.b32.xlu0 %v1800, 1
          %v1824 = vpop.permute.xlu0 %1823
          %v1825 = vsel %vm371, %v1810, %v1812
          %v1826 = vsel %vm371, %v1812, %v1814
          %v1827 = vsel %vm371, %v1814, %v1816
          %v1828 = vsel %vm371, %v1818, %v1820
          %v1829 = vsel %vm371, %v1820, %v1822
          %v1830 = vsel %vm371, %v1822, %v1824
          %1837 = vst [vmem:[#allocation4 + $0x90] sm:$0xff] %v1825
          %1838 = vst [vmem:[#allocation4 + $0x98] sm:$0xff] %v1826
          %1839 = vst.msk [vmem:[#allocation4 + $0xa0] sm:$0xff] %vm272, %v1827
          %1840 = vst [vmem:[#allocation4 + $0xa8] sm:$0xff] %v1828
          %1841 = vst [vmem:[#allocation4 + $0xb0] sm:$0xff] %v1829
          %1842 = vst.msk [vmem:[#allocation4 + $0xb8] sm:$0xff] %vm272, %v1830
          %v1843 = vld [vmem:[#allocation3 + $0x8] sm:$0xff]
          %v1844 = vld [vmem:[#allocation3 + $0x10] sm:$0xff]
          %v1845 = vld [vmem:[#allocation3 + $0x18] sm:$0xff]
          %v1846 = vld [vmem:[#allocation3 + $0x30] sm:$0xff]
          %v1847 = vld [vmem:[#allocation3 + $0x38] sm:$0xff]
          %v1848 = vld [vmem:[#allocation3 + $0x40] sm:$0xff]
          %v1849 = vld [vmem:[#allocation3 + $0x58] sm:$0xff]
          %v1850 = vld [vmem:[#allocation3 + $0x60] sm:$0xff]
          %v1851 = vld [vmem:[#allocation3 + $0x68] sm:$0xff]
          %v1852 = vld [vmem:[#allocation3 + $0x80] sm:$0xff]
          %v1853 = vld [vmem:[#allocation3 + $0x88] sm:$0xff]
          %v1854 = vld [vmem:[#allocation3 + $0x90] sm:$0xff]
          %v1855 = vpack.c.bf16 %v1846, %v1843
          %v1856 = vpack.c.bf16 %v1847, %v1844
          %v1857 = vpack.c.bf16 %v1848, %v1845
          %v1858 = vpack.c.bf16 %v1852, %v1849
          %v1859 = vpack.c.bf16 %v1853, %v1850
          %v1860 = vpack.c.bf16 %v1854, %v1851
          %1861 = vst [vmem:[#allocation4 + $0xc0] sm:$0xff] %v1855
          %1862 = vst [vmem:[#allocation4 + $0xc8] sm:$0xff] %v1856
          %1863 = vst.msk [vmem:[#allocation4 + $0xd0] sm:$0xff] %vm272, %v1857
          %1864 = vst [vmem:[#allocation4 + $0xd8] sm:$0xff] %v1858
          %1865 = vst [vmem:[#allocation4 + $0xe0] sm:$0xff] %v1859
          %1866 = vst.msk [vmem:[#allocation4 + $0xe8] sm:$0xff] %vm272, %v1860
          %v1867 = vld [vmem:[#allocation3 + $0x8] sm:$0xff]
          %v1868 = vld [vmem:[#allocation3 + $0x10] sm:$0xff]
          %v1869 = vld [vmem:[#allocation3 + $0x18] sm:$0xff]
          %v1870 = vld [vmem:[#allocation3 + $0x30] sm:$0xff]
          %v1871 = vld [vmem:[#allocation3 + $0x38] sm:$0xff]
          %v1872 = vld [vmem:[#allocation3 + $0x40] sm:$0xff]
          %v1873 = vld [vmem:[#allocation3 + $0x58] sm:$0xff]
          %v1874 = vld [vmem:[#allocation3 + $0x60] sm:$0xff]
          %v1875 = vld [vmem:[#allocation3 + $0x68] sm:$0xff]
          %v1876 = vld [vmem:[#allocation3 + $0x80] sm:$0xff]
          %v1877 = vld [vmem:[#allocation3 + $0x88] sm:$0xff]
          %v1878 = vld [vmem:[#allocation3 + $0x90] sm:$0xff]
          %v1879 = vpack.c.bf16 %v1870, %v1867
          %v1880 = vpack.c.bf16 %v1871, %v1868
          %v1881 = vpack.c.bf16 %v1872, %v1869
          %v1882 = vpack.c.bf16 %v1876, %v1873
          %v1883 = vpack.c.bf16 %v1877, %v1874
          %v1884 = vpack.c.bf16 %v1878, %v1875
          %1891 = vrot.lane.b32.xlu0 %v1879, 127
          %v1892 = vpop.permute.xlu0 %1891
          %1893 = vrot.lane.b32.xlu0 %v1880, 127
          %v1894 = vpop.permute.xlu0 %1893
          %1895 = vrot.lane.b32.xlu0 %v1881, 127
          %v1896 = vpop.permute.xlu0 %1895
          %1897 = vrot.lane.b32.xlu0 %v1882, 127
          %v1898 = vpop.permute.xlu0 %1897
          %1899 = vrot.lane.b32.xlu0 %v1883, 127
          %v1900 = vpop.permute.xlu0 %1899
          %1901 = vrot.lane.b32.xlu0 %v1884, 127
          %v1902 = vpop.permute.xlu0 %1901
          %v1903 = vsel %vm390, %v1892, %v1894
          %v1904 = vsel %vm390, %v1894, %v1896
          %v1905 = vsel %vm390, %v1898, %v1900
          %v1906 = vsel %vm390, %v1900, %v1902
          %1913 = vst [vmem:[#allocation4 + $0xf0] sm:$0xff] %v1903
          %1914 = vst [vmem:[#allocation4 + $0xf8] sm:$0xff] %v1904
          %1915 = vst.msk [vmem:[#allocation4 + $0x100] sm:$0xff] %vm272, %v1896
          %1916 = vst [vmem:[#allocation4 + $0x108] sm:$0xff] %v1905
          %1917 = vst [vmem:[#allocation4 + $0x110] sm:$0xff] %v1906
          %1918 = vst.msk [vmem:[#allocation4 + $0x118] sm:$0xff] %vm272, %v1902
          %v1919 = vld [vmem:[#allocation3 + $0x8] sm:$0xff]
          %v1920 = vld [vmem:[#allocation3 + $0x10] sm:$0xff]
          %v1921 = vld [vmem:[#allocation3 + $0x18] sm:$0xff]
          %v1922 = vld [vmem:[#allocation3 + $0x30] sm:$0xff]
          %v1923 = vld [vmem:[#allocation3 + $0x38] sm:$0xff]
          %v1924 = vld [vmem:[#allocation3 + $0x40] sm:$0xff]
          %v1925 = vld [vmem:[#allocation3 + $0x58] sm:$0xff]
          %v1926 = vld [vmem:[#allocation3 + $0x60] sm:$0xff]
          %v1927 = vld [vmem:[#allocation3 + $0x68] sm:$0xff]
          %v1928 = vld [vmem:[#allocation3 + $0x80] sm:$0xff]
          %v1929 = vld [vmem:[#allocation3 + $0x88] sm:$0xff]
          %v1930 = vld [vmem:[#allocation3 + $0x90] sm:$0xff]
          %v1931 = vpack.c.bf16 %v1922, %v1919
          %v1932 = vpack.c.bf16 %v1923, %v1920
          %v1933 = vpack.c.bf16 %v1924, %v1921
          %v1934 = vpack.c.bf16 %v1928, %v1925
          %v1935 = vpack.c.bf16 %v1929, %v1926
          %v1936 = vpack.c.bf16 %v1930, %v1927
          %1943 = vrot.lane.b32.xlu0 %v1931, 111
          %v1944 = vpop.permute.xlu0 %1943
          %1945 = vrot.lane.b32.xlu0 %v1932, 111
          %v1946 = vpop.permute.xlu0 %1945
          %1947 = vrot.lane.b32.xlu0 %v1933, 111
          %v1948 = vpop.permute.xlu0 %1947
          %1949 = vrot.lane.b32.xlu0 %v1934, 111
          %v1950 = vpop.permute.xlu0 %1949
          %1951 = vrot.lane.b32.xlu0 %v1935, 111
          %v1952 = vpop.permute.xlu0 %1951
          %1953 = vrot.lane.b32.xlu0 %v1936, 111
          %v1954 = vpop.permute.xlu0 %1953
          %v1955 = vsel %vm405, %v1944, %v1946
          %v1956 = vsel %vm405, %v1946, %v1948
          %v1957 = vsel %vm405, %v1950, %v1952
          %v1958 = vsel %vm405, %v1952, %v1954
          %1965 = vst [vmem:[#allocation4 + $0x120] sm:$0xff] %v1955
          %1966 = vst [vmem:[#allocation4 + $0x128] sm:$0xff] %v1956
          %1967 = vst.msk [vmem:[#allocation4 + $0x130] sm:$0xff] %vm272, %v1948
          %1968 = vst [vmem:[#allocation4 + $0x138] sm:$0xff] %v1957
          %1969 = vst [vmem:[#allocation4 + $0x140] sm:$0xff] %v1958
          %1970 = vst.msk [vmem:[#allocation4 + $0x148] sm:$0xff] %vm272, %v1954
          %v1971 = vld [vmem:[#allocation3 + $0x8] sm:$0xff]
          %v1972 = vld [vmem:[#allocation3 + $0x10] sm:$0xff]
          %v1973 = vld [vmem:[#allocation3 + $0x18] sm:$0xff]
          %v1974 = vld [vmem:[#allocation3 + $0x30] sm:$0xff]
          %v1975 = vld [vmem:[#allocation3 + $0x38] sm:$0xff]
          %v1976 = vld [vmem:[#allocation3 + $0x40] sm:$0xff]
          %v1977 = vld [vmem:[#allocation3 + $0x58] sm:$0xff]
          %v1978 = vld [vmem:[#allocation3 + $0x60] sm:$0xff]
          %v1979 = vld [vmem:[#allocation3 + $0x68] sm:$0xff]
          %v1980 = vld [vmem:[#allocation3 + $0x80] sm:$0xff]
          %v1981 = vld [vmem:[#allocation3 + $0x88] sm:$0xff]
          %v1982 = vld [vmem:[#allocation3 + $0x90] sm:$0xff]
          %v1983 = vpack.c.bf16 %v1974, %v1971
          %v1984 = vpack.c.bf16 %v1975, %v1972
          %v1985 = vpack.c.bf16 %v1976, %v1973
          %v1986 = vpack.c.bf16 %v1980, %v1977
          %v1987 = vpack.c.bf16 %v1981, %v1978
          %v1988 = vpack.c.bf16 %v1982, %v1979
          %1995 = vrot.lane.b32.xlu0 %v1983, 110
          %v1996 = vpop.permute.xlu0 %1995
          %1997 = vrot.lane.b32.xlu0 %v1984, 110
          %v1998 = vpop.permute.xlu0 %1997
          %1999 = vrot.lane.b32.xlu0 %v1985, 110
          %v2000 = vpop.permute.xlu0 %1999
          %2001 = vrot.lane.b32.xlu0 %v1986, 110
          %v2002 = vpop.permute.xlu0 %2001
          %2003 = vrot.lane.b32.xlu0 %v1987, 110
          %v2004 = vpop.permute.xlu0 %2003
          %2005 = vrot.lane.b32.xlu0 %v1988, 110
          %v2006 = vpop.permute.xlu0 %2005
          %v2007 = vsel %vm420, %v1996, %v1998
          %v2008 = vsel %vm420, %v1998, %v2000
          %v2009 = vsel %vm420, %v2002, %v2004
          %v2010 = vsel %vm420, %v2004, %v2006
          %2017 = vst [vmem:[#allocation4 + $0x150] sm:$0xff] %v2007
          %2018 = vst [vmem:[#allocation4 + $0x158] sm:$0xff] %v2008
          %2019 = vst.msk [vmem:[#allocation4 + $0x160] sm:$0xff] %vm272, %v2000
          %2020 = vst [vmem:[#allocation4 + $0x168] sm:$0xff] %v2009
          %2021 = vst [vmem:[#allocation4 + $0x170] sm:$0xff] %v2010
          %2022 = vst.msk [vmem:[#allocation4 + $0x178] sm:$0xff] %vm272, %v2006
          %v2023 = vld [vmem:[#allocation3 + $0x8] sm:$0xff]
          %v2024 = vld [vmem:[#allocation3 + $0x10] sm:$0xff]
          %v2025 = vld [vmem:[#allocation3 + $0x18] sm:$0xff]
          %v2026 = vld [vmem:[#allocation3 + $0x30] sm:$0xff]
          %v2027 = vld [vmem:[#allocation3 + $0x38] sm:$0xff]
          %v2028 = vld [vmem:[#allocation3 + $0x40] sm:$0xff]
          %v2029 = vld [vmem:[#allocation3 + $0x58] sm:$0xff]
          %v2030 = vld [vmem:[#allocation3 + $0x60] sm:$0xff]
          %v2031 = vld [vmem:[#allocation3 + $0x68] sm:$0xff]
          %v2032 = vld [vmem:[#allocation3 + $0x80] sm:$0xff]
          %v2033 = vld [vmem:[#allocation3 + $0x88] sm:$0xff]
          %v2034 = vld [vmem:[#allocation3 + $0x90] sm:$0xff]
          %v2035 = vpack.c.bf16 %v2026, %v2023
          %v2036 = vpack.c.bf16 %v2027, %v2024
          %v2037 = vpack.c.bf16 %v2028, %v2025
          %v2038 = vpack.c.bf16 %v2032, %v2029
          %v2039 = vpack.c.bf16 %v2033, %v2030
          %v2040 = vpack.c.bf16 %v2034, %v2031
          %2047 = vrot.lane.b32.xlu0 %v2035, 109
          %v2048 = vpop.permute.xlu0 %2047
          %2049 = vrot.lane.b32.xlu0 %v2036, 109
          %v2050 = vpop.permute.xlu0 %2049
          %2051 = vrot.lane.b32.xlu0 %v2037, 109
          %v2052 = vpop.permute.xlu0 %2051
          %2053 = vrot.lane.b32.xlu0 %v2038, 109
          %v2054 = vpop.permute.xlu0 %2053
          %2055 = vrot.lane.b32.xlu0 %v2039, 109
          %v2056 = vpop.permute.xlu0 %2055
          %2057 = vrot.lane.b32.xlu0 %v2040, 109
          %v2058 = vpop.permute.xlu0 %2057
          %v2059 = vsel %vm435, %v2048, %v2050
          %v2060 = vsel %vm435, %v2050, %v2052
          %v2061 = vsel %vm435, %v2054, %v2056
          %v2062 = vsel %vm435, %v2056, %v2058
          %2069 = vst [vmem:[#allocation4 + $0x180] sm:$0xff] %v2059
          %2070 = vst [vmem:[#allocation4 + $0x188] sm:$0xff] %v2060
          %2071 = vst.msk [vmem:[#allocation4 + $0x190] sm:$0xff] %vm272, %v2052
          %2072 = vst [vmem:[#allocation4 + $0x198] sm:$0xff] %v2061
          %2073 = vst [vmem:[#allocation4 + $0x1a0] sm:$0xff] %v2062
          %2074 = vst.msk [vmem:[#allocation4 + $0x1a8] sm:$0xff] %vm272, %v2058
          %v2075 = vld [vmem:[#allocation4] sm:$0xff]
          %v2076 = vld [vmem:[#allocation4 + $0x8] sm:$0xff]
          %v2077 = vld [vmem:[#allocation4 + $0x10] sm:$0xff]
          %v2078 = vld [vmem:[#allocation4 + $0x18] sm:$0xff]
          %v2079 = vld [vmem:[#allocation4 + $0x20] sm:$0xff]
          %v2080 = vld [vmem:[#allocation4 + $0x28] sm:$0xff]
          %v2081 = vld [vmem:[#allocation4 + $0x30] sm:$0xff]
          %v2082 = vld [vmem:[#allocation4 + $0x38] sm:$0xff]
          %v2083 = vld [vmem:[#allocation4 + $0x40] sm:$0xff]
          %v2084 = vld [vmem:[#allocation4 + $0x48] sm:$0xff]
          %v2085 = vld [vmem:[#allocation4 + $0x50] sm:$0xff]
          %v2086 = vld [vmem:[#allocation4 + $0x58] sm:$0xff]
          %v2087 = vld [vmem:[#allocation4 + $0x60] sm:$0xff]
          %v2088 = vld [vmem:[#allocation4 + $0x68] sm:$0xff]
          %v2089 = vld [vmem:[#allocation4 + $0x70] sm:$0xff]
          %v2090 = vld [vmem:[#allocation4 + $0x78] sm:$0xff]
          %v2091 = vld [vmem:[#allocation4 + $0x80] sm:$0xff]
          %v2092 = vld [vmem:[#allocation4 + $0x88] sm:$0xff]
          %v2093 = vld [vmem:[#allocation4 + $0x90] sm:$0xff]
          %v2094 = vld [vmem:[#allocation4 + $0x98] sm:$0xff]
          %v2095 = vld [vmem:[#allocation4 + $0xa0] sm:$0xff]
          %v2096 = vld [vmem:[#allocation4 + $0xa8] sm:$0xff]
          %v2097 = vld [vmem:[#allocation4 + $0xb0] sm:$0xff]
          %v2098 = vld [vmem:[#allocation4 + $0xb8] sm:$0xff]
          %v2099 = vld [vmem:[#allocation4 + $0xc0] sm:$0xff]
          %v2100 = vld [vmem:[#allocation4 + $0xc8] sm:$0xff]
          %v2101 = vld [vmem:[#allocation4 + $0xd0] sm:$0xff]
          %v2102 = vld [vmem:[#allocation4 + $0xd8] sm:$0xff]
          %v2103 = vld [vmem:[#allocation4 + $0xe0] sm:$0xff]
          %v2104 = vld [vmem:[#allocation4 + $0xe8] sm:$0xff]
          %v2105 = vld [vmem:[#allocation4 + $0xf0] sm:$0xff]
          %v2106 = vld [vmem:[#allocation4 + $0xf8] sm:$0xff]
          %v2107 = vld [vmem:[#allocation4 + $0x100] sm:$0xff]
          %v2108 = vld [vmem:[#allocation4 + $0x108] sm:$0xff]
          %v2109 = vld [vmem:[#allocation4 + $0x110] sm:$0xff]
          %v2110 = vld [vmem:[#allocation4 + $0x118] sm:$0xff]
          %v2111 = vld [vmem:[#allocation4 + $0x120] sm:$0xff]
          %v2112 = vld [vmem:[#allocation4 + $0x128] sm:$0xff]
          %v2113 = vld [vmem:[#allocation4 + $0x130] sm:$0xff]
          %v2114 = vld [vmem:[#allocation4 + $0x138] sm:$0xff]
          %v2115 = vld [vmem:[#allocation4 + $0x140] sm:$0xff]
          %v2116 = vld [vmem:[#allocation4 + $0x148] sm:$0xff]
          %v2117 = vld [vmem:[#allocation4 + $0x150] sm:$0xff]
          %v2118 = vld [vmem:[#allocation4 + $0x158] sm:$0xff]
          %v2119 = vld [vmem:[#allocation4 + $0x160] sm:$0xff]
          %v2120 = vld [vmem:[#allocation4 + $0x168] sm:$0xff]
          %v2121 = vld [vmem:[#allocation4 + $0x170] sm:$0xff]
          %v2122 = vld [vmem:[#allocation4 + $0x178] sm:$0xff]
          %v2123 = vld [vmem:[#allocation4 + $0x180] sm:$0xff]
          %v2124 = vld [vmem:[#allocation4 + $0x188] sm:$0xff]
          %v2125 = vld [vmem:[#allocation4 + $0x190] sm:$0xff]
          %v2126 = vld [vmem:[#allocation4 + $0x198] sm:$0xff]
          %v2127 = vld [vmem:[#allocation4 + $0x1a0] sm:$0xff]
          %v2128 = vld [vmem:[#allocation4 + $0x1a8] sm:$0xff]
          %2130 = vset.pattern.permute.xlu0 0
          %2131 = vperm.xlu0 %2130, %v728
          %v2132 = vpop.permute.xlu0 %2131
          %2135 = vset.pattern.permute.xlu0 0
          %2136 = vperm.xlu0 %2135, %v729
          %v2137 = vpop.permute.xlu0 %2136
          %2140 = vset.pattern.permute.xlu0 0
          %2141 = vperm.xlu0 %2140, %v730
          %v2142 = vpop.permute.xlu0 %2141
          %2145 = vset.pattern.permute.xlu0 0
          %2146 = vperm.xlu0 %2145, %v731
          %v2147 = vpop.permute.xlu0 %2146
          %v2157 = vunpack.c.l.b16 %v718
          %v2158 = vunpack.c.h.b16 %v718
          %v2159 = vunpack.c.l.b16 %v719
          %v2160 = vunpack.c.l.b16 %v720
          %v2161 = vunpack.c.h.b16 %v720
          %v2162 = vunpack.c.l.b16 %v721
          %v2163 = vunpack.c.l.b16 %v722
          %v2164 = vunpack.c.h.b16 %v722
          %v2165 = vunpack.c.l.b16 %v723
          %v2166 = vunpack.c.l.b16 %v724
          %v2167 = vunpack.c.h.b16 %v724
          %v2168 = vunpack.c.l.b16 %v725
          %v2169 = vpack.c.b16 %v2160, %v2157
          %v2170 = vpack.c.b16 %v2161, %v2158
          %v2171 = vpack.c.b16 %v2162, %v2159
          %v2172 = vpack.c.b16 %v2166, %v2163
          %v2173 = vpack.c.b16 %v2167, %v2164
          %v2174 = vpack.c.b16 %v2168, %v2165
          %v2180 = vsel %vm1332, %v2171, 0
          %v2183 = vsel %vm1332, %v2174, 0
          %2185 = vmatprep.subr.bf16.mxu0 %v2076
          %2186 = vmatpush1.bf16.msra.mxu0 %v2075
          %2187 = vmatprep.subr.bf16.mxu0 %v2079
          %2188 = vmatpush1.bf16.msra.mxu0 %v2078
          %2189 = vmatprep.subr.bf16.mxu0 %v2082
          %2190 = vmatpush1.bf16.msra.mxu0 %v2081
          %2191 = vmatprep.subr.bf16.mxu0 %v2085
          %2192 = vmatpush1.bf16.msra.mxu0 %v2084
          %2193 = vmatprep.subr.bf16.mxu0 %v2088
          %2194 = vmatpush1.bf16.msra.mxu0 %v2087
          %2195 = vmatprep.subr.bf16.mxu0 %v2091
          %2196 = vmatpush1.bf16.msra.mxu0 %v2090
          %2197 = vmatprep.subr.bf16.mxu0 %v2094
          %2198 = vmatpush1.bf16.msra.mxu0 %v2093
          %2199 = vmatprep.subr.bf16.mxu0 %v2097
          %2200 = vmatpush1.bf16.msra.mxu0 %v2096
          %2201 = vmatprep.subr.bf16.mxu0 %v2100
          %2202 = vmatpush1.bf16.msra.mxu0 %v2099
          %2203 = vmatprep.subr.bf16.mxu0 %v2103
          %2204 = vmatpush1.bf16.msra.mxu0 %v2102
          %2205 = vmatprep.subr.bf16.mxu0 %v2106
          %2206 = vmatpush1.bf16.msra.mxu0 %v2105
          %2207 = vmatprep.subr.bf16.mxu0 %v2109
          %2208 = vmatpush1.bf16.msra.mxu0 %v2108
          %2209 = vmatprep.subr.bf16.mxu0 %v2112
          %2210 = vmatpush1.bf16.msra.mxu0 %v2111
          %2211 = vmatprep.subr.bf16.mxu0 %v2115
          %2212 = vmatpush1.bf16.msra.mxu0 %v2114
          %2213 = vmatprep.subr.bf16.mxu0 %v2118
          %2214 = vmatpush1.bf16.msra.mxu0 %v2117
          %2215 = vmatprep.subr.bf16.mxu0 %v2121
          %2216 = vmatpush1.bf16.msra.mxu0 %v2120
          %2217 = vmatprep.mubr.bf16.mxu0 %v2170
          %2218 = vmatmul.mubr.bf16.gmra.mrb[0].mxu0 %v2169
          %v2219 = vpop.f32.mrb[0].mxu0
          %v2220 = vadd.f32 %v2132, %v2219
          %v2221 = vpop.f32.mrb[0].mxu0
          %v2222 = vadd.f32 %v2132, %v2221
          %v2223 = vpop.f32.mrb[0].mxu0
          %v2224 = vadd.f32 %v2137, %v2223
          %v2225 = vpop.f32.mrb[0].mxu0
          %v2226 = vadd.f32 %v2137, %v2225
          %2227 = vmatprep.mubr.bf16.mxu0 %v2173
          %2228 = vmatmul.mubr.bf16.gmra.mrb[0].mxu0 %v2172
          %v2229 = vpop.f32.mrb[0].mxu0
          %v2230 = vadd.f32 %v2142, %v2229
          %v2231 = vpop.f32.mrb[0].mxu0
          %v2232 = vadd.f32 %v2142, %v2231
          %v2233 = vpop.f32.mrb[0].mxu0
          %v2234 = vadd.f32 %v2147, %v2233
          %v2235 = vpop.f32.mrb[0].mxu0
          %v2236 = vadd.f32 %v2147, %v2235
          %2237 = vdwg.mxu0
          %2238 = vmatprep.subr.bf16.mxu0 %v2124
          %2239 = vmatpush1.bf16.msra.mxu0 %v2123
          %2240 = vmatprep.subr.bf16.mxu0 %v2127
          %2241 = vmatpush1.bf16.msra.mxu0 %v2126
          %2242 = vmatprep.subr.bf16.mxu0 0
          %2243 = vmatpush1.bf16.msra.mxu0 0
          %2244 = vmatprep.subr.bf16.mxu0 0
          %2245 = vmatpush1.bf16.msra.mxu0 0
          %2246 = vmatprep.subr.bf16.mxu0 0
          %2247 = vmatpush1.bf16.msra.mxu0 0
          %2248 = vmatprep.subr.bf16.mxu0 0
          %2249 = vmatpush1.bf16.msra.mxu0 0
          %2250 = vmatprep.subr.bf16.mxu0 0
          %2251 = vmatpush1.bf16.msra.mxu0 0
          %2252 = vmatprep.subr.bf16.mxu0 0
          %2253 = vmatpush1.bf16.msra.mxu0 0
          %2254 = vmatprep.subr.bf16.mxu0 0
          %2255 = vmatpush1.bf16.msra.mxu0 0
          %2256 = vmatprep.subr.bf16.mxu0 0
          %2257 = vmatpush1.bf16.msra.mxu0 0
          %2258 = vmatprep.subr.bf16.mxu0 0
          %2259 = vmatpush1.bf16.msra.mxu0 0
          %2260 = vmatprep.subr.bf16.mxu0 0
          %2261 = vmatpush1.bf16.msra.mxu0 0
          %2262 = vmatprep.subr.bf16.mxu0 0
          %2263 = vmatpush1.bf16.msra.mxu0 0
          %2264 = vmatprep.subr.bf16.mxu0 0
          %2265 = vmatpush1.bf16.msra.mxu0 0
          %2266 = vmatprep.subr.bf16.mxu0 0
          %2267 = vmatpush1.bf16.msra.mxu0 0
          %2268 = vmatprep.subr.bf16.mxu0 0
          %2269 = vmatpush1.bf16.msra.mxu0 0
          %2270 = vmatprep.mubr.bf16.mxu0 0
          %2271 = vmatmul.mubr.bf16.gmra.mrb[0].mxu0 %v2180
          %v2272 = vpop.f32.mrb[0].mxu0
          %v2273 = vadd.f32 %v2220, %v2272
          %v2274 = vpop.f32.mrb[0].mxu0
          %v2275 = vadd.f32 %v2222, %v2274
          %v2276 = vpop.f32.mrb[0].mxu0
          %v2277 = vadd.f32 %v2224, %v2276
          %v2278 = vpop.f32.mrb[0].mxu0
          %v2279 = vadd.f32 %v2226, %v2278
          %2280 = vmatprep.mubr.bf16.mxu0 0
          %2281 = vmatmul.mubr.bf16.gmra.mrb[0].mxu0 %v2183
          %v2282 = vpop.f32.mrb[0].mxu0
          %v2283 = vadd.f32 %v2230, %v2282
          %v2284 = vpop.f32.mrb[0].mxu0
          %v2285 = vadd.f32 %v2232, %v2284
          %v2286 = vpop.f32.mrb[0].mxu0
          %v2287 = vadd.f32 %v2234, %v2286
          %v2288 = vpop.f32.mrb[0].mxu0
          %v2289 = vadd.f32 %v2236, %v2288
          %2290 = vdwg.mxu0
          %2291 = vmatprep.subr.bf16.mxu0 0
          %2292 = vmatpush1.bf16.msra.mxu0 %v2077
          %2293 = vmatprep.subr.bf16.mxu0 0
          %2294 = vmatpush1.bf16.msra.mxu0 %v2080
          %2295 = vmatprep.subr.bf16.mxu0 0
          %2296 = vmatpush1.bf16.msra.mxu0 %v2083
          %2297 = vmatprep.subr.bf16.mxu0 0
          %2298 = vmatpush1.bf16.msra.mxu0 %v2086
          %2299 = vmatprep.subr.bf16.mxu0 0
          %2300 = vmatpush1.bf16.msra.mxu0 %v2089
          %2301 = vmatprep.subr.bf16.mxu0 0
          %2302 = vmatpush1.bf16.msra.mxu0 %v2092
          %2303 = vmatprep.subr.bf16.mxu0 0
          %2304 = vmatpush1.bf16.msra.mxu0 %v2095
          %2305 = vmatprep.subr.bf16.mxu0 0
          %2306 = vmatpush1.bf16.msra.mxu0 %v2098
          %2307 = vmatprep.subr.bf16.mxu0 0
          %2308 = vmatpush1.bf16.msra.mxu0 %v2101
          %2309 = vmatprep.subr.bf16.mxu0 0
          %2310 = vmatpush1.bf16.msra.mxu0 %v2104
          %2311 = vmatprep.subr.bf16.mxu0 0
          %2312 = vmatpush1.bf16.msra.mxu0 %v2107
          %2313 = vmatprep.subr.bf16.mxu0 0
          %2314 = vmatpush1.bf16.msra.mxu0 %v2110
          %2315 = vmatprep.subr.bf16.mxu0 0
          %2316 = vmatpush1.bf16.msra.mxu0 %v2113
          %2317 = vmatprep.subr.bf16.mxu0 0
          %2318 = vmatpush1.bf16.msra.mxu0 %v2116
          %2319 = vmatprep.subr.bf16.mxu0 0
          %2320 = vmatpush1.bf16.msra.mxu0 %v2119
          %2321 = vmatprep.subr.bf16.mxu0 0
          %2322 = vmatpush1.bf16.msra.mxu0 %v2122
          %2323 = vmatprep.mubr.bf16.mxu0 %v2170
          %2324 = vmatmul.mubr.bf16.gmra.mrb[0].mxu0 %v2169
          %v2325 = vpop.f32.mrb[0].mxu0
          %v2326 = vadd.f32 %v2132, %v2325
          %v2327 = vpop.f32.mrb[0].mxu0
          %v2328 = vpop.f32.mrb[0].mxu0
          %v2329 = vadd.f32 %v2137, %v2328
          %v2330 = vpop.f32.mrb[0].mxu0
          %2331 = vmatprep.mubr.bf16.mxu0 %v2173
          %2332 = vmatmul.mubr.bf16.gmra.mrb[0].mxu0 %v2172
          %v2333 = vpop.f32.mrb[0].mxu0
          %v2334 = vadd.f32 %v2142, %v2333
          %v2335 = vpop.f32.mrb[0].mxu0
          %v2336 = vpop.f32.mrb[0].mxu0
          %v2337 = vadd.f32 %v2147, %v2336
          %v2338 = vpop.f32.mrb[0].mxu0
          %2339 = vdwg.mxu0
          %2340 = vmatprep.subr.bf16.mxu0 0
          %2341 = vmatpush1.bf16.msra.mxu0 %v2125
          %2342 = vmatprep.subr.bf16.mxu0 0
          %2343 = vmatpush1.bf16.msra.mxu0 %v2128
          %2344 = vmatprep.subr.bf16.mxu0 0
          %2345 = vmatpush1.bf16.msra.mxu0 0
          %2346 = vmatprep.subr.bf16.mxu0 0
          %2347 = vmatpush1.bf16.msra.mxu0 0
          %2348 = vmatprep.subr.bf16.mxu0 0
          %2349 = vmatpush1.bf16.msra.mxu0 0
          %2350 = vmatprep.subr.bf16.mxu0 0
          %2351 = vmatpush1.bf16.msra.mxu0 0
          %2352 = vmatprep.subr.bf16.mxu0 0
          %2353 = vmatpush1.bf16.msra.mxu0 0
          %2354 = vmatprep.subr.bf16.mxu0 0
          %2355 = vmatpush1.bf16.msra.mxu0 0
          %2356 = vmatprep.subr.bf16.mxu0 0
          %2357 = vmatpush1.bf16.msra.mxu0 0
          %2358 = vmatprep.subr.bf16.mxu0 0
          %2359 = vmatpush1.bf16.msra.mxu0 0
          %2360 = vmatprep.subr.bf16.mxu0 0
          %2361 = vmatpush1.bf16.msra.mxu0 0
          %2362 = vmatprep.subr.bf16.mxu0 0
          %2363 = vmatpush1.bf16.msra.mxu0 0
          %2364 = vmatprep.subr.bf16.mxu0 0
          %2365 = vmatpush1.bf16.msra.mxu0 0
          %2366 = vmatprep.subr.bf16.mxu0 0
          %2367 = vmatpush1.bf16.msra.mxu0 0
          %2368 = vmatprep.subr.bf16.mxu0 0
          %2369 = vmatpush1.bf16.msra.mxu0 0
          %2370 = vmatprep.subr.bf16.mxu0 0
          %2371 = vmatpush1.bf16.msra.mxu0 0
          %2372 = vmatprep.mubr.bf16.mxu0 0
          %2373 = vmatmul.mubr.bf16.gmra.mrb[0].mxu0 %v2180
          %v2374 = vpop.f32.mrb[0].mxu0
          %v2375 = vadd.f32 %v2326, %v2374
          %v2376 = vpop.f32.mrb[0].mxu0
          %v2377 = vpop.f32.mrb[0].mxu0
          %v2378 = vadd.f32 %v2329, %v2377
          %v2379 = vpop.f32.mrb[0].mxu0
          %2380 = vmatprep.mubr.bf16.mxu0 0
          %2381 = vmatmul.mubr.bf16.gmra.mrb[0].mxu0 %v2183
          %v2382 = vpop.f32.mrb[0].mxu0
          %v2383 = vadd.f32 %v2334, %v2382
          %v2384 = vpop.f32.mrb[0].mxu0
          %v2385 = vpop.f32.mrb[0].mxu0
          %v2386 = vadd.f32 %v2337, %v2385
          %v2387 = vpop.f32.mrb[0].mxu0
          %2388 = vdwg.mxu0
          %v2389 = vld [vmem:[#allocation2 + $0x8] sm:$0xff]
          %v2390 = vld [vmem:[#allocation2 + $0x10] sm:$0xff]
          %v2391 = vld [vmem:[#allocation2 + $0x18] sm:$0xff]
          %v2392 = vld [vmem:[#allocation2 + $0x30] sm:$0xff]
          %v2393 = vld [vmem:[#allocation2 + $0x38] sm:$0xff]
          %v2394 = vld [vmem:[#allocation2 + $0x40] sm:$0xff]
          %v2395 = vld [vmem:[#allocation2 + $0x58] sm:$0xff]
          %v2396 = vld [vmem:[#allocation2 + $0x60] sm:$0xff]
          %v2397 = vld [vmem:[#allocation2 + $0x68] sm:$0xff]
          %v2398 = vld [vmem:[#allocation2 + $0x80] sm:$0xff]
          %v2399 = vld [vmem:[#allocation2 + $0x88] sm:$0xff]
          %v2400 = vld [vmem:[#allocation2 + $0x90] sm:$0xff]
          %v2401 = vadd.f32 %v2389, %v2273
          %v2402 = vadd.f32 %v2390, %v2275
          %v2403 = vadd.f32 %v2391, %v2375
          %v2404 = vadd.f32 %v2392, %v2277
          %v2405 = vadd.f32 %v2393, %v2279
          %v2406 = vadd.f32 %v2394, %v2378
          %v2407 = vadd.f32 %v2395, %v2283
          %v2408 = vadd.f32 %v2396, %v2285
          %v2409 = vadd.f32 %v2397, %v2383
          %v2410 = vadd.f32 %v2398, %v2287
          %v2411 = vadd.f32 %v2399, %v2289
          %v2412 = vadd.f32 %v2400, %v2386
          %v2413 = vmul.f32 %v642, %v2401
          %v2414 = vmul.f32 %v646, %v2402
          %v2415 = vmul.f32 %v650, %v2403
          %v2416 = vmul.f32 %v642, %v2404
          %v2417 = vmul.f32 %v646, %v2405
          %v2418 = vmul.f32 %v650, %v2406
          %v2419 = vmul.f32 %v642, %v2407
          %v2420 = vmul.f32 %v646, %v2408
          %v2421 = vmul.f32 %v650, %v2409
          %v2422 = vmul.f32 %v642, %v2410
          %v2423 = vmul.f32 %v646, %v2411
          %v2424 = vmul.f32 %v650, %v2412
          %2425 = vst [vmem:[#allocation2 + $0x8] sm:$0xff] %v2413
          %2426 = vst [vmem:[#allocation2 + $0x10] sm:$0xff] %v2414
          %2427 = vst.msk [vmem:[#allocation2 + $0x18] sm:$0xff] %vm272, %v2415
          %2428 = vst [vmem:[#allocation2 + $0x30] sm:$0xff] %v2416
          %2429 = vst [vmem:[#allocation2 + $0x38] sm:$0xff] %v2417
          %2430 = vst.msk [vmem:[#allocation2 + $0x40] sm:$0xff] %vm272, %v2418
          %2431 = vst [vmem:[#allocation2 + $0x58] sm:$0xff] %v2419
          %2432 = vst [vmem:[#allocation2 + $0x60] sm:$0xff] %v2420
          %2433 = vst.msk [vmem:[#allocation2 + $0x68] sm:$0xff] %vm272, %v2421
          %2434 = vst [vmem:[#allocation2 + $0x80] sm:$0xff] %v2422
          %2435 = vst [vmem:[#allocation2 + $0x88] sm:$0xff] %v2423
          %2436 = vst.msk [vmem:[#allocation2 + $0x90] sm:$0xff] %vm272, %v2424
        $region53: #{tpu_custom_call.1} parent=43 // loop_footer
          %s695 = sadd.s32 1, %s691
        $region54: #{tpu_custom_call.1} parent=43 // loop_footer_branch
          %690 = sbr.rel target = $region50
        $region55: #{tpu_custom_call.1} parent=43 // loop_exit
          _
        %s2437 = scalar_lea.vmem [#allocation5], 192
        %v2438 = vld [vmem:[%s2437] sm:$0xff]
        %v2439 = vld [vmem:[%s2437 + $0x8] sm:$0xf]
        %v2440 = vld [vmem:[%s2437 + $0xc] sm:$0xff]
        %v2441 = vld [vmem:[%s2437 + $0x14] sm:$0xf]
        %v2442 = vld [vmem:[%s2437 + $0x18] sm:$0xff]
        %v2443 = vld [vmem:[%s2437 + $0x20] sm:$0xf]
        %v2444 = vld [vmem:[%s2437 + $0x24] sm:$0xff]
        %v2445 = vld [vmem:[%s2437 + $0x2c] sm:$0xf]
        %s2446 = scalar_lea.vmem %s4, 128
        %v2447 = vld [vmem:[%s2446] sm:$0xff]
        %v2448 = vld [vmem:[%s2446 + $0x8] sm:$0xff]
        %v2449 = vld [vmem:[%s2446 + $0x10] sm:$0xff]
        %v2450 = vld [vmem:[%s2446 + $0x18] sm:$0xff]
        %v2451 = vld [vmem:[%s259] sm:$0xff]
        %v2452 = vld [vmem:[%s259 + $0x8] sm:$0xff]
        %v2453 = vld [vmem:[%s259 + $0x10] sm:$0xff]
        %v2454 = vld [vmem:[%s259 + $0x18] sm:$0xff]
        %v2455 = vld [vmem:[%s259 + $0x20] sm:$0xff]
        %v2456 = vld [vmem:[%s259 + $0x28] sm:$0xff]
        %v2457 = vld [vmem:[%s259 + $0x30] sm:$0xff]
        %v2458 = vld [vmem:[%s259 + $0x38] sm:$0xff]
        %v2459 = vld [vmem:[%s259 + $0x40] sm:$0xff]
        %v2460 = vld [vmem:[%s259 + $0x48] sm:$0xff]
        %v2461 = vld [vmem:[%s259 + $0x50] sm:$0xff]
        %v2462 = vld [vmem:[%s259 + $0x58] sm:$0xff]
        %v2463 = vld [vmem:[#allocation2] sm:$0xff]
        %v2464 = vld [vmem:[#allocation2 + $0x8] sm:$0xff]
        %v2465 = vld [vmem:[#allocation2 + $0x10] sm:$0xff]
        %v2466 = vld [vmem:[#allocation2 + $0x18] sm:$0xff]
        %v2467 = vld [vmem:[#allocation2 + $0x28] sm:$0xff]
        %v2468 = vld [vmem:[#allocation2 + $0x30] sm:$0xff]
        %v2469 = vld [vmem:[#allocation2 + $0x38] sm:$0xff]
        %v2470 = vld [vmem:[#allocation2 + $0x40] sm:$0xff]
        %v2471 = vld [vmem:[#allocation2 + $0x50] sm:$0xff]
        %v2472 = vld [vmem:[#allocation2 + $0x58] sm:$0xff]
        %v2473 = vld [vmem:[#allocation2 + $0x60] sm:$0xff]
        %v2474 = vld [vmem:[#allocation2 + $0x68] sm:$0xff]
        %v2475 = vld [vmem:[#allocation2 + $0x78] sm:$0xff]
        %v2476 = vld [vmem:[#allocation2 + $0x80] sm:$0xff]
        %v2477 = vld [vmem:[#allocation2 + $0x88] sm:$0xff]
        %v2478 = vld [vmem:[#allocation2 + $0x90] sm:$0xff]
        %v2479 = vpack.c.bf16 %v2467, %v2463
        %v2480 = vpack.c.bf16 %v2468, %v2464
        %v2481 = vpack.c.bf16 %v2469, %v2465
        %v2482 = vpack.c.bf16 %v2470, %v2466
        %v2483 = vpack.c.bf16 %v2475, %v2471
        %v2484 = vpack.c.bf16 %v2476, %v2472
        %v2485 = vpack.c.bf16 %v2477, %v2473
        %v2486 = vpack.c.bf16 %v2478, %v2474
        %2495 = vrot.lane.b32.xlu0 %v2479, 19
        %v2496 = vpop.permute.xlu0 %2495
        %2497 = vrot.lane.b32.xlu0 %v2480, 19
        %v2498 = vpop.permute.xlu0 %2497
        %2499 = vrot.lane.b32.xlu0 %v2481, 19
        %v2500 = vpop.permute.xlu0 %2499
        %2501 = vrot.lane.b32.xlu0 %v2482, 19
        %v2502 = vpop.permute.xlu0 %2501
        %2503 = vrot.lane.b32.xlu0 %v2483, 19
        %v2504 = vpop.permute.xlu0 %2503
        %2505 = vrot.lane.b32.xlu0 %v2484, 19
        %v2506 = vpop.permute.xlu0 %2505
        %2507 = vrot.lane.b32.xlu0 %v2485, 19
        %v2508 = vpop.permute.xlu0 %2507
        %2509 = vrot.lane.b32.xlu0 %v2486, 19
        %v2510 = vpop.permute.xlu0 %2509
        %v2511 = vsel %vm317, %v2496, %v2498
        %v2512 = vsel %vm317, %v2498, %v2500
        %v2513 = vsel %vm317, %v2500, %v2502
        %v2514 = vsel %vm317, %v2504, %v2506
        %v2515 = vsel %vm317, %v2506, %v2508
        %v2516 = vsel %vm317, %v2508, %v2510
        %2523 = vst [vmem:[#allocation4] sm:$0xff] %v2511
        %2524 = vst [vmem:[#allocation4 + $0x8] sm:$0xff] %v2512
        %2525 = vst.msk [vmem:[#allocation4 + $0x10] sm:$0xff] %vm272, %v2513
        %2526 = vst [vmem:[#allocation4 + $0x18] sm:$0xff] %v2514
        %2527 = vst [vmem:[#allocation4 + $0x20] sm:$0xff] %v2515
        %2528 = vst.msk [vmem:[#allocation4 + $0x28] sm:$0xff] %vm272, %v2516
        %v2529 = vld [vmem:[#allocation2] sm:$0xff]
        %v2530 = vld [vmem:[#allocation2 + $0x8] sm:$0xff]
        %v2531 = vld [vmem:[#allocation2 + $0x10] sm:$0xff]
        %v2532 = vld [vmem:[#allocation2 + $0x18] sm:$0xff]
        %v2533 = vld [vmem:[#allocation2 + $0x28] sm:$0xff]
        %v2534 = vld [vmem:[#allocation2 + $0x30] sm:$0xff]
        %v2535 = vld [vmem:[#allocation2 + $0x38] sm:$0xff]
        %v2536 = vld [vmem:[#allocation2 + $0x40] sm:$0xff]
        %v2537 = vld [vmem:[#allocation2 + $0x50] sm:$0xff]
        %v2538 = vld [vmem:[#allocation2 + $0x58] sm:$0xff]
        %v2539 = vld [vmem:[#allocation2 + $0x60] sm:$0xff]
        %v2540 = vld [vmem:[#allocation2 + $0x68] sm:$0xff]
        %v2541 = vld [vmem:[#allocation2 + $0x78] sm:$0xff]
        %v2542 = vld [vmem:[#allocation2 + $0x80] sm:$0xff]
        %v2543 = vld [vmem:[#allocation2 + $0x88] sm:$0xff]
        %v2544 = vld [vmem:[#allocation2 + $0x90] sm:$0xff]
        %v2545 = vpack.c.bf16 %v2533, %v2529
        %v2546 = vpack.c.bf16 %v2534, %v2530
        %v2547 = vpack.c.bf16 %v2535, %v2531
        %v2548 = vpack.c.bf16 %v2536, %v2532
        %v2549 = vpack.c.bf16 %v2541, %v2537
        %v2550 = vpack.c.bf16 %v2542, %v2538
        %v2551 = vpack.c.bf16 %v2543, %v2539
        %v2552 = vpack.c.bf16 %v2544, %v2540
        %2561 = vrot.lane.b32.xlu0 %v2545, 18
        %v2562 = vpop.permute.xlu0 %2561
        %2563 = vrot.lane.b32.xlu0 %v2546, 18
        %v2564 = vpop.permute.xlu0 %2563
        %2565 = vrot.lane.b32.xlu0 %v2547, 18
        %v2566 = vpop.permute.xlu0 %2565
        %2567 = vrot.lane.b32.xlu0 %v2548, 18
        %v2568 = vpop.permute.xlu0 %2567
        %2569 = vrot.lane.b32.xlu0 %v2549, 18
        %v2570 = vpop.permute.xlu0 %2569
        %2571 = vrot.lane.b32.xlu0 %v2550, 18
        %v2572 = vpop.permute.xlu0 %2571
        %2573 = vrot.lane.b32.xlu0 %v2551, 18
        %v2574 = vpop.permute.xlu0 %2573
        %2575 = vrot.lane.b32.xlu0 %v2552, 18
        %v2576 = vpop.permute.xlu0 %2575
        %v2577 = vsel %vm335, %v2562, %v2564
        %v2578 = vsel %vm335, %v2564, %v2566
        %v2579 = vsel %vm335, %v2566, %v2568
        %v2580 = vsel %vm335, %v2570, %v2572
        %v2581 = vsel %vm335, %v2572, %v2574
        %v2582 = vsel %vm335, %v2574, %v2576
        %2589 = vst [vmem:[#allocation4 + $0x30] sm:$0xff] %v2577
        %2590 = vst [vmem:[#allocation4 + $0x38] sm:$0xff] %v2578
        %2591 = vst.msk [vmem:[#allocation4 + $0x40] sm:$0xff] %vm272, %v2579
        %2592 = vst [vmem:[#allocation4 + $0x48] sm:$0xff] %v2580
        %2593 = vst [vmem:[#allocation4 + $0x50] sm:$0xff] %v2581
        %2594 = vst.msk [vmem:[#allocation4 + $0x58] sm:$0xff] %vm272, %v2582
        %v2595 = vld [vmem:[#allocation2] sm:$0xff]
        %v2596 = vld [vmem:[#allocation2 + $0x8] sm:$0xff]
        %v2597 = vld [vmem:[#allocation2 + $0x10] sm:$0xff]
        %v2598 = vld [vmem:[#allocation2 + $0x18] sm:$0xff]
        %v2599 = vld [vmem:[#allocation2 + $0x28] sm:$0xff]
        %v2600 = vld [vmem:[#allocation2 + $0x30] sm:$0xff]
        %v2601 = vld [vmem:[#allocation2 + $0x38] sm:$0xff]
        %v2602 = vld [vmem:[#allocation2 + $0x40] sm:$0xff]
        %v2603 = vld [vmem:[#allocation2 + $0x50] sm:$0xff]
        %v2604 = vld [vmem:[#allocation2 + $0x58] sm:$0xff]
        %v2605 = vld [vmem:[#allocation2 + $0x60] sm:$0xff]
        %v2606 = vld [vmem:[#allocation2 + $0x68] sm:$0xff]
        %v2607 = vld [vmem:[#allocation2 + $0x78] sm:$0xff]
        %v2608 = vld [vmem:[#allocation2 + $0x80] sm:$0xff]
        %v2609 = vld [vmem:[#allocation2 + $0x88] sm:$0xff]
        %v2610 = vld [vmem:[#allocation2 + $0x90] sm:$0xff]
        %v2611 = vpack.c.bf16 %v2599, %v2595
        %v2612 = vpack.c.bf16 %v2600, %v2596
        %v2613 = vpack.c.bf16 %v2601, %v2597
        %v2614 = vpack.c.bf16 %v2602, %v2598
        %v2615 = vpack.c.bf16 %v2607, %v2603
        %v2616 = vpack.c.bf16 %v2608, %v2604
        %v2617 = vpack.c.bf16 %v2609, %v2605
        %v2618 = vpack.c.bf16 %v2610, %v2606
        %2627 = vrot.lane.b32.xlu0 %v2611, 17
        %v2628 = vpop.permute.xlu0 %2627
        %2629 = vrot.lane.b32.xlu0 %v2612, 17
        %v2630 = vpop.permute.xlu0 %2629
        %2631 = vrot.lane.b32.xlu0 %v2613, 17
        %v2632 = vpop.permute.xlu0 %2631
        %2633 = vrot.lane.b32.xlu0 %v2614, 17
        %v2634 = vpop.permute.xlu0 %2633
        %2635 = vrot.lane.b32.xlu0 %v2615, 17
        %v2636 = vpop.permute.xlu0 %2635
        %2637 = vrot.lane.b32.xlu0 %v2616, 17
        %v2638 = vpop.permute.xlu0 %2637
        %2639 = vrot.lane.b32.xlu0 %v2617, 17
        %v2640 = vpop.permute.xlu0 %2639
        %2641 = vrot.lane.b32.xlu0 %v2618, 17
        %v2642 = vpop.permute.xlu0 %2641
        %v2643 = vsel %vm353, %v2628, %v2630
        %v2644 = vsel %vm353, %v2630, %v2632
        %v2645 = vsel %vm353, %v2632, %v2634
        %v2646 = vsel %vm353, %v2636, %v2638
        %v2647 = vsel %vm353, %v2638, %v2640
        %v2648 = vsel %vm353, %v2640, %v2642
        %2655 = vst [vmem:[#allocation4 + $0x60] sm:$0xff] %v2643
        %2656 = vst [vmem:[#allocation4 + $0x68] sm:$0xff] %v2644
        %2657 = vst.msk [vmem:[#allocation4 + $0x70] sm:$0xff] %vm272, %v2645
        %2658 = vst [vmem:[#allocation4 + $0x78] sm:$0xff] %v2646
        %2659 = vst [vmem:[#allocation4 + $0x80] sm:$0xff] %v2647
        %2660 = vst.msk [vmem:[#allocation4 + $0x88] sm:$0xff] %vm272, %v2648
        %v2661 = vld [vmem:[#allocation2] sm:$0xff]
        %v2662 = vld [vmem:[#allocation2 + $0x8] sm:$0xff]
        %v2663 = vld [vmem:[#allocation2 + $0x10] sm:$0xff]
        %v2664 = vld [vmem:[#allocation2 + $0x18] sm:$0xff]
        %v2665 = vld [vmem:[#allocation2 + $0x28] sm:$0xff]
        %v2666 = vld [vmem:[#allocation2 + $0x30] sm:$0xff]
        %v2667 = vld [vmem:[#allocation2 + $0x38] sm:$0xff]
        %v2668 = vld [vmem:[#allocation2 + $0x40] sm:$0xff]
        %v2669 = vld [vmem:[#allocation2 + $0x50] sm:$0xff]
        %v2670 = vld [vmem:[#allocation2 + $0x58] sm:$0xff]
        %v2671 = vld [vmem:[#allocation2 + $0x60] sm:$0xff]
        %v2672 = vld [vmem:[#allocation2 + $0x68] sm:$0xff]
        %v2673 = vld [vmem:[#allocation2 + $0x78] sm:$0xff]
        %v2674 = vld [vmem:[#allocation2 + $0x80] sm:$0xff]
        %v2675 = vld [vmem:[#allocation2 + $0x88] sm:$0xff]
        %v2676 = vld [vmem:[#allocation2 + $0x90] sm:$0xff]
        %v2677 = vpack.c.bf16 %v2665, %v2661
        %v2678 = vpack.c.bf16 %v2666, %v2662
        %v2679 = vpack.c.bf16 %v2667, %v2663
        %v2680 = vpack.c.bf16 %v2668, %v2664
        %v2681 = vpack.c.bf16 %v2673, %v2669
        %v2682 = vpack.c.bf16 %v2674, %v2670
        %v2683 = vpack.c.bf16 %v2675, %v2671
        %v2684 = vpack.c.bf16 %v2676, %v2672
        %2693 = vrot.lane.b32.xlu0 %v2677, 1
        %v2694 = vpop.permute.xlu0 %2693
        %2695 = vrot.lane.b32.xlu0 %v2678, 1
        %v2696 = vpop.permute.xlu0 %2695
        %2697 = vrot.lane.b32.xlu0 %v2679, 1
        %v2698 = vpop.permute.xlu0 %2697
        %2699 = vrot.lane.b32.xlu0 %v2680, 1
        %v2700 = vpop.permute.xlu0 %2699
        %2701 = vrot.lane.b32.xlu0 %v2681, 1
        %v2702 = vpop.permute.xlu0 %2701
        %2703 = vrot.lane.b32.xlu0 %v2682, 1
        %v2704 = vpop.permute.xlu0 %2703
        %2705 = vrot.lane.b32.xlu0 %v2683, 1
        %v2706 = vpop.permute.xlu0 %2705
        %2707 = vrot.lane.b32.xlu0 %v2684, 1
        %v2708 = vpop.permute.xlu0 %2707
        %v2709 = vsel %vm371, %v2694, %v2696
        %v2710 = vsel %vm371, %v2696, %v2698
        %v2711 = vsel %vm371, %v2698, %v2700
        %v2712 = vsel %vm371, %v2702, %v2704
        %v2713 = vsel %vm371, %v2704, %v2706
        %v2714 = vsel %vm371, %v2706, %v2708
        %2721 = vst [vmem:[#allocation4 + $0x90] sm:$0xff] %v2709
        %2722 = vst [vmem:[#allocation4 + $0x98] sm:$0xff] %v2710
        %2723 = vst.msk [vmem:[#allocation4 + $0xa0] sm:$0xff] %vm272, %v2711
        %2724 = vst [vmem:[#allocation4 + $0xa8] sm:$0xff] %v2712
        %2725 = vst [vmem:[#allocation4 + $0xb0] sm:$0xff] %v2713
        %2726 = vst.msk [vmem:[#allocation4 + $0xb8] sm:$0xff] %vm272, %v2714
        %v2727 = vld [vmem:[#allocation2 + $0x8] sm:$0xff]
        %v2728 = vld [vmem:[#allocation2 + $0x10] sm:$0xff]
        %v2729 = vld [vmem:[#allocation2 + $0x18] sm:$0xff]
        %v2730 = vld [vmem:[#allocation2 + $0x30] sm:$0xff]
        %v2731 = vld [vmem:[#allocation2 + $0x38] sm:$0xff]
        %v2732 = vld [vmem:[#allocation2 + $0x40] sm:$0xff]
        %v2733 = vld [vmem:[#allocation2 + $0x58] sm:$0xff]
        %v2734 = vld [vmem:[#allocation2 + $0x60] sm:$0xff]
        %v2735 = vld [vmem:[#allocation2 + $0x68] sm:$0xff]
        %v2736 = vld [vmem:[#allocation2 + $0x80] sm:$0xff]
        %v2737 = vld [vmem:[#allocation2 + $0x88] sm:$0xff]
        %v2738 = vld [vmem:[#allocation2 + $0x90] sm:$0xff]
        %v2739 = vpack.c.bf16 %v2730, %v2727
        %v2740 = vpack.c.bf16 %v2731, %v2728
        %v2741 = vpack.c.bf16 %v2732, %v2729
        %v2742 = vpack.c.bf16 %v2736, %v2733
        %v2743 = vpack.c.bf16 %v2737, %v2734
        %v2744 = vpack.c.bf16 %v2738, %v2735
        %2745 = vst [vmem:[#allocation4 + $0xc0] sm:$0xff] %v2739
        %2746 = vst [vmem:[#allocation4 + $0xc8] sm:$0xff] %v2740
        %2747 = vst.msk [vmem:[#allocation4 + $0xd0] sm:$0xff] %vm272, %v2741
        %2748 = vst [vmem:[#allocation4 + $0xd8] sm:$0xff] %v2742
        %2749 = vst [vmem:[#allocation4 + $0xe0] sm:$0xff] %v2743
        %2750 = vst.msk [vmem:[#allocation4 + $0xe8] sm:$0xff] %vm272, %v2744
        %v2751 = vld [vmem:[#allocation2 + $0x8] sm:$0xff]
        %v2752 = vld [vmem:[#allocation2 + $0x10] sm:$0xff]
        %v2753 = vld [vmem:[#allocation2 + $0x18] sm:$0xff]
        %v2754 = vld [vmem:[#allocation2 + $0x30] sm:$0xff]
        %v2755 = vld [vmem:[#allocation2 + $0x38] sm:$0xff]
        %v2756 = vld [vmem:[#allocation2 + $0x40] sm:$0xff]
        %v2757 = vld [vmem:[#allocation2 + $0x58] sm:$0xff]
        %v2758 = vld [vmem:[#allocation2 + $0x60] sm:$0xff]
        %v2759 = vld [vmem:[#allocation2 + $0x68] sm:$0xff]
        %v2760 = vld [vmem:[#allocation2 + $0x80] sm:$0xff]
        %v2761 = vld [vmem:[#allocation2 + $0x88] sm:$0xff]
        %v2762 = vld [vmem:[#allocation2 + $0x90] sm:$0xff]
        %v2763 = vpack.c.bf16 %v2754, %v2751
        %v2764 = vpack.c.bf16 %v2755, %v2752
        %v2765 = vpack.c.bf16 %v2756, %v2753
        %v2766 = vpack.c.bf16 %v2760, %v2757
        %v2767 = vpack.c.bf16 %v2761, %v2758
        %v2768 = vpack.c.bf16 %v2762, %v2759
        %2775 = vrot.lane.b32.xlu0 %v2763, 127
        %v2776 = vpop.permute.xlu0 %2775
        %2777 = vrot.lane.b32.xlu0 %v2764, 127
        %v2778 = vpop.permute.xlu0 %2777
        %2779 = vrot.lane.b32.xlu0 %v2765, 127
        %v2780 = vpop.permute.xlu0 %2779
        %2781 = vrot.lane.b32.xlu0 %v2766, 127
        %v2782 = vpop.permute.xlu0 %2781
        %2783 = vrot.lane.b32.xlu0 %v2767, 127
        %v2784 = vpop.permute.xlu0 %2783
        %2785 = vrot.lane.b32.xlu0 %v2768, 127
        %v2786 = vpop.permute.xlu0 %2785
        %v2787 = vsel %vm390, %v2776, %v2778
        %v2788 = vsel %vm390, %v2778, %v2780
        %v2789 = vsel %vm390, %v2782, %v2784
        %v2790 = vsel %vm390, %v2784, %v2786
        %2797 = vst [vmem:[#allocation4 + $0xf0] sm:$0xff] %v2787
        %2798 = vst [vmem:[#allocation4 + $0xf8] sm:$0xff] %v2788
        %2799 = vst.msk [vmem:[#allocation4 + $0x100] sm:$0xff] %vm272, %v2780
        %2800 = vst [vmem:[#allocation4 + $0x108] sm:$0xff] %v2789
        %2801 = vst [vmem:[#allocation4 + $0x110] sm:$0xff] %v2790
        %2802 = vst.msk [vmem:[#allocation4 + $0x118] sm:$0xff] %vm272, %v2786
        %v2803 = vld [vmem:[#allocation2 + $0x8] sm:$0xff]
        %v2804 = vld [vmem:[#allocation2 + $0x10] sm:$0xff]
        %v2805 = vld [vmem:[#allocation2 + $0x18] sm:$0xff]
        %v2806 = vld [vmem:[#allocation2 + $0x30] sm:$0xff]
        %v2807 = vld [vmem:[#allocation2 + $0x38] sm:$0xff]
        %v2808 = vld [vmem:[#allocation2 + $0x40] sm:$0xff]
        %v2809 = vld [vmem:[#allocation2 + $0x58] sm:$0xff]
        %v2810 = vld [vmem:[#allocation2 + $0x60] sm:$0xff]
        %v2811 = vld [vmem:[#allocation2 + $0x68] sm:$0xff]
        %v2812 = vld [vmem:[#allocation2 + $0x80] sm:$0xff]
        %v2813 = vld [vmem:[#allocation2 + $0x88] sm:$0xff]
        %v2814 = vld [vmem:[#allocation2 + $0x90] sm:$0xff]
        %v2815 = vpack.c.bf16 %v2806, %v2803
        %v2816 = vpack.c.bf16 %v2807, %v2804
        %v2817 = vpack.c.bf16 %v2808, %v2805
        %v2818 = vpack.c.bf16 %v2812, %v2809
        %v2819 = vpack.c.bf16 %v2813, %v2810
        %v2820 = vpack.c.bf16 %v2814, %v2811
        %2827 = vrot.lane.b32.xlu0 %v2815, 111
        %v2828 = vpop.permute.xlu0 %2827
        %2829 = vrot.lane.b32.xlu0 %v2816, 111
        %v2830 = vpop.permute.xlu0 %2829
        %2831 = vrot.lane.b32.xlu0 %v2817, 111
        %v2832 = vpop.permute.xlu0 %2831
        %2833 = vrot.lane.b32.xlu0 %v2818, 111
        %v2834 = vpop.permute.xlu0 %2833
        %2835 = vrot.lane.b32.xlu0 %v2819, 111
        %v2836 = vpop.permute.xlu0 %2835
        %2837 = vrot.lane.b32.xlu0 %v2820, 111
        %v2838 = vpop.permute.xlu0 %2837
        %v2839 = vsel %vm405, %v2828, %v2830
        %v2840 = vsel %vm405, %v2830, %v2832
        %v2841 = vsel %vm405, %v2834, %v2836
        %v2842 = vsel %vm405, %v2836, %v2838
        %2849 = vst [vmem:[#allocation4 + $0x120] sm:$0xff] %v2839
        %2850 = vst [vmem:[#allocation4 + $0x128] sm:$0xff] %v2840
        %2851 = vst.msk [vmem:[#allocation4 + $0x130] sm:$0xff] %vm272, %v2832
        %2852 = vst [vmem:[#allocation4 + $0x138] sm:$0xff] %v2841
        %2853 = vst [vmem:[#allocation4 + $0x140] sm:$0xff] %v2842
        %2854 = vst.msk [vmem:[#allocation4 + $0x148] sm:$0xff] %vm272, %v2838
        %v2855 = vld [vmem:[#allocation2 + $0x8] sm:$0xff]
        %v2856 = vld [vmem:[#allocation2 + $0x10] sm:$0xff]
        %v2857 = vld [vmem:[#allocation2 + $0x18] sm:$0xff]
        %v2858 = vld [vmem:[#allocation2 + $0x30] sm:$0xff]
        %v2859 = vld [vmem:[#allocation2 + $0x38] sm:$0xff]
        %v2860 = vld [vmem:[#allocation2 + $0x40] sm:$0xff]
        %v2861 = vld [vmem:[#allocation2 + $0x58] sm:$0xff]
        %v2862 = vld [vmem:[#allocation2 + $0x60] sm:$0xff]
        %v2863 = vld [vmem:[#allocation2 + $0x68] sm:$0xff]
        %v2864 = vld [vmem:[#allocation2 + $0x80] sm:$0xff]
        %v2865 = vld [vmem:[#allocation2 + $0x88] sm:$0xff]
        %v2866 = vld [vmem:[#allocation2 + $0x90] sm:$0xff]
        %v2867 = vpack.c.bf16 %v2858, %v2855
        %v2868 = vpack.c.bf16 %v2859, %v2856
        %v2869 = vpack.c.bf16 %v2860, %v2857
        %v2870 = vpack.c.bf16 %v2864, %v2861
        %v2871 = vpack.c.bf16 %v2865, %v2862
        %v2872 = vpack.c.bf16 %v2866, %v2863
        %2879 = vrot.lane.b32.xlu0 %v2867, 110
        %v2880 = vpop.permute.xlu0 %2879
        %2881 = vrot.lane.b32.xlu0 %v2868, 110
        %v2882 = vpop.permute.xlu0 %2881
        %2883 = vrot.lane.b32.xlu0 %v2869, 110
        %v2884 = vpop.permute.xlu0 %2883
        %2885 = vrot.lane.b32.xlu0 %v2870, 110
        %v2886 = vpop.permute.xlu0 %2885
        %2887 = vrot.lane.b32.xlu0 %v2871, 110
        %v2888 = vpop.permute.xlu0 %2887
        %2889 = vrot.lane.b32.xlu0 %v2872, 110
        %v2890 = vpop.permute.xlu0 %2889
        %v2891 = vsel %vm420, %v2880, %v2882
        %v2892 = vsel %vm420, %v2882, %v2884
        %v2893 = vsel %vm420, %v2886, %v2888
        %v2894 = vsel %vm420, %v2888, %v2890
        %2901 = vst [vmem:[#allocation4 + $0x150] sm:$0xff] %v2891
        %2902 = vst [vmem:[#allocation4 + $0x158] sm:$0xff] %v2892
        %2903 = vst.msk [vmem:[#allocation4 + $0x160] sm:$0xff] %vm272, %v2884
        %2904 = vst [vmem:[#allocation4 + $0x168] sm:$0xff] %v2893
        %2905 = vst [vmem:[#allocation4 + $0x170] sm:$0xff] %v2894
        %2906 = vst.msk [vmem:[#allocation4 + $0x178] sm:$0xff] %vm272, %v2890
        %v2907 = vld [vmem:[#allocation2 + $0x8] sm:$0xff]
        %v2908 = vld [vmem:[#allocation2 + $0x10] sm:$0xff]
        %v2909 = vld [vmem:[#allocation2 + $0x18] sm:$0xff]
        %v2910 = vld [vmem:[#allocation2 + $0x30] sm:$0xff]
        %v2911 = vld [vmem:[#allocation2 + $0x38] sm:$0xff]
        %v2912 = vld [vmem:[#allocation2 + $0x40] sm:$0xff]
        %v2913 = vld [vmem:[#allocation2 + $0x58] sm:$0xff]
        %v2914 = vld [vmem:[#allocation2 + $0x60] sm:$0xff]
        %v2915 = vld [vmem:[#allocation2 + $0x68] sm:$0xff]
        %v2916 = vld [vmem:[#allocation2 + $0x80] sm:$0xff]
        %v2917 = vld [vmem:[#allocation2 + $0x88] sm:$0xff]
        %v2918 = vld [vmem:[#allocation2 + $0x90] sm:$0xff]
        %v2919 = vpack.c.bf16 %v2910, %v2907
        %v2920 = vpack.c.bf16 %v2911, %v2908
        %v2921 = vpack.c.bf16 %v2912, %v2909
        %v2922 = vpack.c.bf16 %v2916, %v2913
        %v2923 = vpack.c.bf16 %v2917, %v2914
        %v2924 = vpack.c.bf16 %v2918, %v2915
        %2931 = vrot.lane.b32.xlu0 %v2919, 109
        %v2932 = vpop.permute.xlu0 %2931
        %2933 = vrot.lane.b32.xlu0 %v2920, 109
        %v2934 = vpop.permute.xlu0 %2933
        %2935 = vrot.lane.b32.xlu0 %v2921, 109
        %v2936 = vpop.permute.xlu0 %2935
        %2937 = vrot.lane.b32.xlu0 %v2922, 109
        %v2938 = vpop.permute.xlu0 %2937
        %2939 = vrot.lane.b32.xlu0 %v2923, 109
        %v2940 = vpop.permute.xlu0 %2939
        %2941 = vrot.lane.b32.xlu0 %v2924, 109
        %v2942 = vpop.permute.xlu0 %2941
        %v2943 = vsel %vm435, %v2932, %v2934
        %v2944 = vsel %vm435, %v2934, %v2936
        %v2945 = vsel %vm435, %v2938, %v2940
        %v2946 = vsel %vm435, %v2940, %v2942
        %2953 = vst [vmem:[#allocation4 + $0x180] sm:$0xff] %v2943
        %2954 = vst [vmem:[#allocation4 + $0x188] sm:$0xff] %v2944
        %2955 = vst.msk [vmem:[#allocation4 + $0x190] sm:$0xff] %vm272, %v2936
        %2956 = vst [vmem:[#allocation4 + $0x198] sm:$0xff] %v2945
        %2957 = vst [vmem:[#allocation4 + $0x1a0] sm:$0xff] %v2946
        %2958 = vst.msk [vmem:[#allocation4 + $0x1a8] sm:$0xff] %vm272, %v2942
        %v2959 = vld [vmem:[#allocation4] sm:$0xff]
        %v2960 = vld [vmem:[#allocation4 + $0x8] sm:$0xff]
        %v2961 = vld [vmem:[#allocation4 + $0x10] sm:$0xff]
        %v2962 = vld [vmem:[#allocation4 + $0x18] sm:$0xff]
        %v2963 = vld [vmem:[#allocation4 + $0x20] sm:$0xff]
        %v2964 = vld [vmem:[#allocation4 + $0x28] sm:$0xff]
        %v2965 = vld [vmem:[#allocation4 + $0x30] sm:$0xff]
        %v2966 = vld [vmem:[#allocation4 + $0x38] sm:$0xff]
        %v2967 = vld [vmem:[#allocation4 + $0x40] sm:$0xff]
        %v2968 = vld [vmem:[#allocation4 + $0x48] sm:$0xff]
        %v2969 = vld [vmem:[#allocation4 + $0x50] sm:$0xff]
        %v2970 = vld [vmem:[#allocation4 + $0x58] sm:$0xff]
        %v2971 = vld [vmem:[#allocation4 + $0x60] sm:$0xff]
        %v2972 = vld [vmem:[#allocation4 + $0x68] sm:$0xff]
        %v2973 = vld [vmem:[#allocation4 + $0x70] sm:$0xff]
        %v2974 = vld [vmem:[#allocation4 + $0x78] sm:$0xff]
        %v2975 = vld [vmem:[#allocation4 + $0x80] sm:$0xff]
        %v2976 = vld [vmem:[#allocation4 + $0x88] sm:$0xff]
        %v2977 = vld [vmem:[#allocation4 + $0x90] sm:$0xff]
        %v2978 = vld [vmem:[#allocation4 + $0x98] sm:$0xff]
        %v2979 = vld [vmem:[#allocation4 + $0xa0] sm:$0xff]
        %v2980 = vld [vmem:[#allocation4 + $0xa8] sm:$0xff]
        %v2981 = vld [vmem:[#allocation4 + $0xb0] sm:$0xff]
        %v2982 = vld [vmem:[#allocation4 + $0xb8] sm:$0xff]
        %v2983 = vld [vmem:[#allocation4 + $0xc0] sm:$0xff]
        %v2984 = vld [vmem:[#allocation4 + $0xc8] sm:$0xff]
        %v2985 = vld [vmem:[#allocation4 + $0xd0] sm:$0xff]
        %v2986 = vld [vmem:[#allocation4 + $0xd8] sm:$0xff]
        %v2987 = vld [vmem:[#allocation4 + $0xe0] sm:$0xff]
        %v2988 = vld [vmem:[#allocation4 + $0xe8] sm:$0xff]
        %v2989 = vld [vmem:[#allocation4 + $0xf0] sm:$0xff]
        %v2990 = vld [vmem:[#allocation4 + $0xf8] sm:$0xff]
        %v2991 = vld [vmem:[#allocation4 + $0x100] sm:$0xff]
        %v2992 = vld [vmem:[#allocation4 + $0x108] sm:$0xff]
        %v2993 = vld [vmem:[#allocation4 + $0x110] sm:$0xff]
        %v2994 = vld [vmem:[#allocation4 + $0x118] sm:$0xff]
        %v2995 = vld [vmem:[#allocation4 + $0x120] sm:$0xff]
        %v2996 = vld [vmem:[#allocation4 + $0x128] sm:$0xff]
        %v2997 = vld [vmem:[#allocation4 + $0x130] sm:$0xff]
        %v2998 = vld [vmem:[#allocation4 + $0x138] sm:$0xff]
        %v2999 = vld [vmem:[#allocation4 + $0x140] sm:$0xff]
        %v3000 = vld [vmem:[#allocation4 + $0x148] sm:$0xff]
        %v3001 = vld [vmem:[#allocation4 + $0x150] sm:$0xff]
        %v3002 = vld [vmem:[#allocation4 + $0x158] sm:$0xff]
        %v3003 = vld [vmem:[#allocation4 + $0x160] sm:$0xff]
        %v3004 = vld [vmem:[#allocation4 + $0x168] sm:$0xff]
        %v3005 = vld [vmem:[#allocation4 + $0x170] sm:$0xff]
        %v3006 = vld [vmem:[#allocation4 + $0x178] sm:$0xff]
        %v3007 = vld [vmem:[#allocation4 + $0x180] sm:$0xff]
        %v3008 = vld [vmem:[#allocation4 + $0x188] sm:$0xff]
        %v3009 = vld [vmem:[#allocation4 + $0x190] sm:$0xff]
        %v3010 = vld [vmem:[#allocation4 + $0x198] sm:$0xff]
        %v3011 = vld [vmem:[#allocation4 + $0x1a0] sm:$0xff]
        %v3012 = vld [vmem:[#allocation4 + $0x1a8] sm:$0xff]
        %3014 = vset.pattern.permute.xlu0 0
        %3015 = vperm.xlu0 %3014, %v2447
        %v3016 = vpop.permute.xlu0 %3015
        %3019 = vset.pattern.permute.xlu0 0
        %3020 = vperm.xlu0 %3019, %v2448
        %v3021 = vpop.permute.xlu0 %3020
        %3024 = vset.pattern.permute.xlu0 0
        %3025 = vperm.xlu0 %3024, %v2449
        %v3026 = vpop.permute.xlu0 %3025
        %3029 = vset.pattern.permute.xlu0 0
        %3030 = vperm.xlu0 %3029, %v2450
        %v3031 = vpop.permute.xlu0 %3030
        %v3041 = vunpack.c.l.b16 %v2438
        %v3042 = vunpack.c.h.b16 %v2438
        %v3043 = vunpack.c.l.b16 %v2439
        %v3044 = vunpack.c.l.b16 %v2440
        %v3045 = vunpack.c.h.b16 %v2440
        %v3046 = vunpack.c.l.b16 %v2441
        %v3047 = vunpack.c.l.b16 %v2442
        %v3048 = vunpack.c.h.b16 %v2442
        %v3049 = vunpack.c.l.b16 %v2443
        %v3050 = vunpack.c.l.b16 %v2444
        %v3051 = vunpack.c.h.b16 %v2444
        %v3052 = vunpack.c.l.b16 %v2445
        %v3053 = vpack.c.b16 %v3044, %v3041
        %v3054 = vpack.c.b16 %v3045, %v3042
        %v3055 = vpack.c.b16 %v3046, %v3043
        %v3056 = vpack.c.b16 %v3050, %v3047
        %v3057 = vpack.c.b16 %v3051, %v3048
        %v3058 = vpack.c.b16 %v3052, %v3049
        %vm3063 = vcmask 261120
        %v3065 = vsel %vm3063, %v3055, 0
        %v3068 = vsel %vm3063, %v3058, 0
        %3070 = vmatprep.subr.bf16.mxu0 %v2960
        %3071 = vmatpush1.bf16.msra.mxu0 %v2959
        %3072 = vmatprep.subr.bf16.mxu0 %v2963
        %3073 = vmatpush1.bf16.msra.mxu0 %v2962
        %3074 = vmatprep.subr.bf16.mxu0 %v2966
        %3075 = vmatpush1.bf16.msra.mxu0 %v2965
        %3076 = vmatprep.subr.bf16.mxu0 %v2969
        %3077 = vmatpush1.bf16.msra.mxu0 %v2968
        %3078 = vmatprep.subr.bf16.mxu0 %v2972
        %3079 = vmatpush1.bf16.msra.mxu0 %v2971
        %3080 = vmatprep.subr.bf16.mxu0 %v2975
        %3081 = vmatpush1.bf16.msra.mxu0 %v2974
        %3082 = vmatprep.subr.bf16.mxu0 %v2978
        %3083 = vmatpush1.bf16.msra.mxu0 %v2977
        %3084 = vmatprep.subr.bf16.mxu0 %v2981
        %3085 = vmatpush1.bf16.msra.mxu0 %v2980
        %3086 = vmatprep.subr.bf16.mxu0 %v2984
        %3087 = vmatpush1.bf16.msra.mxu0 %v2983
        %3088 = vmatprep.subr.bf16.mxu0 %v2987
        %3089 = vmatpush1.bf16.msra.mxu0 %v2986
        %3090 = vmatprep.subr.bf16.mxu0 %v2990
        %3091 = vmatpush1.bf16.msra.mxu0 %v2989
        %3092 = vmatprep.subr.bf16.mxu0 %v2993
        %3093 = vmatpush1.bf16.msra.mxu0 %v2992
        %3094 = vmatprep.subr.bf16.mxu0 %v2996
        %3095 = vmatpush1.bf16.msra.mxu0 %v2995
        %3096 = vmatprep.subr.bf16.mxu0 %v2999
        %3097 = vmatpush1.bf16.msra.mxu0 %v2998
        %3098 = vmatprep.subr.bf16.mxu0 %v3002
        %3099 = vmatpush1.bf16.msra.mxu0 %v3001
        %3100 = vmatprep.subr.bf16.mxu0 %v3005
        %3101 = vmatpush1.bf16.msra.mxu0 %v3004
        %3102 = vmatprep.mubr.bf16.mxu0 %v3054
        %3103 = vmatmul.mubr.bf16.gmra.mrb[0].mxu0 %v3053
        %v3104 = vpop.f32.mrb[0].mxu0
        %v3105 = vadd.f32 %v3016, %v3104
        %v3106 = vpop.f32.mrb[0].mxu0
        %v3107 = vadd.f32 %v3016, %v3106
        %v3108 = vpop.f32.mrb[0].mxu0
        %v3109 = vadd.f32 %v3021, %v3108
        %v3110 = vpop.f32.mrb[0].mxu0
        %v3111 = vadd.f32 %v3021, %v3110
        %3112 = vmatprep.mubr.bf16.mxu0 %v3057
        %3113 = vmatmul.mubr.bf16.gmra.mrb[0].mxu0 %v3056
        %v3114 = vpop.f32.mrb[0].mxu0
        %v3115 = vadd.f32 %v3026, %v3114
        %v3116 = vpop.f32.mrb[0].mxu0
        %v3117 = vadd.f32 %v3026, %v3116
        %v3118 = vpop.f32.mrb[0].mxu0
        %v3119 = vadd.f32 %v3031, %v3118
        %v3120 = vpop.f32.mrb[0].mxu0
        %v3121 = vadd.f32 %v3031, %v3120
        %3122 = vdwg.mxu0
        %3123 = vmatprep.subr.bf16.mxu0 %v3008
        %3124 = vmatpush1.bf16.msra.mxu0 %v3007
        %3125 = vmatprep.subr.bf16.mxu0 %v3011
        %3126 = vmatpush1.bf16.msra.mxu0 %v3010
        %3127 = vmatprep.subr.bf16.mxu0 0
        %3128 = vmatpush1.bf16.msra.mxu0 0
        %3129 = vmatprep.subr.bf16.mxu0 0
        %3130 = vmatpush1.bf16.msra.mxu0 0
        %3131 = vmatprep.subr.bf16.mxu0 0
        %3132 = vmatpush1.bf16.msra.mxu0 0
        %3133 = vmatprep.subr.bf16.mxu0 0
        %3134 = vmatpush1.bf16.msra.mxu0 0
        %3135 = vmatprep.subr.bf16.mxu0 0
        %3136 = vmatpush1.bf16.msra.mxu0 0
        %3137 = vmatprep.subr.bf16.mxu0 0
        %3138 = vmatpush1.bf16.msra.mxu0 0
        %3139 = vmatprep.subr.bf16.mxu0 0
        %3140 = vmatpush1.bf16.msra.mxu0 0
        %3141 = vmatprep.subr.bf16.mxu0 0
        %3142 = vmatpush1.bf16.msra.mxu0 0
        %3143 = vmatprep.subr.bf16.mxu0 0
        %3144 = vmatpush1.bf16.msra.mxu0 0
        %3145 = vmatprep.subr.bf16.mxu0 0
        %3146 = vmatpush1.bf16.msra.mxu0 0
        %3147 = vmatprep.subr.bf16.mxu0 0
        %3148 = vmatpush1.bf16.msra.mxu0 0
        %3149 = vmatprep.subr.bf16.mxu0 0
        %3150 = vmatpush1.bf16.msra.mxu0 0
        %3151 = vmatprep.subr.bf16.mxu0 0
        %3152 = vmatpush1.bf16.msra.mxu0 0
        %3153 = vmatprep.subr.bf16.mxu0 0
        %3154 = vmatpush1.bf16.msra.mxu0 0
        %3155 = vmatprep.mubr.bf16.mxu0 0
        %3156 = vmatmul.mubr.bf16.gmra.mrb[0].mxu0 %v3065
        %v3157 = vpop.f32.mrb[0].mxu0
        %v3158 = vadd.f32 %v3105, %v3157
        %v3159 = vpop.f32.mrb[0].mxu0
        %v3160 = vadd.f32 %v3107, %v3159
        %v3161 = vpop.f32.mrb[0].mxu0
        %v3162 = vadd.f32 %v3109, %v3161
        %v3163 = vpop.f32.mrb[0].mxu0
        %v3164 = vadd.f32 %v3111, %v3163
        %3165 = vmatprep.mubr.bf16.mxu0 0
        %3166 = vmatmul.mubr.bf16.gmra.mrb[0].mxu0 %v3068
        %v3167 = vpop.f32.mrb[0].mxu0
        %v3168 = vadd.f32 %v3115, %v3167
        %v3169 = vpop.f32.mrb[0].mxu0
        %v3170 = vadd.f32 %v3117, %v3169
        %v3171 = vpop.f32.mrb[0].mxu0
        %v3172 = vadd.f32 %v3119, %v3171
        %v3173 = vpop.f32.mrb[0].mxu0
        %v3174 = vadd.f32 %v3121, %v3173
        %3175 = vdwg.mxu0
        %3176 = vmatprep.subr.bf16.mxu0 0
        %3177 = vmatpush1.bf16.msra.mxu0 %v2961
        %3178 = vmatprep.subr.bf16.mxu0 0
        %3179 = vmatpush1.bf16.msra.mxu0 %v2964
        %3180 = vmatprep.subr.bf16.mxu0 0
        %3181 = vmatpush1.bf16.msra.mxu0 %v2967
        %3182 = vmatprep.subr.bf16.mxu0 0
        %3183 = vmatpush1.bf16.msra.mxu0 %v2970
        %3184 = vmatprep.subr.bf16.mxu0 0
        %3185 = vmatpush1.bf16.msra.mxu0 %v2973
        %3186 = vmatprep.subr.bf16.mxu0 0
        %3187 = vmatpush1.bf16.msra.mxu0 %v2976
        %3188 = vmatprep.subr.bf16.mxu0 0
        %3189 = vmatpush1.bf16.msra.mxu0 %v2979
        %3190 = vmatprep.subr.bf16.mxu0 0
        %3191 = vmatpush1.bf16.msra.mxu0 %v2982
        %3192 = vmatprep.subr.bf16.mxu0 0
        %3193 = vmatpush1.bf16.msra.mxu0 %v2985
        %3194 = vmatprep.subr.bf16.mxu0 0
        %3195 = vmatpush1.bf16.msra.mxu0 %v2988
        %3196 = vmatprep.subr.bf16.mxu0 0
        %3197 = vmatpush1.bf16.msra.mxu0 %v2991
        %3198 = vmatprep.subr.bf16.mxu0 0
        %3199 = vmatpush1.bf16.msra.mxu0 %v2994
        %3200 = vmatprep.subr.bf16.mxu0 0
        %3201 = vmatpush1.bf16.msra.mxu0 %v2997
        %3202 = vmatprep.subr.bf16.mxu0 0
        %3203 = vmatpush1.bf16.msra.mxu0 %v3000
        %3204 = vmatprep.subr.bf16.mxu0 0
        %3205 = vmatpush1.bf16.msra.mxu0 %v3003
        %3206 = vmatprep.subr.bf16.mxu0 0
        %3207 = vmatpush1.bf16.msra.mxu0 %v3006
        %3208 = vmatprep.mubr.bf16.mxu0 %v3054
        %3209 = vmatmul.mubr.bf16.gmra.mrb[0].mxu0 %v3053
        %v3210 = vpop.f32.mrb[0].mxu0
        %v3211 = vadd.f32 %v3016, %v3210
        %v3212 = vpop.f32.mrb[0].mxu0
        %v3213 = vpop.f32.mrb[0].mxu0
        %v3214 = vadd.f32 %v3021, %v3213
        %v3215 = vpop.f32.mrb[0].mxu0
        %3216 = vmatprep.mubr.bf16.mxu0 %v3057
        %3217 = vmatmul.mubr.bf16.gmra.mrb[0].mxu0 %v3056
        %v3218 = vpop.f32.mrb[0].mxu0
        %v3219 = vadd.f32 %v3026, %v3218
        %v3220 = vpop.f32.mrb[0].mxu0
        %v3221 = vpop.f32.mrb[0].mxu0
        %v3222 = vadd.f32 %v3031, %v3221
        %v3223 = vpop.f32.mrb[0].mxu0
        %3224 = vdwg.mxu0
        %3225 = vmatprep.subr.bf16.mxu0 0
        %3226 = vmatpush1.bf16.msra.mxu0 %v3009
        %3227 = vmatprep.subr.bf16.mxu0 0
        %3228 = vmatpush1.bf16.msra.mxu0 %v3012
        %3229 = vmatprep.subr.bf16.mxu0 0
        %3230 = vmatpush1.bf16.msra.mxu0 0
        %3231 = vmatprep.subr.bf16.mxu0 0
        %3232 = vmatpush1.bf16.msra.mxu0 0
        %3233 = vmatprep.subr.bf16.mxu0 0
        %3234 = vmatpush1.bf16.msra.mxu0 0
        %3235 = vmatprep.subr.bf16.mxu0 0
        %3236 = vmatpush1.bf16.msra.mxu0 0
        %3237 = vmatprep.subr.bf16.mxu0 0
        %3238 = vmatpush1.bf16.msra.mxu0 0
        %3239 = vmatprep.subr.bf16.mxu0 0
        %3240 = vmatpush1.bf16.msra.mxu0 0
        %3241 = vmatprep.subr.bf16.mxu0 0
        %3242 = vmatpush1.bf16.msra.mxu0 0
        %3243 = vmatprep.subr.bf16.mxu0 0
        %3244 = vmatpush1.bf16.msra.mxu0 0
        %3245 = vmatprep.subr.bf16.mxu0 0
        %3246 = vmatpush1.bf16.msra.mxu0 0
        %3247 = vmatprep.subr.bf16.mxu0 0
        %3248 = vmatpush1.bf16.msra.mxu0 0
        %3249 = vmatprep.subr.bf16.mxu0 0
        %3250 = vmatpush1.bf16.msra.mxu0 0
        %3251 = vmatprep.subr.bf16.mxu0 0
        %3252 = vmatpush1.bf16.msra.mxu0 0
        %3253 = vmatprep.subr.bf16.mxu0 0
        %3254 = vmatpush1.bf16.msra.mxu0 0
        %3255 = vmatprep.subr.bf16.mxu0 0
        %3256 = vmatpush1.bf16.msra.mxu0 0
        %3257 = vmatprep.mubr.bf16.mxu0 0
        %3258 = vmatmul.mubr.bf16.gmra.mrb[0].mxu0 %v3065
        %v3259 = vpop.f32.mrb[0].mxu0
        %v3260 = vadd.f32 %v3211, %v3259
        %v3261 = vpop.f32.mrb[0].mxu0
        %v3262 = vpop.f32.mrb[0].mxu0
        %v3263 = vadd.f32 %v3214, %v3262
        %v3264 = vpop.f32.mrb[0].mxu0
        %3265 = vmatprep.mubr.bf16.mxu0 0
        %3266 = vmatmul.mubr.bf16.gmra.mrb[0].mxu0 %v3068
        %v3267 = vpop.f32.mrb[0].mxu0
        %v3268 = vadd.f32 %v3219, %v3267
        %v3269 = vpop.f32.mrb[0].mxu0
        %v3270 = vpop.f32.mrb[0].mxu0
        %v3271 = vadd.f32 %v3222, %v3270
        %v3272 = vpop.f32.mrb[0].mxu0
        %3273 = vdwg.mxu0
        %v3274 = vadd.f32 %v2451, %v3158
        %v3275 = vadd.f32 %v2452, %v3160
        %v3276 = vadd.f32 %v2453, %v3260
        %v3277 = vadd.f32 %v2454, %v3162
        %v3278 = vadd.f32 %v2455, %v3164
        %v3279 = vadd.f32 %v2456, %v3263
        %v3280 = vadd.f32 %v2457, %v3168
        %v3281 = vadd.f32 %v2458, %v3170
        %v3282 = vadd.f32 %v2459, %v3268
        %v3283 = vadd.f32 %v2460, %v3172
        %v3284 = vadd.f32 %v2461, %v3174
        %v3285 = vadd.f32 %v2462, %v3271
        %3286 = vst [vmem:[%s259] sm:$0xff] %v3274
        %3287 = vst [vmem:[%s259 + $0x8] sm:$0xff] %v3275
        %3288 = vst.msk [vmem:[%s259 + $0x10] sm:$0xff] %vm272, %v3276
        %3289 = vst [vmem:[%s259 + $0x18] sm:$0xff] %v3277
        %3290 = vst [vmem:[%s259 + $0x20] sm:$0xff] %v3278
        %3291 = vst.msk [vmem:[%s259 + $0x28] sm:$0xff] %vm272, %v3279
        %3292 = vst [vmem:[%s259 + $0x30] sm:$0xff] %v3280
        %3293 = vst [vmem:[%s259 + $0x38] sm:$0xff] %v3281
        %3294 = vst.msk [vmem:[%s259 + $0x40] sm:$0xff] %vm272, %v3282
        %3295 = vst [vmem:[%s259 + $0x48] sm:$0xff] %v3283
        %3296 = vst [vmem:[%s259 + $0x50] sm:$0xff] %v3284
        %3297 = vst.msk [vmem:[%s259 + $0x58] sm:$0xff] %vm272, %v3285
        %s3298 = sand.u32 %s160, 1
        %s3299 = scalar_lea.sflag [#allocation7], %s3298
        %s3300 = sand.u32 %s160, 1
        %s3301 = smul.addr %s3300, 96
        %s3302 = scalar_lea.vmem [#allocation8], %s3301
        // Predicated region
        $region56: #{tpu_custom_call.1} parent=43 // pred_check
          %p3303 = pneg %p170
        $region57: #{tpu_custom_call.1} parent=43 // pred_check_branch
          %3305 = sbr.rel (%p3303) target = $region59
        $region58: #{tpu_custom_call.1} parent=43 // pred_region
          %s3307 = ssub.s32 1536, 1536
          %3308 = vsyncadd %s3299, %s3307
          %s3309 = smul.addr %s21, 12
          %s3310 = smul.addr %s3309, 128
          %s3311 = scalar_lea.hbm %s6, %s3310
          %s3312 = sshll.u32 %s3302, 4
          %s3313 = int_to_ptr.vmem [resolvable:$true] %s3312
          %3318 = dma.vmem_to_hbm [thread:$0]  %s3313, 1536, %s3311, %s3299, 384, 384, 24
        $region59: #{tpu_custom_call.1} parent=43 // pred_fallthru
          _
      $region44: #{tpu_custom_call.1} parent=5 // pred_fallthru
        _
      %p3319 = scmp.le.s32.totalorder 2, %s16
      // Predicated region
      $region60: #{tpu_custom_call.1} parent=5 // pred_check
        %p3320 = pneg %p3319
      $region61: #{tpu_custom_call.1} parent=5 // pred_check_branch
        %3322 = sbr.rel (%p3320) target = $region63
      $region62: #{tpu_custom_call.1} parent=5 // pred_region
        %s3323 = ssub.s32 %s16, 2
        // Predicated region
        $region64: #{tpu_custom_call.1} parent=62 // pred_check
          %p3324 = pneg %p176
        $region65: #{tpu_custom_call.1} parent=62 // pred_check_branch
          %3326 = sbr.rel (%p3324) target = $region67
        $region66: #{tpu_custom_call.1} parent=62 // pred_region
          %s3327 = sand.u32 %s161, 1
          %s3328 = scalar_lea.sflag [#allocation7], %s3327
          %s3329 = sand.u32 %s161, 1
          %s3330 = smul.addr %s3329, 96
          %s3331 = scalar_lea.vmem [#allocation8], %s3330
          %3332 = dma.done %s3328, 1536
        $region67: #{tpu_custom_call.1} parent=62 // pred_fallthru
          _
      $region63: #{tpu_custom_call.1} parent=5 // pred_fallthru
        _
    $region6: #{tpu_custom_call.1} parent=1 // loop_footer
      %s20 = sadd.s32 1, %s16
    $region7: #{tpu_custom_call.1} parent=1 // loop_footer_branch
      %15 = sbr.rel target = $region3
    $region8: #{tpu_custom_call.1} parent=1 // loop_exit
      _
    %3333 = vsyncpa [#allocation6], 1
    %s3334 = scalar_lea.sflag [#allocation6], 1
    %3335 = vsyncpa %s3334, 1
    %3336 = vsyncpa [#allocation7], 1
    %s3337 = scalar_lea.sflag [#allocation7], 1
    %3338 = vsyncpa %s3337, 1

</llo_original>
